<compile_context>
chip_gen: v7x
topology: tpu7x:2x2x1
jax: 0.10.0
libtpu: 0.0.40
codegen_flags: <defaults>
</compile_context>

<pallas_src>
import math
import functools

import jax
import jax.numpy as jnp
from jax import lax
from jax.experimental import pallas as pl
from jax.experimental.pallas import tpu as pltpu


def _cross_attention_kernel(tgt_ref, src_ref, wq_ref, wkf_ref, wv_ref,
                            wo_ref, gamma_ref, beta_ref, out_ref,
                            *, num_heads, eps):
    Bb, N, C = tgt_ref.shape
    P = src_ref.shape[1]
    H = num_heads
    mxu_dtype = wq_ref.dtype                      # bf16 or f32 MXU operands

    # Flatten the batch block into rows; vector math stays in f32.
    t = tgt_ref[...].reshape(Bb * N, C).astype(jnp.float32)   # residual too
    s = src_ref[...].reshape(Bb * P, C).astype(jnp.float32)

    # LayerNorm(target_dim): biased variance, eps=1e-5 (matches nn.LayerNorm)
    mean = jnp.mean(t, axis=-1, keepdims=True)
    var = jnp.mean((t - mean) ** 2, axis=-1, keepdims=True)
    tn = (t - mean) * lax.rsqrt(var + eps)
    tn = tn * gamma_ref[...] + beta_ref[...]                  # (Bb*N, C)

    # Q/K/V projections (qkv_bias=False).  wkf already contains W_att and the
    # full 1/C attention scale.
    q = jnp.dot(tn.astype(mxu_dtype), wq_ref[...],
                preferred_element_type=jnp.float32)           # (Bb*N, H*C)
    s_m = s.astype(mxu_dtype)
    k = jnp.dot(s_m, wkf_ref[...],
                preferred_element_type=jnp.float32)           # (Bb*P, H*C)
    v = jnp.dot(s_m, wv_ref[...],
                preferred_element_type=jnp.float32)           # (Bb*P, H*C)

    # Per (batch-in-block, head) attention; heads are heads-major along the
    # projected feature dim, matching the PyTorch reshape(B, ., heads, C).
    ctx_rows = []
    for b in range(Bb):
        qb = q[b * N:(b + 1) * N, :]
        kb = k[b * P:(b + 1) * P, :]
        vb = v[b * P:(b + 1) * P, :]
        head_ctx = []
        for h in range(H):
            qh = qb[:, h * C:(h + 1) * C]                     # (N, C)
            kh = kb[:, h * C:(h + 1) * C]                     # (P, C)
            vh = vb[:, h * C:(h + 1) * C]                     # (P, C)

            # scores: contract C of both operands -> no materialized kh.T
            attn = lax.dot_general(
                qh, kh, (((1,), (1,)), ((), ())),
                preferred_element_type=jnp.float32)           # (N, P)

            # softmax over source tokens (f32; reciprocal on the EUP)
            attn = jnp.exp(attn - jnp.max(attn, axis=-1, keepdims=True))
            attn = attn * pl.reciprocal(
                jnp.sum(attn, axis=-1, keepdims=True), approx=True)

            head_ctx.append(jnp.dot(attn.astype(mxu_dtype),
                                    vh.astype(mxu_dtype),
                                    preferred_element_type=jnp.float32))
        ctx_rows.append(jnp.concatenate(head_ctx, axis=-1))   # (N, H*C)
    ctx = jnp.concatenate(ctx_rows, axis=0)                   # (Bb*N, H*C)

    # ELU (alpha=1), applied once to the whole slab.  min() keeps the
    # unselected exp branch finite for large positive ctx.
    ctx = jnp.where(ctx > 0.0, ctx, jnp.exp(jnp.minimum(ctx, 0.0)) - 1.0)

    # Single HC-deep output projection + residual.
    out = t + jnp.dot(ctx.astype(mxu_dtype), wo_ref[...],
                      preferred_element_type=jnp.float32)     # (Bb*N, C)
    out_ref[...] = out.reshape(Bb, N, C).astype(out_ref.dtype)
    # TODO(synk): optional `mask` argument of the PyTorch forward is not
    # implemented (the example call uses mask=None); dropout is identity.


def cross_attention(target, source, params, *, num_heads,
                    block_b=None, compute_dtype=jnp.float32):
    B, N, C = target.shape
    P = source.shape[1]
    H = num_heads
    HC = H * C
    if block_b is None:
        block_b = B
    assert B % block_b == 0, "block_b must divide batch"

    # Fold W_att and both 1/sqrt(C) factors into W_K (done once, in f32).
    wk = params["wk"].astype(jnp.float32)                     # (C, H*C)
    watt = params["watt"].astype(jnp.float32)                 # (H, C, C)
    wk_fused = jnp.einsum("ihc,hcd->ihd",
                          wk.reshape(C, H, C), watt).reshape(C, HC) * (1.0 / C)

    wq = params["wq"].astype(compute_dtype)
    wkf = wk_fused.astype(compute_dtype)
    wv = params["wv"].astype(compute_dtype)
    wo = params["wo"].astype(compute_dtype)
    gamma = params["gamma"].astype(jnp.float32)
    beta = params["beta"].astype(jnp.float32)

    kernel = functools.partial(_cross_attention_kernel,
                               num_heads=num_heads, eps=1e-5)
    return pl.pallas_call(
        kernel,
        out_shape=jax.ShapeDtypeStruct((B, N, C), jnp.float32),
        grid_spec=pltpu.PrefetchScalarGridSpec(
            num_scalar_prefetch=0,
            grid=(B // block_b,),
            in_specs=[
                pl.BlockSpec((block_b, N, C), lambda b: (b, 0, 0)),  # target
                pl.BlockSpec((block_b, P, C), lambda b: (b, 0, 0)),  # source
                pl.BlockSpec((C, HC), lambda b: (0, 0)),             # W_Q
                pl.BlockSpec((C, HC), lambda b: (0, 0)),             # W_K@W_att/C
                pl.BlockSpec((C, HC), lambda b: (0, 0)),             # W_V
                pl.BlockSpec((HC, C), lambda b: (0, 0)),             # W_O
                pl.BlockSpec((1, C), lambda b: (0, 0)),              # LN gamma
                pl.BlockSpec((1, C), lambda b: (0, 0)),              # LN beta
            ],
            out_specs=pl.BlockSpec((block_b, N, C), lambda b: (b, 0, 0)),
        ),
        compiler_params=pltpu.CompilerParams(
            dimension_semantics=("parallel",),
            vmem_limit_bytes=32 * 1024 * 1024),
    )(target, source, wq, wkf, wv, wo, gamma, beta)


def reference(target, source, params, *, num_heads):
    """Pure-JAX transliteration of the PyTorch forward (for verification)."""
    B, N, C = target.shape
    P = source.shape[1]
    residual = target
    mean = target.mean(-1, keepdims=True)
    var = ((target - mean) ** 2).mean(-1, keepdims=True)
    tn = (target - mean) / jnp.sqrt(var + 1e-5)
    tn = tn * params["gamma"][0] + params["beta"][0]
    q = (tn @ params["wq"]).reshape(B, N, num_heads, C).transpose(0, 2, 1, 3)
    k = (source @ params["wk"]).reshape(B, P, num_heads, C).transpose(0, 2, 1, 3)
    v = (source @ params["wv"]).reshape(B, P, num_heads, C).transpose(0, 2, 1, 3)
    k = jnp.einsum("bhpc,hcd->bhpd", k, params["watt"]) / math.sqrt(C)
    attn = jnp.einsum("bhnc,bhpc->bhnp", q, k) / math.sqrt(C)
    attn = jax.nn.softmax(attn, axis=-1)
    ctx = jnp.einsum("bhnp,bhpc->bhnc", attn, v)
    ctx = ctx.transpose(0, 2, 1, 3).reshape(B, N, num_heads * C)
    ctx = jnp.where(ctx > 0.0, ctx, jnp.exp(ctx) - 1.0)  # ELU(alpha=1)
    return residual + ctx @ params["wo"]


def make_params(key, C, num_heads):
    """Deterministic synthetic parameters (shapes match the nn.Module __init__)."""
    k1, k2, k3, k4, k5 = jax.random.split(key, 5)
    lin_bound = 1.0 / math.sqrt(C)                 # nn.Linear default init range
    xav_bound = math.sqrt(6.0 / (C + C))           # xavier_uniform for W_att
    return {
        # stored as (in, out) so the kernel applies x @ W
        "wq": jax.random.uniform(k1, (C, num_heads * C), jnp.float32,
                                 -lin_bound, lin_bound),
        "wk": jax.random.uniform(k2, (C, num_heads * C), jnp.float32,
                                 -lin_bound, lin_bound),
        "wv": jax.random.uniform(k3, (C, num_heads * C), jnp.float32,
                                 -lin_bound, lin_bound),
        "watt": jax.random.uniform(k4, (num_heads, C, C), jnp.float32,
                                   -xav_bound, xav_bound),
        "wo": jax.random.uniform(k5, (num_heads * C, C), jnp.float32,
                                 -1.0 / math.sqrt(num_heads * C),
                                 1.0 / math.sqrt(num_heads * C)),
        "gamma": jnp.ones((1, C), jnp.float32),    # LayerNorm weight
        "beta": jnp.zeros((1, C), jnp.float32),    # LayerNorm bias
    }


if __name__ == "__main__":
    B, N, P, C = 4, 8, 8, 32        # batch, target tokens, source tokens, dim
    num_heads = 8

    key = jax.random.PRNGKey(0)
    kp, kt, ks = jax.random.split(key, 3)
    params = make_params(kp, C, num_heads)
    target = jax.random.normal(kt, (B, N, C), jnp.float32)
    source = jax.random.normal(ks, (B, P, C), jnp.float32)

    ref = reference(target, source, params, num_heads=num_heads)

    # f32 MXU operands (reference-accuracy path).
    out = cross_attention(target, source, params, num_heads=num_heads,
                          block_b=2)
    out = jax.block_until_ready(out)
    assert out.shape == (B, N, C)
    err = float(jnp.max(jnp.abs(out - ref)))
    # approx reciprocal in the softmax denominator -> slightly loose tolerance
    assert err < 1e-2, f"f32 max abs err {err}"

    # bf16 MXU operands (v5e/v6e/v7x fast path); LN/softmax/ELU stay f32.
    out_bf16 = cross_attention(target, source, params, num_heads=num_heads,
                               block_b=2, compute_dtype=jnp.bfloat16)
    out_bf16 = jax.block_until_ready(out_bf16)
    err_bf16 = float(jnp.max(jnp.abs(out_bf16 - ref)))
    assert err_bf16 < 1.5e-1, f"bf16 max abs err {err_bf16}"

    print("KERNEL_OK")
</pallas_src>

<mosaic_0001>
module attributes {stable_mosaic.version = 11 : i64} {
  func.func @_cross_attention_kernel(%arg0: i32, %arg1: memref<2x8x32xf32, #tpu.memory_space<vmem>>, %arg2: memref<2x8x32xf32, #tpu.memory_space<vmem>>, %arg3: memref<32x256xf32, #tpu.memory_space<vmem>>, %arg4: memref<32x256xf32, #tpu.memory_space<vmem>>, %arg5: memref<32x256xf32, #tpu.memory_space<vmem>>, %arg6: memref<256x32xf32, #tpu.memory_space<vmem>>, %arg7: memref<1x32xf32, #tpu.memory_space<vmem>>, %arg8: memref<1x32xf32, #tpu.memory_space<vmem>>, %arg9: memref<2x8x32xf32, #tpu.memory_space<vmem>>) attributes {dimension_semantics = [#tpu.dimension_semantics<parallel>], iteration_bounds = array<i64: 2>, scalar_prefetch = 0 : i64, scratch_operands = 0 : i64, tpu.core_type = #tpu.core_type<tc>, window_params = [{transform_indices = @transform_0, window_bounds = array<i64: 2, 8, 32>}, {transform_indices = @transform_1, window_bounds = array<i64: 2, 8, 32>}, {pipeline_mode = #tpu.pipeline_mode<synchronous>, transform_indices = @transform_2, window_bounds = array<i64: 32, 256>}, {pipeline_mode = #tpu.pipeline_mode<synchronous>, transform_indices = @transform_3, window_bounds = array<i64: 32, 256>}, {pipeline_mode = #tpu.pipeline_mode<synchronous>, transform_indices = @transform_4, window_bounds = array<i64: 32, 256>}, {pipeline_mode = #tpu.pipeline_mode<synchronous>, transform_indices = @transform_5, window_bounds = array<i64: 256, 32>}, {pipeline_mode = #tpu.pipeline_mode<synchronous>, transform_indices = @transform_6, window_bounds = array<i64: 1, 32>}, {pipeline_mode = #tpu.pipeline_mode<synchronous>, transform_indices = @transform_7, window_bounds = array<i64: 1, 32>}, {transform_indices = @transform_8, window_bounds = array<i64: 2, 8, 32>}]} {
    %c0 = arith.constant 0 : index
    %c0_0 = arith.constant 0 : index
    %c0_1 = arith.constant 0 : index
    %0 = vector.load %arg1[%c0, %c0_0, %c0_1] : memref<2x8x32xf32, #tpu.memory_space<vmem>>, vector<2x8x32xf32>
    %1 = vector.shape_cast %0 : vector<2x8x32xf32> to vector<16x32xf32>
    %c0_2 = arith.constant 0 : index
    %c0_3 = arith.constant 0 : index
    %c0_4 = arith.constant 0 : index
    %2 = vector.load %arg2[%c0_2, %c0_3, %c0_4] : memref<2x8x32xf32, #tpu.memory_space<vmem>>, vector<2x8x32xf32>
    %3 = vector.shape_cast %2 : vector<2x8x32xf32> to vector<16x32xf32>
    %cst = arith.constant dense<0.000000e+00> : vector<16xf32>
    %4 = vector.multi_reduction <add>, %1, %cst [1] : vector<16x32xf32> to vector<16xf32>
    %5 = vector.shape_cast %4 : vector<16xf32> to vector<16x1xf32>
    %cst_5 = arith.constant 3.200000e+01 : f32
    %6 = vector.broadcast %cst_5 : f32 to vector<16x1xf32>
    %7 = arith.divf %5, %6 : vector<16x1xf32>
    %8 = vector.broadcast %7 : vector<16x1xf32> to vector<16x32xf32>
    %9 = arith.subf %1, %8 : vector<16x32xf32>
    %10 = arith.mulf %9, %9 : vector<16x32xf32>
    %cst_6 = arith.constant dense<0.000000e+00> : vector<16xf32>
    %11 = vector.multi_reduction <add>, %10, %cst_6 [1] : vector<16x32xf32> to vector<16xf32>
    %12 = vector.shape_cast %11 : vector<16xf32> to vector<16x1xf32>
    %cst_7 = arith.constant 3.200000e+01 : f32
    %13 = vector.broadcast %cst_7 : f32 to vector<16x1xf32>
    %14 = arith.divf %12, %13 : vector<16x1xf32>
    %15 = vector.broadcast %7 : vector<16x1xf32> to vector<16x32xf32>
    %16 = arith.subf %1, %15 : vector<16x32xf32>
    %cst_8 = arith.constant 9.99999974E-6 : f32
    %17 = vector.broadcast %cst_8 : f32 to vector<16x1xf32>
    %18 = arith.addf %14, %17 : vector<16x1xf32>
    %19 = math.rsqrt %18 : vector<16x1xf32>
    %20 = vector.broadcast %19 : vector<16x1xf32> to vector<16x32xf32>
    %21 = arith.mulf %16, %20 : vector<16x32xf32>
    %c0_9 = arith.constant 0 : index
    %c0_10 = arith.constant 0 : index
    %22 = vector.load %arg7[%c0_9, %c0_10] : memref<1x32xf32, #tpu.memory_space<vmem>>, vector<1x32xf32>
    %23 = vector.broadcast %22 : vector<1x32xf32> to vector<16x32xf32>
    %24 = arith.mulf %21, %23 : vector<16x32xf32>
    %c0_11 = arith.constant 0 : index
    %c0_12 = arith.constant 0 : index
    %25 = vector.load %arg8[%c0_11, %c0_12] : memref<1x32xf32, #tpu.memory_space<vmem>>, vector<1x32xf32>
    %26 = vector.broadcast %25 : vector<1x32xf32> to vector<16x32xf32>
    %27 = arith.addf %24, %26 : vector<16x32xf32>
    %c0_13 = arith.constant 0 : index
    %c0_14 = arith.constant 0 : index
    %28 = vector.load %arg3[%c0_13, %c0_14] : memref<32x256xf32, #tpu.memory_space<vmem>>, vector<32x256xf32>
    %cst_15 = arith.constant dense<0.000000e+00> : vector<16x256xf32>
    %29 = tpu.matmul %27, %28, %cst_15 {dimension_numbers = #tpu.dot_dimension_numbers<[1], [0], [0], [1], [0, 0, 1, 1], [], []>} : vector<16x32xf32>, vector<32x256xf32>, vector<16x256xf32> -> vector<16x256xf32>
    %c0_16 = arith.constant 0 : index
    %c0_17 = arith.constant 0 : index
    %30 = vector.load %arg4[%c0_16, %c0_17] : memref<32x256xf32, #tpu.memory_space<vmem>>, vector<32x256xf32>
    %cst_18 = arith.constant dense<0.000000e+00> : vector<16x256xf32>
    %31 = tpu.matmul %3, %30, %cst_18 {dimension_numbers = #tpu.dot_dimension_numbers<[1], [0], [0], [1], [0, 0, 1, 1], [], []>} : vector<16x32xf32>, vector<32x256xf32>, vector<16x256xf32> -> vector<16x256xf32>
    %c0_19 = arith.constant 0 : index
    %c0_20 = arith.constant 0 : index
    %32 = vector.load %arg5[%c0_19, %c0_20] : memref<32x256xf32, #tpu.memory_space<vmem>>, vector<32x256xf32>
    %cst_21 = arith.constant dense<0.000000e+00> : vector<16x256xf32>
    %33 = tpu.matmul %3, %32, %cst_21 {dimension_numbers = #tpu.dot_dimension_numbers<[1], [0], [0], [1], [0, 0, 1, 1], [], []>} : vector<16x32xf32>, vector<32x256xf32>, vector<16x256xf32> -> vector<16x256xf32>
    %34 = vector.extract_strided_slice %29 {offsets = [0, 0], sizes = [8, 256], strides = [1, 1]} : vector<16x256xf32> to vector<8x256xf32>
    %35 = vector.extract_strided_slice %31 {offsets = [0, 0], sizes = [8, 256], strides = [1, 1]} : vector<16x256xf32> to vector<8x256xf32>
    %36 = vector.extract_strided_slice %33 {offsets = [0, 0], sizes = [8, 256], strides = [1, 1]} : vector<16x256xf32> to vector<8x256xf32>
    %37 = vector.extract_strided_slice %34 {offsets = [0, 0], sizes = [8, 32], strides = [1, 1]} : vector<8x256xf32> to vector<8x32xf32>
    %38 = vector.extract_strided_slice %35 {offsets = [0, 0], sizes = [8, 32], strides = [1, 1]} : vector<8x256xf32> to vector<8x32xf32>
    %39 = vector.extract_strided_slice %36 {offsets = [0, 0], sizes = [8, 32], strides = [1, 1]} : vector<8x256xf32> to vector<8x32xf32>
    %cst_22 = arith.constant dense<0.000000e+00> : vector<8x8xf32>
    %40 = tpu.matmul %37, %38, %cst_22 {dimension_numbers = #tpu.dot_dimension_numbers<[1], [1], [0], [0], [0, 0, 1, 0], [], []>} : vector<8x32xf32>, vector<8x32xf32>, vector<8x8xf32> -> vector<8x8xf32>
    %cst_23 = arith.constant dense<0xFF800000> : vector<8xf32>
    %41 = vector.multi_reduction <maximumf>, %40, %cst_23 [1] : vector<8x8xf32> to vector<8xf32>
    %42 = vector.shape_cast %41 : vector<8xf32> to vector<8x1xf32>
    %43 = vector.broadcast %42 : vector<8x1xf32> to vector<8x8xf32>
    %44 = arith.subf %40, %43 : vector<8x8xf32>
    %45 = math.exp %44 : vector<8x8xf32>
    %cst_24 = arith.constant dense<0.000000e+00> : vector<8xf32>
    %46 = vector.multi_reduction <add>, %45, %cst_24 [1] : vector<8x8xf32> to vector<8xf32>
    %47 = vector.shape_cast %46 : vector<8xf32> to vector<8x1xf32>
    %48 = tpu.reciprocal %47 {approx = true} : vector<8x1xf32> -> vector<8x1xf32>
    %49 = vector.broadcast %48 : vector<8x1xf32> to vector<8x8xf32>
    %50 = arith.mulf %45, %49 : vector<8x8xf32>
    %cst_25 = arith.constant dense<0.000000e+00> : vector<8x32xf32>
    %51 = tpu.matmul %50, %39, %cst_25 {dimension_numbers = #tpu.dot_dimension_numbers<[1], [0], [0], [1], [0, 0, 1, 1], [], []>} : vector<8x8xf32>, vector<8x32xf32>, vector<8x32xf32> -> vector<8x32xf32>
    %52 = vector.extract_strided_slice %34 {offsets = [0, 32], sizes = [8, 32], strides = [1, 1]} : vector<8x256xf32> to vector<8x32xf32>
    %53 = vector.extract_strided_slice %35 {offsets = [0, 32], sizes = [8, 32], strides = [1, 1]} : vector<8x256xf32> to vector<8x32xf32>
    %54 = vector.extract_strided_slice %36 {offsets = [0, 32], sizes = [8, 32], strides = [1, 1]} : vector<8x256xf32> to vector<8x32xf32>
    %cst_26 = arith.constant dense<0.000000e+00> : vector<8x8xf32>
    %55 = tpu.matmul %52, %53, %cst_26 {dimension_numbers = #tpu.dot_dimension_numbers<[1], [1], [0], [0], [0, 0, 1, 0], [], []>} : vector<8x32xf32>, vector<8x32xf32>, vector<8x8xf32> -> vector<8x8xf32>
    %cst_27 = arith.constant dense<0xFF800000> : vector<8xf32>
    %56 = vector.multi_reduction <maximumf>, %55, %cst_27 [1] : vector<8x8xf32> to vector<8xf32>
    %57 = vector.shape_cast %56 : vector<8xf32> to vector<8x1xf32>
    %58 = vector.broadcast %57 : vector<8x1xf32> to vector<8x8xf32>
    %59 = arith.subf %55, %58 : vector<8x8xf32>
    %60 = math.exp %59 : vector<8x8xf32>
    %cst_28 = arith.constant dense<0.000000e+00> : vector<8xf32>
    %61 = vector.multi_reduction <add>, %60, %cst_28 [1] : vector<8x8xf32> to vector<8xf32>
    %62 = vector.shape_cast %61 : vector<8xf32> to vector<8x1xf32>
    %63 = tpu.reciprocal %62 {approx = true} : vector<8x1xf32> -> vector<8x1xf32>
    %64 = vector.broadcast %63 : vector<8x1xf32> to vector<8x8xf32>
    %65 = arith.mulf %60, %64 : vector<8x8xf32>
    %cst_29 = arith.constant dense<0.000000e+00> : vector<8x32xf32>
    %66 = tpu.matmul %65, %54, %cst_29 {dimension_numbers = #tpu.dot_dimension_numbers<[1], [0], [0], [1], [0, 0, 1, 1], [], []>} : vector<8x8xf32>, vector<8x32xf32>, vector<8x32xf32> -> vector<8x32xf32>
    %67 = vector.extract_strided_slice %34 {offsets = [0, 64], sizes = [8, 32], strides = [1, 1]} : vector<8x256xf32> to vector<8x32xf32>
    %68 = vector.extract_strided_slice %35 {offsets = [0, 64], sizes = [8, 32], strides = [1, 1]} : vector<8x256xf32> to vector<8x32xf32>
    %69 = vector.extract_strided_slice %36 {offsets = [0, 64], sizes = [8, 32], strides = [1, 1]} : vector<8x256xf32> to vector<8x32xf32>
    %cst_30 = arith.constant dense<0.000000e+00> : vector<8x8xf32>
    %70 = tpu.matmul %67, %68, %cst_30 {dimension_numbers = #tpu.dot_dimension_numbers<[1], [1], [0], [0], [0, 0, 1, 0], [], []>} : vector<8x32xf32>, vector<8x32xf32>, vector<8x8xf32> -> vector<8x8xf32>
    %cst_31 = arith.constant dense<0xFF800000> : vector<8xf32>
    %71 = vector.multi_reduction <maximumf>, %70, %cst_31 [1] : vector<8x8xf32> to vector<8xf32>
    %72 = vector.shape_cast %71 : vector<8xf32> to vector<8x1xf32>
    %73 = vector.broadcast %72 : vector<8x1xf32> to vector<8x8xf32>
    %74 = arith.subf %70, %73 : vector<8x8xf32>
    %75 = math.exp %74 : vector<8x8xf32>
    %cst_32 = arith.constant dense<0.000000e+00> : vector<8xf32>
    %76 = vector.multi_reduction <add>, %75, %cst_32 [1] : vector<8x8xf32> to vector<8xf32>
    %77 = vector.shape_cast %76 : vector<8xf32> to vector<8x1xf32>
    %78 = tpu.reciprocal %77 {approx = true} : vector<8x1xf32> -> vector<8x1xf32>
    %79 = vector.broadcast %78 : vector<8x1xf32> to vector<8x8xf32>
    %80 = arith.mulf %75, %79 : vector<8x8xf32>
    %cst_33 = arith.constant dense<0.000000e+00> : vector<8x32xf32>
    %81 = tpu.matmul %80, %69, %cst_33 {dimension_numbers = #tpu.dot_dimension_numbers<[1], [0], [0], [1], [0, 0, 1, 1], [], []>} : vector<8x8xf32>, vector<8x32xf32>, vector<8x32xf32> -> vector<8x32xf32>
    %82 = vector.extract_strided_slice %34 {offsets = [0, 96], sizes = [8, 32], strides = [1, 1]} : vector<8x256xf32> to vector<8x32xf32>
    %83 = vector.extract_strided_slice %35 {offsets = [0, 96], sizes = [8, 32], strides = [1, 1]} : vector<8x256xf32> to vector<8x32xf32>
    %84 = vector.extract_strided_slice %36 {offsets = [0, 96], sizes = [8, 32], strides = [1, 1]} : vector<8x256xf32> to vector<8x32xf32>
    %cst_34 = arith.constant dense<0.000000e+00> : vector<8x8xf32>
    %85 = tpu.matmul %82, %83, %cst_34 {dimension_numbers = #tpu.dot_dimension_numbers<[1], [1], [0], [0], [0, 0, 1, 0], [], []>} : vector<8x32xf32>, vector<8x32xf32>, vector<8x8xf32> -> vector<8x8xf32>
    %cst_35 = arith.constant dense<0xFF800000> : vector<8xf32>
    %86 = vector.multi_reduction <maximumf>, %85, %cst_35 [1] : vector<8x8xf32> to vector<8xf32>
    %87 = vector.shape_cast %86 : vector<8xf32> to vector<8x1xf32>
    %88 = vector.broadcast %87 : vector<8x1xf32> to vector<8x8xf32>
    %89 = arith.subf %85, %88 : vector<8x8xf32>
    %90 = math.exp %89 : vector<8x8xf32>
    %cst_36 = arith.constant dense<0.000000e+00> : vector<8xf32>
    %91 = vector.multi_reduction <add>, %90, %cst_36 [1] : vector<8x8xf32> to vector<8xf32>
    %92 = vector.shape_cast %91 : vector<8xf32> to vector<8x1xf32>
    %93 = tpu.reciprocal %92 {approx = true} : vector<8x1xf32> -> vector<8x1xf32>
    %94 = vector.broadcast %93 : vector<8x1xf32> to vector<8x8xf32>
    %95 = arith.mulf %90, %94 : vector<8x8xf32>
    %cst_37 = arith.constant dense<0.000000e+00> : vector<8x32xf32>
    %96 = tpu.matmul %95, %84, %cst_37 {dimension_numbers = #tpu.dot_dimension_numbers<[1], [0], [0], [1], [0, 0, 1, 1], [], []>} : vector<8x8xf32>, vector<8x32xf32>, vector<8x32xf32> -> vector<8x32xf32>
    %97 = vector.extract_strided_slice %34 {offsets = [0, 128], sizes = [8, 32], strides = [1, 1]} : vector<8x256xf32> to vector<8x32xf32>
    %98 = vector.extract_strided_slice %35 {offsets = [0, 128], sizes = [8, 32], strides = [1, 1]} : vector<8x256xf32> to vector<8x32xf32>
    %99 = vector.extract_strided_slice %36 {offsets = [0, 128], sizes = [8, 32], strides = [1, 1]} : vector<8x256xf32> to vector<8x32xf32>
    %cst_38 = arith.constant dense<0.000000e+00> : vector<8x8xf32>
    %100 = tpu.matmul %97, %98, %cst_38 {dimension_numbers = #tpu.dot_dimension_numbers<[1], [1], [0], [0], [0, 0, 1, 0], [], []>} : vector<8x32xf32>, vector<8x32xf32>, vector<8x8xf32> -> vector<8x8xf32>
    %cst_39 = arith.constant dense<0xFF800000> : vector<8xf32>
    %101 = vector.multi_reduction <maximumf>, %100, %cst_39 [1] : vector<8x8xf32> to vector<8xf32>
    %102 = vector.shape_cast %101 : vector<8xf32> to vector<8x1xf32>
    %103 = vector.broadcast %102 : vector<8x1xf32> to vector<8x8xf32>
    %104 = arith.subf %100, %103 : vector<8x8xf32>
    %105 = math.exp %104 : vector<8x8xf32>
    %cst_40 = arith.constant dense<0.000000e+00> : vector<8xf32>
    %106 = vector.multi_reduction <add>, %105, %cst_40 [1] : vector<8x8xf32> to vector<8xf32>
    %107 = vector.shape_cast %106 : vector<8xf32> to vector<8x1xf32>
    %108 = tpu.reciprocal %107 {approx = true} : vector<8x1xf32> -> vector<8x1xf32>
    %109 = vector.broadcast %108 : vector<8x1xf32> to vector<8x8xf32>
    %110 = arith.mulf %105, %109 : vector<8x8xf32>
    %cst_41 = arith.constant dense<0.000000e+00> : vector<8x32xf32>
    %111 = tpu.matmul %110, %99, %cst_41 {dimension_numbers = #tpu.dot_dimension_numbers<[1], [0], [0], [1], [0, 0, 1, 1], [], []>} : vector<8x8xf32>, vector<8x32xf32>, vector<8x32xf32> -> vector<8x32xf32>
    %112 = vector.extract_strided_slice %34 {offsets = [0, 160], sizes = [8, 32], strides = [1, 1]} : vector<8x256xf32> to vector<8x32xf32>
    %113 = vector.extract_strided_slice %35 {offsets = [0, 160], sizes = [8, 32], strides = [1, 1]} : vector<8x256xf32> to vector<8x32xf32>
    %114 = vector.extract_strided_slice %36 {offsets = [0, 160], sizes = [8, 32], strides = [1, 1]} : vector<8x256xf32> to vector<8x32xf32>
    %cst_42 = arith.constant dense<0.000000e+00> : vector<8x8xf32>
    %115 = tpu.matmul %112, %113, %cst_42 {dimension_numbers = #tpu.dot_dimension_numbers<[1], [1], [0], [0], [0, 0, 1, 0], [], []>} : vector<8x32xf32>, vector<8x32xf32>, vector<8x8xf32> -> vector<8x8xf32>
    %cst_43 = arith.constant dense<0xFF800000> : vector<8xf32>
    %116 = vector.multi_reduction <maximumf>, %115, %cst_43 [1] : vector<8x8xf32> to vector<8xf32>
    %117 = vector.shape_cast %116 : vector<8xf32> to vector<8x1xf32>
    %118 = vector.broadcast %117 : vector<8x1xf32> to vector<8x8xf32>
    %119 = arith.subf %115, %118 : vector<8x8xf32>
    %120 = math.exp %119 : vector<8x8xf32>
    %cst_44 = arith.constant dense<0.000000e+00> : vector<8xf32>
    %121 = vector.multi_reduction <add>, %120, %cst_44 [1] : vector<8x8xf32> to vector<8xf32>
    %122 = vector.shape_cast %121 : vector<8xf32> to vector<8x1xf32>
    %123 = tpu.reciprocal %122 {approx = true} : vector<8x1xf32> -> vector<8x1xf32>
    %124 = vector.broadcast %123 : vector<8x1xf32> to vector<8x8xf32>
    %125 = arith.mulf %120, %124 : vector<8x8xf32>
    %cst_45 = arith.constant dense<0.000000e+00> : vector<8x32xf32>
    %126 = tpu.matmul %125, %114, %cst_45 {dimension_numbers = #tpu.dot_dimension_numbers<[1], [0], [0], [1], [0, 0, 1, 1], [], []>} : vector<8x8xf32>, vector<8x32xf32>, vector<8x32xf32> -> vector<8x32xf32>
    %127 = vector.extract_strided_slice %34 {offsets = [0, 192], sizes = [8, 32], strides = [1, 1]} : vector<8x256xf32> to vector<8x32xf32>
    %128 = vector.extract_strided_slice %35 {offsets = [0, 192], sizes = [8, 32], strides = [1, 1]} : vector<8x256xf32> to vector<8x32xf32>
    %129 = vector.extract_strided_slice %36 {offsets = [0, 192], sizes = [8, 32], strides = [1, 1]} : vector<8x256xf32> to vector<8x32xf32>
    %cst_46 = arith.constant dense<0.000000e+00> : vector<8x8xf32>
    %130 = tpu.matmul %127, %128, %cst_46 {dimension_numbers = #tpu.dot_dimension_numbers<[1], [1], [0], [0], [0, 0, 1, 0], [], []>} : vector<8x32xf32>, vector<8x32xf32>, vector<8x8xf32> -> vector<8x8xf32>
    %cst_47 = arith.constant dense<0xFF800000> : vector<8xf32>
    %131 = vector.multi_reduction <maximumf>, %130, %cst_47 [1] : vector<8x8xf32> to vector<8xf32>
    %132 = vector.shape_cast %131 : vector<8xf32> to vector<8x1xf32>
    %133 = vector.broadcast %132 : vector<8x1xf32> to vector<8x8xf32>
    %134 = arith.subf %130, %133 : vector<8x8xf32>
    %135 = math.exp %134 : vector<8x8xf32>
    %cst_48 = arith.constant dense<0.000000e+00> : vector<8xf32>
    %136 = vector.multi_reduction <add>, %135, %cst_48 [1] : vector<8x8xf32> to vector<8xf32>
    %137 = vector.shape_cast %136 : vector<8xf32> to vector<8x1xf32>
    %138 = tpu.reciprocal %137 {approx = true} : vector<8x1xf32> -> vector<8x1xf32>
    %139 = vector.broadcast %138 : vector<8x1xf32> to vector<8x8xf32>
    %140 = arith.mulf %135, %139 : vector<8x8xf32>
    %cst_49 = arith.constant dense<0.000000e+00> : vector<8x32xf32>
    %141 = tpu.matmul %140, %129, %cst_49 {dimension_numbers = #tpu.dot_dimension_numbers<[1], [0], [0], [1], [0, 0, 1, 1], [], []>} : vector<8x8xf32>, vector<8x32xf32>, vector<8x32xf32> -> vector<8x32xf32>
    %142 = vector.extract_strided_slice %34 {offsets = [0, 224], sizes = [8, 32], strides = [1, 1]} : vector<8x256xf32> to vector<8x32xf32>
    %143 = vector.extract_strided_slice %35 {offsets = [0, 224], sizes = [8, 32], strides = [1, 1]} : vector<8x256xf32> to vector<8x32xf32>
    %144 = vector.extract_strided_slice %36 {offsets = [0, 224], sizes = [8, 32], strides = [1, 1]} : vector<8x256xf32> to vector<8x32xf32>
    %cst_50 = arith.constant dense<0.000000e+00> : vector<8x8xf32>
    %145 = tpu.matmul %142, %143, %cst_50 {dimension_numbers = #tpu.dot_dimension_numbers<[1], [1], [0], [0], [0, 0, 1, 0], [], []>} : vector<8x32xf32>, vector<8x32xf32>, vector<8x8xf32> -> vector<8x8xf32>
    %cst_51 = arith.constant dense<0xFF800000> : vector<8xf32>
    %146 = vector.multi_reduction <maximumf>, %145, %cst_51 [1] : vector<8x8xf32> to vector<8xf32>
    %147 = vector.shape_cast %146 : vector<8xf32> to vector<8x1xf32>
    %148 = vector.broadcast %147 : vector<8x1xf32> to vector<8x8xf32>
    %149 = arith.subf %145, %148 : vector<8x8xf32>
    %150 = math.exp %149 : vector<8x8xf32>
    %cst_52 = arith.constant dense<0.000000e+00> : vector<8xf32>
    %151 = vector.multi_reduction <add>, %150, %cst_52 [1] : vector<8x8xf32> to vector<8xf32>
    %152 = vector.shape_cast %151 : vector<8xf32> to vector<8x1xf32>
    %153 = tpu.reciprocal %152 {approx = true} : vector<8x1xf32> -> vector<8x1xf32>
    %154 = vector.broadcast %153 : vector<8x1xf32> to vector<8x8xf32>
    %155 = arith.mulf %150, %154 : vector<8x8xf32>
    %cst_53 = arith.constant dense<0.000000e+00> : vector<8x32xf32>
    %156 = tpu.matmul %155, %144, %cst_53 {dimension_numbers = #tpu.dot_dimension_numbers<[1], [0], [0], [1], [0, 0, 1, 1], [], []>} : vector<8x8xf32>, vector<8x32xf32>, vector<8x32xf32> -> vector<8x32xf32>
    %157 = tpu.concatenate %51, %66, %81, %96, %111, %126, %141, %156 in 1 : vector<8x32xf32>, vector<8x32xf32>, vector<8x32xf32>, vector<8x32xf32>, vector<8x32xf32>, vector<8x32xf32>, vector<8x32xf32>, vector<8x32xf32> -> vector<8x256xf32>
    %158 = vector.extract_strided_slice %29 {offsets = [8, 0], sizes = [8, 256], strides = [1, 1]} : vector<16x256xf32> to vector<8x256xf32>
    %159 = vector.extract_strided_slice %31 {offsets = [8, 0], sizes = [8, 256], strides = [1, 1]} : vector<16x256xf32> to vector<8x256xf32>
    %160 = vector.extract_strided_slice %33 {offsets = [8, 0], sizes = [8, 256], strides = [1, 1]} : vector<16x256xf32> to vector<8x256xf32>
    %161 = vector.extract_strided_slice %158 {offsets = [0, 0], sizes = [8, 32], strides = [1, 1]} : vector<8x256xf32> to vector<8x32xf32>
    %162 = vector.extract_strided_slice %159 {offsets = [0, 0], sizes = [8, 32], strides = [1, 1]} : vector<8x256xf32> to vector<8x32xf32>
    %163 = vector.extract_strided_slice %160 {offsets = [0, 0], sizes = [8, 32], strides = [1, 1]} : vector<8x256xf32> to vector<8x32xf32>
    %cst_54 = arith.constant dense<0.000000e+00> : vector<8x8xf32>
    %164 = tpu.matmul %161, %162, %cst_54 {dimension_numbers = #tpu.dot_dimension_numbers<[1], [1], [0], [0], [0, 0, 1, 0], [], []>} : vector<8x32xf32>, vector<8x32xf32>, vector<8x8xf32> -> vector<8x8xf32>
    %cst_55 = arith.constant dense<0xFF800000> : vector<8xf32>
    %165 = vector.multi_reduction <maximumf>, %164, %cst_55 [1] : vector<8x8xf32> to vector<8xf32>
    %166 = vector.shape_cast %165 : vector<8xf32> to vector<8x1xf32>
    %167 = vector.broadcast %166 : vector<8x1xf32> to vector<8x8xf32>
    %168 = arith.subf %164, %167 : vector<8x8xf32>
    %169 = math.exp %168 : vector<8x8xf32>
    %cst_56 = arith.constant dense<0.000000e+00> : vector<8xf32>
    %170 = vector.multi_reduction <add>, %169, %cst_56 [1] : vector<8x8xf32> to vector<8xf32>
    %171 = vector.shape_cast %170 : vector<8xf32> to vector<8x1xf32>
    %172 = tpu.reciprocal %171 {approx = true} : vector<8x1xf32> -> vector<8x1xf32>
    %173 = vector.broadcast %172 : vector<8x1xf32> to vector<8x8xf32>
    %174 = arith.mulf %169, %173 : vector<8x8xf32>
    %cst_57 = arith.constant dense<0.000000e+00> : vector<8x32xf32>
    %175 = tpu.matmul %174, %163, %cst_57 {dimension_numbers = #tpu.dot_dimension_numbers<[1], [0], [0], [1], [0, 0, 1, 1], [], []>} : vector<8x8xf32>, vector<8x32xf32>, vector<8x32xf32> -> vector<8x32xf32>
    %176 = vector.extract_strided_slice %158 {offsets = [0, 32], sizes = [8, 32], strides = [1, 1]} : vector<8x256xf32> to vector<8x32xf32>
    %177 = vector.extract_strided_slice %159 {offsets = [0, 32], sizes = [8, 32], strides = [1, 1]} : vector<8x256xf32> to vector<8x32xf32>
    %178 = vector.extract_strided_slice %160 {offsets = [0, 32], sizes = [8, 32], strides = [1, 1]} : vector<8x256xf32> to vector<8x32xf32>
    %cst_58 = arith.constant dense<0.000000e+00> : vector<8x8xf32>
    %179 = tpu.matmul %176, %177, %cst_58 {dimension_numbers = #tpu.dot_dimension_numbers<[1], [1], [0], [0], [0, 0, 1, 0], [], []>} : vector<8x32xf32>, vector<8x32xf32>, vector<8x8xf32> -> vector<8x8xf32>
    %cst_59 = arith.constant dense<0xFF800000> : vector<8xf32>
    %180 = vector.multi_reduction <maximumf>, %179, %cst_59 [1] : vector<8x8xf32> to vector<8xf32>
    %181 = vector.shape_cast %180 : vector<8xf32> to vector<8x1xf32>
    %182 = vector.broadcast %181 : vector<8x1xf32> to vector<8x8xf32>
    %183 = arith.subf %179, %182 : vector<8x8xf32>
    %184 = math.exp %183 : vector<8x8xf32>
    %cst_60 = arith.constant dense<0.000000e+00> : vector<8xf32>
    %185 = vector.multi_reduction <add>, %184, %cst_60 [1] : vector<8x8xf32> to vector<8xf32>
    %186 = vector.shape_cast %185 : vector<8xf32> to vector<8x1xf32>
    %187 = tpu.reciprocal %186 {approx = true} : vector<8x1xf32> -> vector<8x1xf32>
    %188 = vector.broadcast %187 : vector<8x1xf32> to vector<8x8xf32>
    %189 = arith.mulf %184, %188 : vector<8x8xf32>
    %cst_61 = arith.constant dense<0.000000e+00> : vector<8x32xf32>
    %190 = tpu.matmul %189, %178, %cst_61 {dimension_numbers = #tpu.dot_dimension_numbers<[1], [0], [0], [1], [0, 0, 1, 1], [], []>} : vector<8x8xf32>, vector<8x32xf32>, vector<8x32xf32> -> vector<8x32xf32>
    %191 = vector.extract_strided_slice %158 {offsets = [0, 64], sizes = [8, 32], strides = [1, 1]} : vector<8x256xf32> to vector<8x32xf32>
    %192 = vector.extract_strided_slice %159 {offsets = [0, 64], sizes = [8, 32], strides = [1, 1]} : vector<8x256xf32> to vector<8x32xf32>
    %193 = vector.extract_strided_slice %160 {offsets = [0, 64], sizes = [8, 32], strides = [1, 1]} : vector<8x256xf32> to vector<8x32xf32>
    %cst_62 = arith.constant dense<0.000000e+00> : vector<8x8xf32>
    %194 = tpu.matmul %191, %192, %cst_62 {dimension_numbers = #tpu.dot_dimension_numbers<[1], [1], [0], [0], [0, 0, 1, 0], [], []>} : vector<8x32xf32>, vector<8x32xf32>, vector<8x8xf32> -> vector<8x8xf32>
    %cst_63 = arith.constant dense<0xFF800000> : vector<8xf32>
    %195 = vector.multi_reduction <maximumf>, %194, %cst_63 [1] : vector<8x8xf32> to vector<8xf32>
    %196 = vector.shape_cast %195 : vector<8xf32> to vector<8x1xf32>
    %197 = vector.broadcast %196 : vector<8x1xf32> to vector<8x8xf32>
    %198 = arith.subf %194, %197 : vector<8x8xf32>
    %199 = math.exp %198 : vector<8x8xf32>
    %cst_64 = arith.constant dense<0.000000e+00> : vector<8xf32>
    %200 = vector.multi_reduction <add>, %199, %cst_64 [1] : vector<8x8xf32> to vector<8xf32>
    %201 = vector.shape_cast %200 : vector<8xf32> to vector<8x1xf32>
    %202 = tpu.reciprocal %201 {approx = true} : vector<8x1xf32> -> vector<8x1xf32>
    %203 = vector.broadcast %202 : vector<8x1xf32> to vector<8x8xf32>
    %204 = arith.mulf %199, %203 : vector<8x8xf32>
    %cst_65 = arith.constant dense<0.000000e+00> : vector<8x32xf32>
    %205 = tpu.matmul %204, %193, %cst_65 {dimension_numbers = #tpu.dot_dimension_numbers<[1], [0], [0], [1], [0, 0, 1, 1], [], []>} : vector<8x8xf32>, vector<8x32xf32>, vector<8x32xf32> -> vector<8x32xf32>
    %206 = vector.extract_strided_slice %158 {offsets = [0, 96], sizes = [8, 32], strides = [1, 1]} : vector<8x256xf32> to vector<8x32xf32>
    %207 = vector.extract_strided_slice %159 {offsets = [0, 96], sizes = [8, 32], strides = [1, 1]} : vector<8x256xf32> to vector<8x32xf32>
    %208 = vector.extract_strided_slice %160 {offsets = [0, 96], sizes = [8, 32], strides = [1, 1]} : vector<8x256xf32> to vector<8x32xf32>
    %cst_66 = arith.constant dense<0.000000e+00> : vector<8x8xf32>
    %209 = tpu.matmul %206, %207, %cst_66 {dimension_numbers = #tpu.dot_dimension_numbers<[1], [1], [0], [0], [0, 0, 1, 0], [], []>} : vector<8x32xf32>, vector<8x32xf32>, vector<8x8xf32> -> vector<8x8xf32>
    %cst_67 = arith.constant dense<0xFF800000> : vector<8xf32>
    %210 = vector.multi_reduction <maximumf>, %209, %cst_67 [1] : vector<8x8xf32> to vector<8xf32>
    %211 = vector.shape_cast %210 : vector<8xf32> to vector<8x1xf32>
    %212 = vector.broadcast %211 : vector<8x1xf32> to vector<8x8xf32>
    %213 = arith.subf %209, %212 : vector<8x8xf32>
    %214 = math.exp %213 : vector<8x8xf32>
    %cst_68 = arith.constant dense<0.000000e+00> : vector<8xf32>
    %215 = vector.multi_reduction <add>, %214, %cst_68 [1] : vector<8x8xf32> to vector<8xf32>
    %216 = vector.shape_cast %215 : vector<8xf32> to vector<8x1xf32>
    %217 = tpu.reciprocal %216 {approx = true} : vector<8x1xf32> -> vector<8x1xf32>
    %218 = vector.broadcast %217 : vector<8x1xf32> to vector<8x8xf32>
    %219 = arith.mulf %214, %218 : vector<8x8xf32>
    %cst_69 = arith.constant dense<0.000000e+00> : vector<8x32xf32>
    %220 = tpu.matmul %219, %208, %cst_69 {dimension_numbers = #tpu.dot_dimension_numbers<[1], [0], [0], [1], [0, 0, 1, 1], [], []>} : vector<8x8xf32>, vector<8x32xf32>, vector<8x32xf32> -> vector<8x32xf32>
    %221 = vector.extract_strided_slice %158 {offsets = [0, 128], sizes = [8, 32], strides = [1, 1]} : vector<8x256xf32> to vector<8x32xf32>
    %222 = vector.extract_strided_slice %159 {offsets = [0, 128], sizes = [8, 32], strides = [1, 1]} : vector<8x256xf32> to vector<8x32xf32>
    %223 = vector.extract_strided_slice %160 {offsets = [0, 128], sizes = [8, 32], strides = [1, 1]} : vector<8x256xf32> to vector<8x32xf32>
    %cst_70 = arith.constant dense<0.000000e+00> : vector<8x8xf32>
    %224 = tpu.matmul %221, %222, %cst_70 {dimension_numbers = #tpu.dot_dimension_numbers<[1], [1], [0], [0], [0, 0, 1, 0], [], []>} : vector<8x32xf32>, vector<8x32xf32>, vector<8x8xf32> -> vector<8x8xf32>
    %cst_71 = arith.constant dense<0xFF800000> : vector<8xf32>
    %225 = vector.multi_reduction <maximumf>, %224, %cst_71 [1] : vector<8x8xf32> to vector<8xf32>
    %226 = vector.shape_cast %225 : vector<8xf32> to vector<8x1xf32>
    %227 = vector.broadcast %226 : vector<8x1xf32> to vector<8x8xf32>
    %228 = arith.subf %224, %227 : vector<8x8xf32>
    %229 = math.exp %228 : vector<8x8xf32>
    %cst_72 = arith.constant dense<0.000000e+00> : vector<8xf32>
    %230 = vector.multi_reduction <add>, %229, %cst_72 [1] : vector<8x8xf32> to vector<8xf32>
    %231 = vector.shape_cast %230 : vector<8xf32> to vector<8x1xf32>
    %232 = tpu.reciprocal %231 {approx = true} : vector<8x1xf32> -> vector<8x1xf32>
    %233 = vector.broadcast %232 : vector<8x1xf32> to vector<8x8xf32>
    %234 = arith.mulf %229, %233 : vector<8x8xf32>
    %cst_73 = arith.constant dense<0.000000e+00> : vector<8x32xf32>
    %235 = tpu.matmul %234, %223, %cst_73 {dimension_numbers = #tpu.dot_dimension_numbers<[1], [0], [0], [1], [0, 0, 1, 1], [], []>} : vector<8x8xf32>, vector<8x32xf32>, vector<8x32xf32> -> vector<8x32xf32>
    %236 = vector.extract_strided_slice %158 {offsets = [0, 160], sizes = [8, 32], strides = [1, 1]} : vector<8x256xf32> to vector<8x32xf32>
    %237 = vector.extract_strided_slice %159 {offsets = [0, 160], sizes = [8, 32], strides = [1, 1]} : vector<8x256xf32> to vector<8x32xf32>
    %238 = vector.extract_strided_slice %160 {offsets = [0, 160], sizes = [8, 32], strides = [1, 1]} : vector<8x256xf32> to vector<8x32xf32>
    %cst_74 = arith.constant dense<0.000000e+00> : vector<8x8xf32>
    %239 = tpu.matmul %236, %237, %cst_74 {dimension_numbers = #tpu.dot_dimension_numbers<[1], [1], [0], [0], [0, 0, 1, 0], [], []>} : vector<8x32xf32>, vector<8x32xf32>, vector<8x8xf32> -> vector<8x8xf32>
    %cst_75 = arith.constant dense<0xFF800000> : vector<8xf32>
    %240 = vector.multi_reduction <maximumf>, %239, %cst_75 [1] : vector<8x8xf32> to vector<8xf32>
    %241 = vector.shape_cast %240 : vector<8xf32> to vector<8x1xf32>
    %242 = vector.broadcast %241 : vector<8x1xf32> to vector<8x8xf32>
    %243 = arith.subf %239, %242 : vector<8x8xf32>
    %244 = math.exp %243 : vector<8x8xf32>
    %cst_76 = arith.constant dense<0.000000e+00> : vector<8xf32>
    %245 = vector.multi_reduction <add>, %244, %cst_76 [1] : vector<8x8xf32> to vector<8xf32>
    %246 = vector.shape_cast %245 : vector<8xf32> to vector<8x1xf32>
    %247 = tpu.reciprocal %246 {approx = true} : vector<8x1xf32> -> vector<8x1xf32>
    %248 = vector.broadcast %247 : vector<8x1xf32> to vector<8x8xf32>
    %249 = arith.mulf %244, %248 : vector<8x8xf32>
    %cst_77 = arith.constant dense<0.000000e+00> : vector<8x32xf32>
    %250 = tpu.matmul %249, %238, %cst_77 {dimension_numbers = #tpu.dot_dimension_numbers<[1], [0], [0], [1], [0, 0, 1, 1], [], []>} : vector<8x8xf32>, vector<8x32xf32>, vector<8x32xf32> -> vector<8x32xf32>
    %251 = vector.extract_strided_slice %158 {offsets = [0, 192], sizes = [8, 32], strides = [1, 1]} : vector<8x256xf32> to vector<8x32xf32>
    %252 = vector.extract_strided_slice %159 {offsets = [0, 192], sizes = [8, 32], strides = [1, 1]} : vector<8x256xf32> to vector<8x32xf32>
    %253 = vector.extract_strided_slice %160 {offsets = [0, 192], sizes = [8, 32], strides = [1, 1]} : vector<8x256xf32> to vector<8x32xf32>
    %cst_78 = arith.constant dense<0.000000e+00> : vector<8x8xf32>
    %254 = tpu.matmul %251, %252, %cst_78 {dimension_numbers = #tpu.dot_dimension_numbers<[1], [1], [0], [0], [0, 0, 1, 0], [], []>} : vector<8x32xf32>, vector<8x32xf32>, vector<8x8xf32> -> vector<8x8xf32>
    %cst_79 = arith.constant dense<0xFF800000> : vector<8xf32>
    %255 = vector.multi_reduction <maximumf>, %254, %cst_79 [1] : vector<8x8xf32> to vector<8xf32>
    %256 = vector.shape_cast %255 : vector<8xf32> to vector<8x1xf32>
    %257 = vector.broadcast %256 : vector<8x1xf32> to vector<8x8xf32>
    %258 = arith.subf %254, %257 : vector<8x8xf32>
    %259 = math.exp %258 : vector<8x8xf32>
    %cst_80 = arith.constant dense<0.000000e+00> : vector<8xf32>
    %260 = vector.multi_reduction <add>, %259, %cst_80 [1] : vector<8x8xf32> to vector<8xf32>
    %261 = vector.shape_cast %260 : vector<8xf32> to vector<8x1xf32>
    %262 = tpu.reciprocal %261 {approx = true} : vector<8x1xf32> -> vector<8x1xf32>
    %263 = vector.broadcast %262 : vector<8x1xf32> to vector<8x8xf32>
    %264 = arith.mulf %259, %263 : vector<8x8xf32>
    %cst_81 = arith.constant dense<0.000000e+00> : vector<8x32xf32>
    %265 = tpu.matmul %264, %253, %cst_81 {dimension_numbers = #tpu.dot_dimension_numbers<[1], [0], [0], [1], [0, 0, 1, 1], [], []>} : vector<8x8xf32>, vector<8x32xf32>, vector<8x32xf32> -> vector<8x32xf32>
    %266 = vector.extract_strided_slice %158 {offsets = [0, 224], sizes = [8, 32], strides = [1, 1]} : vector<8x256xf32> to vector<8x32xf32>
    %267 = vector.extract_strided_slice %159 {offsets = [0, 224], sizes = [8, 32], strides = [1, 1]} : vector<8x256xf32> to vector<8x32xf32>
    %268 = vector.extract_strided_slice %160 {offsets = [0, 224], sizes = [8, 32], strides = [1, 1]} : vector<8x256xf32> to vector<8x32xf32>
    %cst_82 = arith.constant dense<0.000000e+00> : vector<8x8xf32>
    %269 = tpu.matmul %266, %267, %cst_82 {dimension_numbers = #tpu.dot_dimension_numbers<[1], [1], [0], [0], [0, 0, 1, 0], [], []>} : vector<8x32xf32>, vector<8x32xf32>, vector<8x8xf32> -> vector<8x8xf32>
    %cst_83 = arith.constant dense<0xFF800000> : vector<8xf32>
    %270 = vector.multi_reduction <maximumf>, %269, %cst_83 [1] : vector<8x8xf32> to vector<8xf32>
    %271 = vector.shape_cast %270 : vector<8xf32> to vector<8x1xf32>
    %272 = vector.broadcast %271 : vector<8x1xf32> to vector<8x8xf32>
    %273 = arith.subf %269, %272 : vector<8x8xf32>
    %274 = math.exp %273 : vector<8x8xf32>
    %cst_84 = arith.constant dense<0.000000e+00> : vector<8xf32>
    %275 = vector.multi_reduction <add>, %274, %cst_84 [1] : vector<8x8xf32> to vector<8xf32>
    %276 = vector.shape_cast %275 : vector<8xf32> to vector<8x1xf32>
    %277 = tpu.reciprocal %276 {approx = true} : vector<8x1xf32> -> vector<8x1xf32>
    %278 = vector.broadcast %277 : vector<8x1xf32> to vector<8x8xf32>
    %279 = arith.mulf %274, %278 : vector<8x8xf32>
    %cst_85 = arith.constant dense<0.000000e+00> : vector<8x32xf32>
    %280 = tpu.matmul %279, %268, %cst_85 {dimension_numbers = #tpu.dot_dimension_numbers<[1], [0], [0], [1], [0, 0, 1, 1], [], []>} : vector<8x8xf32>, vector<8x32xf32>, vector<8x32xf32> -> vector<8x32xf32>
    %281 = tpu.concatenate %175, %190, %205, %220, %235, %250, %265, %280 in 1 : vector<8x32xf32>, vector<8x32xf32>, vector<8x32xf32>, vector<8x32xf32>, vector<8x32xf32>, vector<8x32xf32>, vector<8x32xf32>, vector<8x32xf32> -> vector<8x256xf32>
    %282 = tpu.concatenate %157, %281 in 0 : vector<8x256xf32>, vector<8x256xf32> -> vector<16x256xf32>
    %cst_86 = arith.constant 0.000000e+00 : f32
    %283 = vector.broadcast %cst_86 : f32 to vector<16x256xf32>
    %284 = arith.cmpf ogt, %282, %283 : vector<16x256xf32>
    %cst_87 = arith.constant 0.000000e+00 : f32
    %285 = vector.broadcast %cst_87 : f32 to vector<16x256xf32>
    %286 = arith.minimumf %282, %285 : vector<16x256xf32>
    %287 = math.exp %286 : vector<16x256xf32>
    %cst_88 = arith.constant 1.000000e+00 : f32
    %288 = vector.broadcast %cst_88 : f32 to vector<16x256xf32>
    %289 = arith.subf %287, %288 : vector<16x256xf32>
    %290 = arith.select %284, %282, %289 : vector<16x256xi1>, vector<16x256xf32>
    %c0_89 = arith.constant 0 : index
    %c0_90 = arith.constant 0 : index
    %291 = vector.load %arg6[%c0_89, %c0_90] : memref<256x32xf32, #tpu.memory_space<vmem>>, vector<256x32xf32>
    %cst_91 = arith.constant dense<0.000000e+00> : vector<16x32xf32>
    %292 = tpu.matmul %290, %291, %cst_91 {dimension_numbers = #tpu.dot_dimension_numbers<[1], [0], [0], [1], [0, 0, 1, 1], [], []>} : vector<16x256xf32>, vector<256x32xf32>, vector<16x32xf32> -> vector<16x32xf32>
    %293 = arith.addf %1, %292 : vector<16x32xf32>
    %294 = vector.shape_cast %293 : vector<16x32xf32> to vector<2x8x32xf32>
    %c0_92 = arith.constant 0 : index
    %c0_93 = arith.constant 0 : index
    %c0_94 = arith.constant 0 : index
    %295 = vector.load %arg9[%c0_92, %c0_93, %c0_94] : memref<2x8x32xf32, #tpu.memory_space<vmem>>, vector<2x8x32xf32>
    tpu.vector_store %arg9[%c0_92, %c0_93, %c0_94], %294 {strides = array<i32>} : memref<2x8x32xf32, #tpu.memory_space<vmem>>, vector<2x8x32xf32>,
    return
  }
  func.func @transform_0(%arg0: i32) -> (i32, i32, i32) {
    %c0_i32 = arith.constant 0 : i32
    %c0_i32_0 = arith.constant 0 : i32
    %c0_i32_1 = arith.constant 0 : i32
    return %arg0, %c0_i32, %c0_i32_0 : i32, i32, i32
  }
  func.func @transform_1(%arg0: i32) -> (i32, i32, i32) {
    %c0_i32 = arith.constant 0 : i32
    %c0_i32_0 = arith.constant 0 : i32
    %c0_i32_1 = arith.constant 0 : i32
    return %arg0, %c0_i32, %c0_i32_0 : i32, i32, i32
  }
  func.func @transform_2(%arg0: i32) -> (i32, i32) {
    %c0_i32 = arith.constant 0 : i32
    %c0_i32_0 = arith.constant 0 : i32
    %c0_i32_1 = arith.constant 0 : i32
    return %c0_i32, %c0_i32_0 : i32, i32
  }
  func.func @transform_3(%arg0: i32) -> (i32, i32) {
    %c0_i32 = arith.constant 0 : i32
    %c0_i32_0 = arith.constant 0 : i32
    %c0_i32_1 = arith.constant 0 : i32
    return %c0_i32, %c0_i32_0 : i32, i32
  }
  func.func @transform_4(%arg0: i32) -> (i32, i32) {
    %c0_i32 = arith.constant 0 : i32
    %c0_i32_0 = arith.constant 0 : i32
    %c0_i32_1 = arith.constant 0 : i32
    return %c0_i32, %c0_i32_0 : i32, i32
  }
  func.func @transform_5(%arg0: i32) -> (i32, i32) {
    %c0_i32 = arith.constant 0 : i32
    %c0_i32_0 = arith.constant 0 : i32
    %c0_i32_1 = arith.constant 0 : i32
    return %c0_i32, %c0_i32_0 : i32, i32
  }
  func.func @transform_6(%arg0: i32) -> (i32, i32) {
    %c0_i32 = arith.constant 0 : i32
    %c0_i32_0 = arith.constant 0 : i32
    %c0_i32_1 = arith.constant 0 : i32
    return %c0_i32, %c0_i32_0 : i32, i32
  }
  func.func @transform_7(%arg0: i32) -> (i32, i32) {
    %c0_i32 = arith.constant 0 : i32
    %c0_i32_0 = arith.constant 0 : i32
    %c0_i32_1 = arith.constant 0 : i32
    return %c0_i32, %c0_i32_0 : i32, i32
  }
  func.func @transform_8(%arg0: i32) -> (i32, i32, i32) {
    %c0_i32 = arith.constant 0 : i32
    %c0_i32_0 = arith.constant 0 : i32
    %c0_i32_1 = arith.constant 0 : i32
    return %arg0, %c0_i32, %c0_i32_0 : i32, i32, i32
  }
}

</mosaic_0001>

<llo_original>
// kernel: tpu_custom_call.1
$region0: #{tpu_custom_call.1}
  #allocation0 [shape = 'u32[]', space=smem, size = 0x4, offset = 0x4, fixed_abs, tag = 'smem constant byte address 0x4 - core index']
  #allocation1 [shape = 'u32[144,128]{1,0:T(1,128)}', space=vmem, size = 0x12000, scoped, tag = 'internal scratch']
  %s0 = inlined_call_operand.vmem [shape: f32[4,8,32], index: 0, kind: input, shape index: {}]
  %s1 = inlined_call_operand.vmem [shape: f32[4,8,32], index: 1, kind: input, shape index: {}]
  %s2 = inlined_call_operand.vmem [shape: f32[32,256], index: 2, kind: input, shape index: {}]
  %s3 = inlined_call_operand.vmem [shape: f32[32,256], index: 3, kind: input, shape index: {}]
  %s4 = inlined_call_operand.vmem [shape: f32[32,256], index: 4, kind: input, shape index: {}]
  %s5 = inlined_call_operand.vmem [shape: f32[256,32], index: 5, kind: input, shape index: {}]
  %s6 = inlined_call_operand.vmem [shape: f32[1,32], index: 6, kind: input, shape index: {}]
  %s7 = inlined_call_operand.vmem [shape: f32[1,32], index: 7, kind: input, shape index: {}]
  %s8 = inlined_call_operand.hbm [shape: f32[4,8,32], index: 8, kind: output, shape index: {}]
  %s9 = sld [smem:[#allocation0]]
  $region65: #{tpu_custom_call.1} parent=0
    _
  %s11 = ssub.s32 1, %s9
  %s12 = scalar_select 0, %s11, %s9
  $region1: #{tpu_custom_call.1} parent=0
    #allocation2 [shape = 'u8[16384]{0}', space=vmem, size = 0x4000, scoped, tag = 'output window, operand 0']
    #allocation3 [shape = 's32[2]{0}', space=sflag, size = 0x8, scoped, tag = 'scoped memory for tpu_custom_call.1']
    %13 = vsyncpa [#allocation3], 0
    %s14 = scalar_lea.sflag [#allocation3], 1
    %15 = vsyncpa %s14, 0
    loop: start=0, step=1, limit=4
    $region2: #{tpu_custom_call.1} parent=1 // loop_pre_header
      _
    $region3: #{tpu_custom_call.1} parent=1 // loop_header
      %s17 = sphi 0, %s21
      %p18 = scmp.ge.s32.totalorder %s17, 4
      %s27 = sphi 0, %s29
      %s30 = sphi 0, %s27
      %s31 = sphi 0, %s30
      %s47 = sphi 0, %s31
      %s53 = sphi 0, %s55
      %s56 = sphi 0, %s53
      %s57 = sphi 0, %s56
      %s73 = sphi 0, %s57
      %s77 = sphi 0, %s77
      %s79 = sphi 0, %s77
      %s80 = sphi 0, %s79
      %s94 = sphi 0, %s80
      %s98 = sphi 0, %s98
      %s100 = sphi 0, %s98
      %s101 = sphi 0, %s100
      %s115 = sphi 0, %s101
      %s119 = sphi 0, %s119
      %s121 = sphi 0, %s119
      %s122 = sphi 0, %s121
      %s136 = sphi 0, %s122
      %s140 = sphi 0, %s140
      %s142 = sphi 0, %s140
      %s143 = sphi 0, %s142
      %s157 = sphi 0, %s143
      %s161 = sphi 0, %s161
      %s163 = sphi 0, %s161
      %s164 = sphi 0, %s163
      %s178 = sphi 0, %s164
      %s182 = sphi 0, %s182
      %s184 = sphi 0, %s182
      %s185 = sphi 0, %s184
      %s199 = sphi 0, %s185
      %s205 = sphi 0, %s207
      %s208 = sphi 0, %s205
      %s209 = sphi 0, %s208
      %s225 = sphi 0, %s209
    $region4: #{tpu_custom_call.1} parent=1 // loop_header_branch
      %20 = sbr.rel (%p18) target = $region8
    $region5: #{tpu_custom_call.1} parent=1 // loop_body
      %s22 = ssub.s32 %s17, 1
      %s23 = ssub.s32 %s17, 2
      %s24 = sadd.s32 %s17, 1
      %s25 = ssub.s32 %s17, %s24
      %p26 = scmp.eq.s32.totalorder %s25, 0
      %s28 = sadd.s32 %s27, 1
      %s29 = scalar_select %p26, %s27, %s28
      %p32 = pneg %p26
      %p33 = scmp.eq.s32.totalorder %s17, 1
      %p34 = por %p32, %p33
      %p35 = scmp.ne.s32.totalorder %s27, %s30
      %p36 = scmp.eq.s32.totalorder %s17, 0
      %p37 = por %p35, %p36
      %p38 = scmp.ne.s32.totalorder %s27, %s30
      %p39 = scmp.eq.s32.totalorder %s22, 1
      %p40 = por %p38, %p39
      %p41 = scmp.ne.s32.totalorder %s30, %s31
      %p42 = scmp.eq.s32.totalorder %s22, 0
      %p43 = por %p41, %p42
      %p44 = scmp.ne.s32.totalorder %s30, %s31
      %p45 = scmp.eq.s32.totalorder %s23, 1
      %p46 = por %p44, %p45
      %p48 = scmp.ne.s32.totalorder %s31, %s47
      %p49 = scmp.eq.s32.totalorder %s23, 0
      %p50 = por %p48, %p49
      %s51 = ssub.s32 %s17, %s24
      %p52 = scmp.eq.s32.totalorder %s51, 0
      %s54 = sadd.s32 %s53, 1
      %s55 = scalar_select %p52, %s53, %s54
      %p58 = pneg %p52
      %p59 = scmp.eq.s32.totalorder %s17, 1
      %p60 = por %p58, %p59
      %p61 = scmp.ne.s32.totalorder %s53, %s56
      %p62 = scmp.eq.s32.totalorder %s17, 0
      %p63 = por %p61, %p62
      %p64 = scmp.ne.s32.totalorder %s53, %s56
      %p65 = scmp.eq.s32.totalorder %s22, 1
      %p66 = por %p64, %p65
      %p67 = scmp.ne.s32.totalorder %s56, %s57
      %p68 = scmp.eq.s32.totalorder %s22, 0
      %p69 = por %p67, %p68
      %p70 = scmp.ne.s32.totalorder %s56, %s57
      %p71 = scmp.eq.s32.totalorder %s23, 1
      %p72 = por %p70, %p71
      %p74 = scmp.ne.s32.totalorder %s57, %s73
      %p75 = scmp.eq.s32.totalorder %s23, 0
      %p76 = por %p74, %p75
      %s78 = sadd.s32 %s77, 1
      %p81 = scmp.eq.s32.totalorder %s17, 1
      %p82 = scmp.ne.s32.totalorder %s77, %s79
      %p83 = scmp.eq.s32.totalorder %s17, 0
      %p84 = por %p82, %p83
      %p85 = scmp.ne.s32.totalorder %s77, %s79
      %p86 = scmp.eq.s32.totalorder %s22, 1
      %p87 = por %p85, %p86
      %p88 = scmp.ne.s32.totalorder %s79, %s80
      %p89 = scmp.eq.s32.totalorder %s22, 0
      %p90 = por %p88, %p89
      %p91 = scmp.ne.s32.totalorder %s79, %s80
      %p92 = scmp.eq.s32.totalorder %s23, 1
      %p93 = por %p91, %p92
      %p95 = scmp.ne.s32.totalorder %s80, %s94
      %p96 = scmp.eq.s32.totalorder %s23, 0
      %p97 = por %p95, %p96
      %s99 = sadd.s32 %s98, 1
      %p102 = scmp.eq.s32.totalorder %s17, 1
      %p103 = scmp.ne.s32.totalorder %s98, %s100
      %p104 = scmp.eq.s32.totalorder %s17, 0
      %p105 = por %p103, %p104
      %p106 = scmp.ne.s32.totalorder %s98, %s100
      %p107 = scmp.eq.s32.totalorder %s22, 1
      %p108 = por %p106, %p107
      %p109 = scmp.ne.s32.totalorder %s100, %s101
      %p110 = scmp.eq.s32.totalorder %s22, 0
      %p111 = por %p109, %p110
      %p112 = scmp.ne.s32.totalorder %s100, %s101
      %p113 = scmp.eq.s32.totalorder %s23, 1
      %p114 = por %p112, %p113
      %p116 = scmp.ne.s32.totalorder %s101, %s115
      %p117 = scmp.eq.s32.totalorder %s23, 0
      %p118 = por %p116, %p117
      %s120 = sadd.s32 %s119, 1
      %p123 = scmp.eq.s32.totalorder %s17, 1
      %p124 = scmp.ne.s32.totalorder %s119, %s121
      %p125 = scmp.eq.s32.totalorder %s17, 0
      %p126 = por %p124, %p125
      %p127 = scmp.ne.s32.totalorder %s119, %s121
      %p128 = scmp.eq.s32.totalorder %s22, 1
      %p129 = por %p127, %p128
      %p130 = scmp.ne.s32.totalorder %s121, %s122
      %p131 = scmp.eq.s32.totalorder %s22, 0
      %p132 = por %p130, %p131
      %p133 = scmp.ne.s32.totalorder %s121, %s122
      %p134 = scmp.eq.s32.totalorder %s23, 1
      %p135 = por %p133, %p134
      %p137 = scmp.ne.s32.totalorder %s122, %s136
      %p138 = scmp.eq.s32.totalorder %s23, 0
      %p139 = por %p137, %p138
      %s141 = sadd.s32 %s140, 1
      %p144 = scmp.eq.s32.totalorder %s17, 1
      %p145 = scmp.ne.s32.totalorder %s140, %s142
      %p146 = scmp.eq.s32.totalorder %s17, 0
      %p147 = por %p145, %p146
      %p148 = scmp.ne.s32.totalorder %s140, %s142
      %p149 = scmp.eq.s32.totalorder %s22, 1
      %p150 = por %p148, %p149
      %p151 = scmp.ne.s32.totalorder %s142, %s143
      %p152 = scmp.eq.s32.totalorder %s22, 0
      %p153 = por %p151, %p152
      %p154 = scmp.ne.s32.totalorder %s142, %s143
      %p155 = scmp.eq.s32.totalorder %s23, 1
      %p156 = por %p154, %p155
      %p158 = scmp.ne.s32.totalorder %s143, %s157
      %p159 = scmp.eq.s32.totalorder %s23, 0
      %p160 = por %p158, %p159
      %s162 = sadd.s32 %s161, 1
      %p165 = scmp.eq.s32.totalorder %s17, 1
      %p166 = scmp.ne.s32.totalorder %s161, %s163
      %p167 = scmp.eq.s32.totalorder %s17, 0
      %p168 = por %p166, %p167
      %p169 = scmp.ne.s32.totalorder %s161, %s163
      %p170 = scmp.eq.s32.totalorder %s22, 1
      %p171 = por %p169, %p170
      %p172 = scmp.ne.s32.totalorder %s163, %s164
      %p173 = scmp.eq.s32.totalorder %s22, 0
      %p174 = por %p172, %p173
      %p175 = scmp.ne.s32.totalorder %s163, %s164
      %p176 = scmp.eq.s32.totalorder %s23, 1
      %p177 = por %p175, %p176
      %p179 = scmp.ne.s32.totalorder %s164, %s178
      %p180 = scmp.eq.s32.totalorder %s23, 0
      %p181 = por %p179, %p180
      %s183 = sadd.s32 %s182, 1
      %p186 = scmp.eq.s32.totalorder %s17, 1
      %p187 = scmp.ne.s32.totalorder %s182, %s184
      %p188 = scmp.eq.s32.totalorder %s17, 0
      %p189 = por %p187, %p188
      %p190 = scmp.ne.s32.totalorder %s182, %s184
      %p191 = scmp.eq.s32.totalorder %s22, 1
      %p192 = por %p190, %p191
      %p193 = scmp.ne.s32.totalorder %s184, %s185
      %p194 = scmp.eq.s32.totalorder %s22, 0
      %p195 = por %p193, %p194
      %p196 = scmp.ne.s32.totalorder %s184, %s185
      %p197 = scmp.eq.s32.totalorder %s23, 1
      %p198 = por %p196, %p197
      %p200 = scmp.ne.s32.totalorder %s185, %s199
      %p201 = scmp.eq.s32.totalorder %s23, 0
      %p202 = por %p200, %p201
      %s203 = ssub.s32 %s17, %s24
      %p204 = scmp.eq.s32.totalorder %s203, 0
      %s206 = sadd.s32 %s205, 1
      %s207 = scalar_select %p204, %s205, %s206
      %p210 = pneg %p204
      %p211 = scmp.eq.s32.totalorder %s17, 1
      %p212 = por %p210, %p211
      %p213 = scmp.ne.s32.totalorder %s205, %s208
      %p214 = scmp.eq.s32.totalorder %s17, 0
      %p215 = por %p213, %p214
      %p216 = scmp.ne.s32.totalorder %s205, %s208
      %p217 = scmp.eq.s32.totalorder %s22, 1
      %p218 = por %p216, %p217
      %p219 = scmp.ne.s32.totalorder %s208, %s209
      %p220 = scmp.eq.s32.totalorder %s22, 0
      %p221 = por %p219, %p220
      %p222 = scmp.ne.s32.totalorder %s208, %s209
      %p223 = scmp.eq.s32.totalorder %s23, 1
      %p224 = por %p222, %p223
      %p226 = scmp.ne.s32.totalorder %s209, %s225
      %p227 = scmp.eq.s32.totalorder %s23, 0
      %p228 = por %p226, %p227
      %p229 = scmp.le.s32.totalorder 1, %s17
      %p230 = scmp.lt.s32.totalorder %s17, 3
      %p231 = pnand %p229, %p230
      %p232 = pneg %p231
      // Predicated region
      $region9: #{tpu_custom_call.1} parent=5 // pred_check
        _
      $region10: #{tpu_custom_call.1} parent=5 // pred_check_branch
        %234 = sbr.rel (%p231) target = $region12
      $region11: #{tpu_custom_call.1} parent=5 // pred_region
        %s235 = ssub.s32 %s17, 1
        // Predicated region
        $region13: #{tpu_custom_call.1} parent=11 // pred_check
          %p236 = pneg %p90
        $region14: #{tpu_custom_call.1} parent=11 // pred_check_branch
          %238 = sbr.rel (%p236) target = $region16
        $region15: #{tpu_custom_call.1} parent=11 // pred_region
          _
        $region16: #{tpu_custom_call.1} parent=11 // pred_fallthru
          _
        // Predicated region
        $region17: #{tpu_custom_call.1} parent=11 // pred_check
          %p239 = pneg %p111
        $region18: #{tpu_custom_call.1} parent=11 // pred_check_branch
          %241 = sbr.rel (%p239) target = $region20
        $region19: #{tpu_custom_call.1} parent=11 // pred_region
          _
        $region20: #{tpu_custom_call.1} parent=11 // pred_fallthru
          _
        // Predicated region
        $region21: #{tpu_custom_call.1} parent=11 // pred_check
          %p242 = pneg %p132
        $region22: #{tpu_custom_call.1} parent=11 // pred_check_branch
          %244 = sbr.rel (%p242) target = $region24
        $region23: #{tpu_custom_call.1} parent=11 // pred_region
          _
        $region24: #{tpu_custom_call.1} parent=11 // pred_fallthru
          _
        // Predicated region
        $region25: #{tpu_custom_call.1} parent=11 // pred_check
          %p245 = pneg %p153
        $region26: #{tpu_custom_call.1} parent=11 // pred_check_branch
          %247 = sbr.rel (%p245) target = $region28
        $region27: #{tpu_custom_call.1} parent=11 // pred_region
          _
        $region28: #{tpu_custom_call.1} parent=11 // pred_fallthru
          _
        // Predicated region
        $region29: #{tpu_custom_call.1} parent=11 // pred_check
          %p248 = pneg %p174
        $region30: #{tpu_custom_call.1} parent=11 // pred_check_branch
          %250 = sbr.rel (%p248) target = $region32
        $region31: #{tpu_custom_call.1} parent=11 // pred_region
          _
        $region32: #{tpu_custom_call.1} parent=11 // pred_fallthru
          _
        // Predicated region
        $region33: #{tpu_custom_call.1} parent=11 // pred_check
          %p251 = pneg %p195
        $region34: #{tpu_custom_call.1} parent=11 // pred_check_branch
          %253 = sbr.rel (%p251) target = $region36
        $region35: #{tpu_custom_call.1} parent=11 // pred_region
          _
        $region36: #{tpu_custom_call.1} parent=11 // pred_fallthru
          _
      $region12: #{tpu_custom_call.1} parent=5 // pred_fallthru
        _
      %p254 = scmp.lt.s32.totalorder %s17, 2
      // Predicated region
      $region37: #{tpu_custom_call.1} parent=5 // pred_check
        %p255 = pneg %p254
      $region38: #{tpu_custom_call.1} parent=5 // pred_check_branch
        %257 = sbr.rel (%p255) target = $region40
      $region39: #{tpu_custom_call.1} parent=5 // pred_region
        // Predicated region
        $region41: #{tpu_custom_call.1} parent=39 // pred_check
          %p258 = pneg %p37
        $region42: #{tpu_custom_call.1} parent=39 // pred_check_branch
          %260 = sbr.rel (%p258) target = $region44
        $region43: #{tpu_custom_call.1} parent=39 // pred_region
          %s261 = smul.u32 2, %s17
          %p262 = scmp.lt.s32.totalorder %s261, 3
          %s263 = scalar_select %p262, %s261, 3
          %s264 = smul.addr %s263, 8
          %s265 = scalar_lea.vmem %s0, %s264
          %s266 = smul.u32 2, %s17
        $region44: #{tpu_custom_call.1} parent=39 // pred_fallthru
          _
        // Predicated region
        $region45: #{tpu_custom_call.1} parent=39 // pred_check
          %p267 = pneg %p63
        $region46: #{tpu_custom_call.1} parent=39 // pred_check_branch
          %269 = sbr.rel (%p267) target = $region48
        $region47: #{tpu_custom_call.1} parent=39 // pred_region
          %s270 = smul.u32 2, %s17
          %p271 = scmp.lt.s32.totalorder %s270, 3
          %s272 = scalar_select %p271, %s270, 3
          %s273 = smul.addr %s272, 8
          %s274 = scalar_lea.vmem %s1, %s273
          %s275 = smul.u32 2, %s17
        $region48: #{tpu_custom_call.1} parent=39 // pred_fallthru
          _
      $region40: #{tpu_custom_call.1} parent=5 // pred_fallthru
        _
      %p276 = scmp.le.s32.totalorder 1, %s17
      %p277 = scmp.lt.s32.totalorder %s17, 3
      %p278 = pnand %p276, %p277
      %p279 = pneg %p278
      // Predicated region
      $region49: #{tpu_custom_call.1} parent=5 // pred_check
        _
      $region50: #{tpu_custom_call.1} parent=5 // pred_check_branch
        %281 = sbr.rel (%p278) target = $region52
      $region51: #{tpu_custom_call.1} parent=5 // pred_region
        %s282 = ssub.s32 %s17, 1
        %s283 = smul.u32 2, %s22
        %p284 = scmp.lt.s32.totalorder %s283, 3
        %s285 = scalar_select %p284, %s283, 3
        %s286 = smul.addr %s285, 8
        %s287 = scalar_lea.vmem %s0, %s286
        %p288 = pneg %p43
        %p289 = pneg %p40
        %s290 = smul.u32 2, %s22
        %p291 = scmp.lt.s32.totalorder %s290, 3
        %s292 = scalar_select %p291, %s290, 3
        %s293 = smul.addr %s292, 8
        %s294 = scalar_lea.vmem %s1, %s293
        %p295 = pneg %p69
        %p296 = pneg %p66
        %p297 = pneg %p90
        %p298 = pneg %p87
        %p299 = pneg %p111
        %p300 = pneg %p108
        %p301 = pneg %p132
        %p302 = pneg %p129
        %p303 = pneg %p153
        %p304 = pneg %p150
        %p305 = pneg %p174
        %p306 = pneg %p171
        %p307 = pneg %p195
        %p308 = pneg %p192
        %p309 = pneg %p221
        %p310 = pneg %p218
        %s311 = sand.u32 %s208, 1
        %s312 = scalar_lea.sflag [#allocation3], %s311
        %s313 = sand.u32 %s208, 1
        %s314 = smul.addr %s313, 16
        %s315 = scalar_lea.vmem [#allocation2], %s314
        %s316 = smul.u32 2, %s22
        %p317 = scmp.lt.s32.totalorder %s316, 3
        %s318 = scalar_select %p317, %s316, 3
        %s319 = smul.addr %s318, 8
        %s320 = scalar_lea.vmem %s0, %s319
        %s321 = smul.u32 2, %s22
        %s322 = smul.u32 2, %s22
        %p323 = scmp.lt.s32.totalorder %s322, 3
        %s324 = scalar_select %p323, %s322, 3
        %s325 = smul.addr %s324, 8
        %s326 = scalar_lea.vmem %s1, %s325
        %s327 = smul.u32 2, %s22
        %s328 = smul.u32 2, %s22
        %v329 = vld [vmem:[%s320] sm:$0xff]
        %v330 = vld [vmem:[%s320 + $0x8] sm:$0xff]
        %v331 = vld [vmem:[%s326] sm:$0xff]
        %v332 = vld [vmem:[%s326 + $0x8] sm:$0xff]
        %vm333 = vcmask 261120
        %v334 = vsel %vm333, %v329, 0.0
        %335 = vadd.xlane.f32.xlu0 %v334
        %v336 = vpop.xlane.xlu0 %335
        %v337 = vsel %vm333, %v330, 0.0
        %338 = vadd.xlane.f32.xlu0 %v337
        %v339 = vpop.xlane.xlu0 %338
        %v340 = vrcp.pop 32.0
        %v341 = vmul.f32 %v336, %v340
        %v342 = vmul.f32 %v339, %v340
        %v343 = vsub.f32 %v329, %v341
        %v344 = vsub.f32 %v330, %v342
        %v345 = vmul.f32 %v343, %v343
        %v346 = vmul.f32 %v344, %v344
        %v347 = vsel %vm333, %v345, 0.0
        %348 = vadd.xlane.f32.xlu0 %v347
        %v349 = vpop.xlane.xlu0 %348
        %v350 = vsel %vm333, %v346, 0.0
        %351 = vadd.xlane.f32.xlu0 %v350
        %v352 = vpop.xlane.xlu0 %351
        %v353 = vmul.f32 %v349, %v340
        %v354 = vmul.f32 %v352, %v340
        %v355 = vadd.f32 %v353, 1e-05
        %v356 = vadd.f32 %v354, 1e-05
        %v357 = vrsqrt.pop %v355
        %v358 = vrsqrt.pop %v356
        %v359 = vmul.f32 %v343, %v357
        %v360 = vmul.f32 %v344, %v358
        %v361 = vld [vmem:[%s6] sm:$0x1]
        %v363 = vlaneseq
        %v364 = vshrl.u32 %v363, 7
        %v365 = vsub.s32 0, %v364
        %v366 = vrot.slane %v361, %v365
        %v368 = vmul.f32 %v359, %v366
        %v369 = vmul.f32 %v360, %v366
        %v370 = vld [vmem:[%s7] sm:$0x1]
        %v372 = vlaneseq
        %v373 = vshrl.u32 %v372, 7
        %v374 = vsub.s32 0, %v373
        %v375 = vrot.slane %v370, %v374
        %v377 = vadd.f32 %v368, %v375
        %v378 = vadd.f32 %v369, %v375
        %v379 = vld [vmem:[%s2] sm:$0xff]
        %v380 = vld [vmem:[%s2 + $0x8] sm:$0xff]
        %v381 = vld [vmem:[%s2 + $0x10] sm:$0xff]
        %v382 = vld [vmem:[%s2 + $0x18] sm:$0xff]
        %v383 = vld [vmem:[%s2 + $0x20] sm:$0xff]
        %v384 = vld [vmem:[%s2 + $0x28] sm:$0xff]
        %v385 = vld [vmem:[%s2 + $0x30] sm:$0xff]
        %v386 = vld [vmem:[%s2 + $0x38] sm:$0xff]
        %v388 = vsel %vm333, %v377, 0
        %v391 = vsel %vm333, %v378, 0
        %393 = vmatprep.subr.mxu0 %v380
        %394 = vmatpush1.msra.mxu0 %v379
        %395 = vmatprep.subr.mxu0 %v382
        %396 = vmatpush1.msra.mxu0 %v381
        %397 = vmatprep.subr.mxu0 %v384
        %398 = vmatpush1.msra.mxu0 %v383
        %399 = vmatprep.subr.mxu0 %v386
        %400 = vmatpush1.msra.mxu0 %v385
        %401 = vmatprep.subr.mxu0 0.0
        %402 = vmatpush1.msra.mxu0 0.0
        %403 = vmatprep.subr.mxu0 0.0
        %404 = vmatpush1.msra.mxu0 0.0
        %405 = vmatprep.subr.mxu0 0.0
        %406 = vmatpush1.msra.mxu0 0.0
        %407 = vmatprep.subr.mxu0 0.0
        %408 = vmatpush1.msra.mxu0 0.0
        %409 = vmatprep.subr.mxu0 0.0
        %410 = vmatpush1.msra.mxu0 0.0
        %411 = vmatprep.subr.mxu0 0.0
        %412 = vmatpush1.msra.mxu0 0.0
        %413 = vmatprep.subr.mxu0 0.0
        %414 = vmatpush1.msra.mxu0 0.0
        %415 = vmatprep.subr.mxu0 0.0
        %416 = vmatpush1.msra.mxu0 0.0
        %417 = vmatprep.subr.mxu0 0.0
        %418 = vmatpush1.msra.mxu0 0.0
        %419 = vmatprep.subr.mxu0 0.0
        %420 = vmatpush1.msra.mxu0 0.0
        %421 = vmatprep.subr.mxu0 0.0
        %422 = vmatpush1.msra.mxu0 0.0
        %423 = vmatprep.subr.mxu0 0.0
        %424 = vmatpush1.msra.mxu0 0.0
        %425 = vmatprep.subr.mxu0 0.0
        %426 = vmatpush1.msra.mxu0 0.0
        %427 = vmatprep.subr.mxu0 0.0
        %428 = vmatpush1.msra.mxu0 0.0
        %429 = vmatprep.subr.mxu0 0.0
        %430 = vmatpush1.msra.mxu0 0.0
        %431 = vmatprep.subr.mxu0 0.0
        %432 = vmatpush1.msra.mxu0 0.0
        %433 = vmatprep.subr.mxu0 0.0
        %434 = vmatpush1.msra.mxu0 0.0
        %435 = vmatprep.subr.mxu0 0.0
        %436 = vmatpush1.msra.mxu0 0.0
        %437 = vmatprep.subr.mxu0 0.0
        %438 = vmatpush1.msra.mxu0 0.0
        %439 = vmatprep.subr.mxu0 0.0
        %440 = vmatpush1.msra.mxu0 0.0
        %441 = vmatprep.subr.mxu0 0.0
        %442 = vmatpush1.msra.mxu0 0.0
        %443 = vmatprep.subr.mxu0 0.0
        %444 = vmatpush1.msra.mxu0 0.0
        %445 = vmatprep.subr.mxu0 0.0
        %446 = vmatpush1.msra.mxu0 0.0
        %447 = vmatprep.subr.mxu0 0.0
        %448 = vmatpush1.msra.mxu0 0.0
        %449 = vmatprep.subr.mxu0 0.0
        %450 = vmatpush1.msra.mxu0 0.0
        %451 = vmatprep.subr.mxu0 0.0
        %452 = vmatpush1.msra.mxu0 0.0
        %453 = vmatprep.subr.mxu0 0.0
        %454 = vmatpush1.msra.mxu0 0.0
        %455 = vmatprep.subr.mxu0 0.0
        %456 = vmatpush1.msra.mxu0 0.0
        %457 = vmatprep.mubr.f32.mxu0 0.0
        %458 = vmatmul.mubr.f32.gmra.mrb[0].mxu0 %v388
        %v459 = vpop.f32.mrb[0].mxu0
        %v460 = vadd.f32 0.0, %v459
        %v461 = vpop.f32.mrb[0].mxu0
        %v462 = vadd.f32 0.0, %v461
        %463 = vmatprep.mubr.f32.mxu0 0.0
        %464 = vmatmul.mubr.f32.gmra.mrb[0].mxu0 %v391
        %v465 = vpop.f32.mrb[0].mxu0
        %v466 = vadd.f32 0.0, %v465
        %v467 = vpop.f32.mrb[0].mxu0
        %v468 = vadd.f32 0.0, %v467
        %469 = vdwg.mxu0
        %v470 = vld [vmem:[%s3] sm:$0xff]
        %v471 = vld [vmem:[%s3 + $0x8] sm:$0xff]
        %v472 = vld [vmem:[%s3 + $0x10] sm:$0xff]
        %v473 = vld [vmem:[%s3 + $0x18] sm:$0xff]
        %v474 = vld [vmem:[%s3 + $0x20] sm:$0xff]
        %v475 = vld [vmem:[%s3 + $0x28] sm:$0xff]
        %v476 = vld [vmem:[%s3 + $0x30] sm:$0xff]
        %v477 = vld [vmem:[%s3 + $0x38] sm:$0xff]
        %v479 = vsel %vm333, %v331, 0
        %v482 = vsel %vm333, %v332, 0
        %484 = vmatprep.subr.mxu0 %v471
        %485 = vmatpush1.msra.mxu0 %v470
        %486 = vmatprep.subr.mxu0 %v473
        %487 = vmatpush1.msra.mxu0 %v472
        %488 = vmatprep.subr.mxu0 %v475
        %489 = vmatpush1.msra.mxu0 %v474
        %490 = vmatprep.subr.mxu0 %v477
        %491 = vmatpush1.msra.mxu0 %v476
        %492 = vmatprep.subr.mxu0 0.0
        %493 = vmatpush1.msra.mxu0 0.0
        %494 = vmatprep.subr.mxu0 0.0
        %495 = vmatpush1.msra.mxu0 0.0
        %496 = vmatprep.subr.mxu0 0.0
        %497 = vmatpush1.msra.mxu0 0.0
        %498 = vmatprep.subr.mxu0 0.0
        %499 = vmatpush1.msra.mxu0 0.0
        %500 = vmatprep.subr.mxu0 0.0
        %501 = vmatpush1.msra.mxu0 0.0
        %502 = vmatprep.subr.mxu0 0.0
        %503 = vmatpush1.msra.mxu0 0.0
        %504 = vmatprep.subr.mxu0 0.0
        %505 = vmatpush1.msra.mxu0 0.0
        %506 = vmatprep.subr.mxu0 0.0
        %507 = vmatpush1.msra.mxu0 0.0
        %508 = vmatprep.subr.mxu0 0.0
        %509 = vmatpush1.msra.mxu0 0.0
        %510 = vmatprep.subr.mxu0 0.0
        %511 = vmatpush1.msra.mxu0 0.0
        %512 = vmatprep.subr.mxu0 0.0
        %513 = vmatpush1.msra.mxu0 0.0
        %514 = vmatprep.subr.mxu0 0.0
        %515 = vmatpush1.msra.mxu0 0.0
        %516 = vmatprep.subr.mxu0 0.0
        %517 = vmatpush1.msra.mxu0 0.0
        %518 = vmatprep.subr.mxu0 0.0
        %519 = vmatpush1.msra.mxu0 0.0
        %520 = vmatprep.subr.mxu0 0.0
        %521 = vmatpush1.msra.mxu0 0.0
        %522 = vmatprep.subr.mxu0 0.0
        %523 = vmatpush1.msra.mxu0 0.0
        %524 = vmatprep.subr.mxu0 0.0
        %525 = vmatpush1.msra.mxu0 0.0
        %526 = vmatprep.subr.mxu0 0.0
        %527 = vmatpush1.msra.mxu0 0.0
        %528 = vmatprep.subr.mxu0 0.0
        %529 = vmatpush1.msra.mxu0 0.0
        %530 = vmatprep.subr.mxu0 0.0
        %531 = vmatpush1.msra.mxu0 0.0
        %532 = vmatprep.subr.mxu0 0.0
        %533 = vmatpush1.msra.mxu0 0.0
        %534 = vmatprep.subr.mxu0 0.0
        %535 = vmatpush1.msra.mxu0 0.0
        %536 = vmatprep.subr.mxu0 0.0
        %537 = vmatpush1.msra.mxu0 0.0
        %538 = vmatprep.subr.mxu0 0.0
        %539 = vmatpush1.msra.mxu0 0.0
        %540 = vmatprep.subr.mxu0 0.0
        %541 = vmatpush1.msra.mxu0 0.0
        %542 = vmatprep.subr.mxu0 0.0
        %543 = vmatpush1.msra.mxu0 0.0
        %544 = vmatprep.subr.mxu0 0.0
        %545 = vmatpush1.msra.mxu0 0.0
        %546 = vmatprep.subr.mxu0 0.0
        %547 = vmatpush1.msra.mxu0 0.0
        %548 = vmatprep.mubr.f32.mxu0 0.0
        %549 = vmatmul.mubr.f32.gmra.mrb[0].mxu0 %v479
        %v550 = vpop.f32.mrb[0].mxu0
        %v551 = vadd.f32 0.0, %v550
        %v552 = vpop.f32.mrb[0].mxu0
        %v553 = vadd.f32 0.0, %v552
        %554 = vmatprep.mubr.f32.mxu0 0.0
        %555 = vmatmul.mubr.f32.gmra.mrb[0].mxu0 %v482
        %v556 = vpop.f32.mrb[0].mxu0
        %v557 = vadd.f32 0.0, %v556
        %v558 = vpop.f32.mrb[0].mxu0
        %v559 = vadd.f32 0.0, %v558
        %560 = vdwg.mxu0
        %v561 = vld [vmem:[%s4] sm:$0xff]
        %v562 = vld [vmem:[%s4 + $0x8] sm:$0xff]
        %v563 = vld [vmem:[%s4 + $0x10] sm:$0xff]
        %v564 = vld [vmem:[%s4 + $0x18] sm:$0xff]
        %v565 = vld [vmem:[%s4 + $0x20] sm:$0xff]
        %v566 = vld [vmem:[%s4 + $0x28] sm:$0xff]
        %v567 = vld [vmem:[%s4 + $0x30] sm:$0xff]
        %v568 = vld [vmem:[%s4 + $0x38] sm:$0xff]
        %569 = vmatprep.subr.mxu0 %v562
        %570 = vmatpush1.msra.mxu0 %v561
        %571 = vmatprep.subr.mxu0 %v564
        %572 = vmatpush1.msra.mxu0 %v563
        %573 = vmatprep.subr.mxu0 %v566
        %574 = vmatpush1.msra.mxu0 %v565
        %575 = vmatprep.subr.mxu0 %v568
        %576 = vmatpush1.msra.mxu0 %v567
        %577 = vmatprep.subr.mxu0 0.0
        %578 = vmatpush1.msra.mxu0 0.0
        %579 = vmatprep.subr.mxu0 0.0
        %580 = vmatpush1.msra.mxu0 0.0
        %581 = vmatprep.subr.mxu0 0.0
        %582 = vmatpush1.msra.mxu0 0.0
        %583 = vmatprep.subr.mxu0 0.0
        %584 = vmatpush1.msra.mxu0 0.0
        %585 = vmatprep.subr.mxu0 0.0
        %586 = vmatpush1.msra.mxu0 0.0
        %587 = vmatprep.subr.mxu0 0.0
        %588 = vmatpush1.msra.mxu0 0.0
        %589 = vmatprep.subr.mxu0 0.0
        %590 = vmatpush1.msra.mxu0 0.0
        %591 = vmatprep.subr.mxu0 0.0
        %592 = vmatpush1.msra.mxu0 0.0
        %593 = vmatprep.subr.mxu0 0.0
        %594 = vmatpush1.msra.mxu0 0.0
        %595 = vmatprep.subr.mxu0 0.0
        %596 = vmatpush1.msra.mxu0 0.0
        %597 = vmatprep.subr.mxu0 0.0
        %598 = vmatpush1.msra.mxu0 0.0
        %599 = vmatprep.subr.mxu0 0.0
        %600 = vmatpush1.msra.mxu0 0.0
        %601 = vmatprep.subr.mxu0 0.0
        %602 = vmatpush1.msra.mxu0 0.0
        %603 = vmatprep.subr.mxu0 0.0
        %604 = vmatpush1.msra.mxu0 0.0
        %605 = vmatprep.subr.mxu0 0.0
        %606 = vmatpush1.msra.mxu0 0.0
        %607 = vmatprep.subr.mxu0 0.0
        %608 = vmatpush1.msra.mxu0 0.0
        %609 = vmatprep.subr.mxu0 0.0
        %610 = vmatpush1.msra.mxu0 0.0
        %611 = vmatprep.subr.mxu0 0.0
        %612 = vmatpush1.msra.mxu0 0.0
        %613 = vmatprep.subr.mxu0 0.0
        %614 = vmatpush1.msra.mxu0 0.0
        %615 = vmatprep.subr.mxu0 0.0
        %616 = vmatpush1.msra.mxu0 0.0
        %617 = vmatprep.subr.mxu0 0.0
        %618 = vmatpush1.msra.mxu0 0.0
        %619 = vmatprep.subr.mxu0 0.0
        %620 = vmatpush1.msra.mxu0 0.0
        %621 = vmatprep.subr.mxu0 0.0
        %622 = vmatpush1.msra.mxu0 0.0
        %623 = vmatprep.subr.mxu0 0.0
        %624 = vmatpush1.msra.mxu0 0.0
        %625 = vmatprep.subr.mxu0 0.0
        %626 = vmatpush1.msra.mxu0 0.0
        %627 = vmatprep.subr.mxu0 0.0
        %628 = vmatpush1.msra.mxu0 0.0
        %629 = vmatprep.subr.mxu0 0.0
        %630 = vmatpush1.msra.mxu0 0.0
        %631 = vmatprep.subr.mxu0 0.0
        %632 = vmatpush1.msra.mxu0 0.0
        %633 = vmatprep.mubr.f32.mxu0 0.0
        %634 = vmatmul.mubr.f32.gmra.mrb[0].mxu0 %v479
        %v635 = vpop.f32.mrb[0].mxu0
        %v636 = vadd.f32 0.0, %v635
        %v637 = vpop.f32.mrb[0].mxu0
        %v638 = vadd.f32 0.0, %v637
        %639 = vmatprep.mubr.f32.mxu0 0.0
        %640 = vmatmul.mubr.f32.gmra.mrb[0].mxu0 %v482
        %v641 = vpop.f32.mrb[0].mxu0
        %v642 = vadd.f32 0.0, %v641
        %v643 = vpop.f32.mrb[0].mxu0
        %v644 = vadd.f32 0.0, %v643
        %645 = vdwg.mxu0
        %v647 = vsel %vm333, %v460, 0
        %v650 = vsel %vm333, %v551, 0
        %652 = vmatprep.subr.mxu0 0.0
        %653 = vmatpush1.xpose.msra.mxu0 %v650
        %654 = vmatprep.subr.mxu0 0.0
        %655 = vmatpush1.xpose.msra.mxu0 0.0
        %656 = vmatprep.subr.mxu0 0.0
        %657 = vmatpush1.xpose.msra.mxu0 0.0
        %658 = vmatprep.subr.mxu0 0.0
        %659 = vmatpush1.xpose.msra.mxu0 0.0
        %660 = vmatprep.subr.mxu0 0.0
        %661 = vmatpush1.xpose.msra.mxu0 0.0
        %662 = vmatprep.subr.mxu0 0.0
        %663 = vmatpush1.xpose.msra.mxu0 0.0
        %664 = vmatprep.subr.mxu0 0.0
        %665 = vmatpush1.xpose.msra.mxu0 0.0
        %666 = vmatprep.subr.mxu0 0.0
        %667 = vmatpush1.xpose.msra.mxu0 0.0
        %668 = vmatprep.subr.mxu0 0.0
        %669 = vmatpush1.xpose.msra.mxu0 0.0
        %670 = vmatprep.subr.mxu0 0.0
        %671 = vmatpush1.xpose.msra.mxu0 0.0
        %672 = vmatprep.subr.mxu0 0.0
        %673 = vmatpush1.xpose.msra.mxu0 0.0
        %674 = vmatprep.subr.mxu0 0.0
        %675 = vmatpush1.xpose.msra.mxu0 0.0
        %676 = vmatprep.subr.mxu0 0.0
        %677 = vmatpush1.xpose.msra.mxu0 0.0
        %678 = vmatprep.subr.mxu0 0.0
        %679 = vmatpush1.xpose.msra.mxu0 0.0
        %680 = vmatprep.subr.mxu0 0.0
        %681 = vmatpush1.xpose.msra.mxu0 0.0
        %682 = vmatprep.subr.mxu0 0.0
        %683 = vmatpush1.xpose.msra.mxu0 0.0
        %684 = vmatprep.subr.mxu0 0.0
        %685 = vmatpush1.xpose.msra.mxu0 0.0
        %686 = vmatprep.subr.mxu0 0.0
        %687 = vmatpush1.xpose.msra.mxu0 0.0
        %688 = vmatprep.subr.mxu0 0.0
        %689 = vmatpush1.xpose.msra.mxu0 0.0
        %690 = vmatprep.subr.mxu0 0.0
        %691 = vmatpush1.xpose.msra.mxu0 0.0
        %692 = vmatprep.subr.mxu0 0.0
        %693 = vmatpush1.xpose.msra.mxu0 0.0
        %694 = vmatprep.subr.mxu0 0.0
        %695 = vmatpush1.xpose.msra.mxu0 0.0
        %696 = vmatprep.subr.mxu0 0.0
        %697 = vmatpush1.xpose.msra.mxu0 0.0
        %698 = vmatprep.subr.mxu0 0.0
        %699 = vmatpush1.xpose.msra.mxu0 0.0
        %700 = vmatprep.subr.mxu0 0.0
        %701 = vmatpush1.xpose.msra.mxu0 0.0
        %702 = vmatprep.subr.mxu0 0.0
        %703 = vmatpush1.xpose.msra.mxu0 0.0
        %704 = vmatprep.subr.mxu0 0.0
        %705 = vmatpush1.xpose.msra.mxu0 0.0
        %706 = vmatprep.subr.mxu0 0.0
        %707 = vmatpush1.xpose.msra.mxu0 0.0
        %708 = vmatprep.subr.mxu0 0.0
        %709 = vmatpush1.xpose.msra.mxu0 0.0
        %710 = vmatprep.subr.mxu0 0.0
        %711 = vmatpush1.xpose.msra.mxu0 0.0
        %712 = vmatprep.subr.mxu0 0.0
        %713 = vmatpush1.xpose.msra.mxu0 0.0
        %714 = vmatprep.subr.mxu0 0.0
        %715 = vmatpush1.xpose.msra.mxu0 0.0
        %716 = vmatprep.mubr.f32.mxu0 0.0
        %717 = vmatmul.mubr.f32.gmra.mrb[0].mxu0 %v647
        %v718 = vpop.f32.mrb[0].mxu0
        %v719 = vadd.f32 0.0, %v718
        %v720 = vpop.f32.mrb[0].mxu0
        %721 = vdwg.mxu0
        %vm722 = vcmask 64512
        %v723 = vsel %vm722, %v719, -inf
        %724 = vmax.xlane.f32.xlu0 %v723
        %v725 = vpop.xlane.xlu0 %724
        %v726 = vsub.f32 %v719, %v725
        %v727 = vmul.f32 %v726, 1.442695
        %v728 = vpow.pop %v727
        %v729 = vsel %vm722, %v728, 0.0
        %730 = vadd.xlane.f32.xlu0 %v729
        %v731 = vpop.xlane.xlu0 %730
        %v732 = vrcp.pop %v731
        %v733 = vmul.f32 %v728, %v732
        %v735 = vsel %vm722, %v733, 0
        %737 = vmatprep.subr.mxu0 0.0
        %738 = vmatpush1.msra.mxu0 %v636
        %739 = vmatprep.subr.mxu0 0.0
        %740 = vmatpush1.msra.mxu0 0.0
        %741 = vmatprep.subr.mxu0 0.0
        %742 = vmatpush1.msra.mxu0 0.0
        %743 = vmatprep.subr.mxu0 0.0
        %744 = vmatpush1.msra.mxu0 0.0
        %745 = vmatprep.subr.mxu0 0.0
        %746 = vmatpush1.msra.mxu0 0.0
        %747 = vmatprep.subr.mxu0 0.0
        %748 = vmatpush1.msra.mxu0 0.0
        %749 = vmatprep.subr.mxu0 0.0
        %750 = vmatpush1.msra.mxu0 0.0
        %751 = vmatprep.subr.mxu0 0.0
        %752 = vmatpush1.msra.mxu0 0.0
        %753 = vmatprep.subr.mxu0 0.0
        %754 = vmatpush1.msra.mxu0 0.0
        %755 = vmatprep.subr.mxu0 0.0
        %756 = vmatpush1.msra.mxu0 0.0
        %757 = vmatprep.subr.mxu0 0.0
        %758 = vmatpush1.msra.mxu0 0.0
        %759 = vmatprep.subr.mxu0 0.0
        %760 = vmatpush1.msra.mxu0 0.0
        %761 = vmatprep.subr.mxu0 0.0
        %762 = vmatpush1.msra.mxu0 0.0
        %763 = vmatprep.subr.mxu0 0.0
        %764 = vmatpush1.msra.mxu0 0.0
        %765 = vmatprep.subr.mxu0 0.0
        %766 = vmatpush1.msra.mxu0 0.0
        %767 = vmatprep.subr.mxu0 0.0
        %768 = vmatpush1.msra.mxu0 0.0
        %769 = vmatprep.subr.mxu0 0.0
        %770 = vmatpush1.msra.mxu0 0.0
        %771 = vmatprep.subr.mxu0 0.0
        %772 = vmatpush1.msra.mxu0 0.0
        %773 = vmatprep.subr.mxu0 0.0
        %774 = vmatpush1.msra.mxu0 0.0
        %775 = vmatprep.subr.mxu0 0.0
        %776 = vmatpush1.msra.mxu0 0.0
        %777 = vmatprep.subr.mxu0 0.0
        %778 = vmatpush1.msra.mxu0 0.0
        %779 = vmatprep.subr.mxu0 0.0
        %780 = vmatpush1.msra.mxu0 0.0
        %781 = vmatprep.subr.mxu0 0.0
        %782 = vmatpush1.msra.mxu0 0.0
        %783 = vmatprep.subr.mxu0 0.0
        %784 = vmatpush1.msra.mxu0 0.0
        %785 = vmatprep.subr.mxu0 0.0
        %786 = vmatpush1.msra.mxu0 0.0
        %787 = vmatprep.subr.mxu0 0.0
        %788 = vmatpush1.msra.mxu0 0.0
        %789 = vmatprep.subr.mxu0 0.0
        %790 = vmatpush1.msra.mxu0 0.0
        %791 = vmatprep.subr.mxu0 0.0
        %792 = vmatpush1.msra.mxu0 0.0
        %793 = vmatprep.subr.mxu0 0.0
        %794 = vmatpush1.msra.mxu0 0.0
        %795 = vmatprep.subr.mxu0 0.0
        %796 = vmatpush1.msra.mxu0 0.0
        %797 = vmatprep.subr.mxu0 0.0
        %798 = vmatpush1.msra.mxu0 0.0
        %799 = vmatprep.subr.mxu0 0.0
        %800 = vmatpush1.msra.mxu0 0.0
        %801 = vmatprep.mubr.f32.mxu0 0.0
        %802 = vmatmul.mubr.f32.gmra.mrb[0].mxu0 %v735
        %v803 = vpop.f32.mrb[0].mxu0
        %v804 = vadd.f32 0.0, %v803
        %v805 = vpop.f32.mrb[0].mxu0
        %806 = vdwg.mxu0
        %807 = vrot.lane.b32.xlu0 %v460, 96
        %v808 = vpop.permute.xlu0 %807
        %809 = vrot.lane.b32.xlu0 %v551, 96
        %v810 = vpop.permute.xlu0 %809
        %v811 = vsel %vm333, %v808, 0
        %v813 = vsel %vm333, %v810, 0
        %815 = vmatprep.subr.mxu0 0.0
        %816 = vmatpush1.xpose.msra.mxu0 %v813
        %817 = vmatprep.subr.mxu0 0.0
        %818 = vmatpush1.xpose.msra.mxu0 0.0
        %819 = vmatprep.subr.mxu0 0.0
        %820 = vmatpush1.xpose.msra.mxu0 0.0
        %821 = vmatprep.subr.mxu0 0.0
        %822 = vmatpush1.xpose.msra.mxu0 0.0
        %823 = vmatprep.subr.mxu0 0.0
        %824 = vmatpush1.xpose.msra.mxu0 0.0
        %825 = vmatprep.subr.mxu0 0.0
        %826 = vmatpush1.xpose.msra.mxu0 0.0
        %827 = vmatprep.subr.mxu0 0.0
        %828 = vmatpush1.xpose.msra.mxu0 0.0
        %829 = vmatprep.subr.mxu0 0.0
        %830 = vmatpush1.xpose.msra.mxu0 0.0
        %831 = vmatprep.subr.mxu0 0.0
        %832 = vmatpush1.xpose.msra.mxu0 0.0
        %833 = vmatprep.subr.mxu0 0.0
        %834 = vmatpush1.xpose.msra.mxu0 0.0
        %835 = vmatprep.subr.mxu0 0.0
        %836 = vmatpush1.xpose.msra.mxu0 0.0
        %837 = vmatprep.subr.mxu0 0.0
        %838 = vmatpush1.xpose.msra.mxu0 0.0
        %839 = vmatprep.subr.mxu0 0.0
        %840 = vmatpush1.xpose.msra.mxu0 0.0
        %841 = vmatprep.subr.mxu0 0.0
        %842 = vmatpush1.xpose.msra.mxu0 0.0
        %843 = vmatprep.subr.mxu0 0.0
        %844 = vmatpush1.xpose.msra.mxu0 0.0
        %845 = vmatprep.subr.mxu0 0.0
        %846 = vmatpush1.xpose.msra.mxu0 0.0
        %847 = vmatprep.subr.mxu0 0.0
        %848 = vmatpush1.xpose.msra.mxu0 0.0
        %849 = vmatprep.subr.mxu0 0.0
        %850 = vmatpush1.xpose.msra.mxu0 0.0
        %851 = vmatprep.subr.mxu0 0.0
        %852 = vmatpush1.xpose.msra.mxu0 0.0
        %853 = vmatprep.subr.mxu0 0.0
        %854 = vmatpush1.xpose.msra.mxu0 0.0
        %855 = vmatprep.subr.mxu0 0.0
        %856 = vmatpush1.xpose.msra.mxu0 0.0
        %857 = vmatprep.subr.mxu0 0.0
        %858 = vmatpush1.xpose.msra.mxu0 0.0
        %859 = vmatprep.subr.mxu0 0.0
        %860 = vmatpush1.xpose.msra.mxu0 0.0
        %861 = vmatprep.subr.mxu0 0.0
        %862 = vmatpush1.xpose.msra.mxu0 0.0
        %863 = vmatprep.subr.mxu0 0.0
        %864 = vmatpush1.xpose.msra.mxu0 0.0
        %865 = vmatprep.subr.mxu0 0.0
        %866 = vmatpush1.xpose.msra.mxu0 0.0
        %867 = vmatprep.subr.mxu0 0.0
        %868 = vmatpush1.xpose.msra.mxu0 0.0
        %869 = vmatprep.subr.mxu0 0.0
        %870 = vmatpush1.xpose.msra.mxu0 0.0
        %871 = vmatprep.subr.mxu0 0.0
        %872 = vmatpush1.xpose.msra.mxu0 0.0
        %873 = vmatprep.subr.mxu0 0.0
        %874 = vmatpush1.xpose.msra.mxu0 0.0
        %875 = vmatprep.subr.mxu0 0.0
        %876 = vmatpush1.xpose.msra.mxu0 0.0
        %877 = vmatprep.subr.mxu0 0.0
        %878 = vmatpush1.xpose.msra.mxu0 0.0
        %879 = vmatprep.mubr.f32.mxu0 0.0
        %880 = vmatmul.mubr.f32.gmra.mrb[0].mxu0 %v811
        %v881 = vpop.f32.mrb[0].mxu0
        %v882 = vadd.f32 0.0, %v881
        %v883 = vpop.f32.mrb[0].mxu0
        %884 = vdwg.mxu0
        %v885 = vsel %vm722, %v882, -inf
        %886 = vmax.xlane.f32.xlu0 %v885
        %v887 = vpop.xlane.xlu0 %886
        %v888 = vsub.f32 %v882, %v887
        %v889 = vmul.f32 %v888, 1.442695
        %v890 = vpow.pop %v889
        %v891 = vsel %vm722, %v890, 0.0
        %892 = vadd.xlane.f32.xlu0 %v891
        %v893 = vpop.xlane.xlu0 %892
        %v894 = vrcp.pop %v893
        %v895 = vmul.f32 %v890, %v894
        %897 = vrot.lane.b32.xlu0 %v636, 96
        %v898 = vpop.permute.xlu0 %897
        %v901 = vsel %vm722, %v895, 0
        %903 = vmatprep.subr.mxu0 0.0
        %904 = vmatpush1.msra.mxu0 %v898
        %905 = vmatprep.subr.mxu0 0.0
        %906 = vmatpush1.msra.mxu0 0.0
        %907 = vmatprep.subr.mxu0 0.0
        %908 = vmatpush1.msra.mxu0 0.0
        %909 = vmatprep.subr.mxu0 0.0
        %910 = vmatpush1.msra.mxu0 0.0
        %911 = vmatprep.subr.mxu0 0.0
        %912 = vmatpush1.msra.mxu0 0.0
        %913 = vmatprep.subr.mxu0 0.0
        %914 = vmatpush1.msra.mxu0 0.0
        %915 = vmatprep.subr.mxu0 0.0
        %916 = vmatpush1.msra.mxu0 0.0
        %917 = vmatprep.subr.mxu0 0.0
        %918 = vmatpush1.msra.mxu0 0.0
        %919 = vmatprep.subr.mxu0 0.0
        %920 = vmatpush1.msra.mxu0 0.0
        %921 = vmatprep.subr.mxu0 0.0
        %922 = vmatpush1.msra.mxu0 0.0
        %923 = vmatprep.subr.mxu0 0.0
        %924 = vmatpush1.msra.mxu0 0.0
        %925 = vmatprep.subr.mxu0 0.0
        %926 = vmatpush1.msra.mxu0 0.0
        %927 = vmatprep.subr.mxu0 0.0
        %928 = vmatpush1.msra.mxu0 0.0
        %929 = vmatprep.subr.mxu0 0.0
        %930 = vmatpush1.msra.mxu0 0.0
        %931 = vmatprep.subr.mxu0 0.0
        %932 = vmatpush1.msra.mxu0 0.0
        %933 = vmatprep.subr.mxu0 0.0
        %934 = vmatpush1.msra.mxu0 0.0
        %935 = vmatprep.subr.mxu0 0.0
        %936 = vmatpush1.msra.mxu0 0.0
        %937 = vmatprep.subr.mxu0 0.0
        %938 = vmatpush1.msra.mxu0 0.0
        %939 = vmatprep.subr.mxu0 0.0
        %940 = vmatpush1.msra.mxu0 0.0
        %941 = vmatprep.subr.mxu0 0.0
        %942 = vmatpush1.msra.mxu0 0.0
        %943 = vmatprep.subr.mxu0 0.0
        %944 = vmatpush1.msra.mxu0 0.0
        %945 = vmatprep.subr.mxu0 0.0
        %946 = vmatpush1.msra.mxu0 0.0
        %947 = vmatprep.subr.mxu0 0.0
        %948 = vmatpush1.msra.mxu0 0.0
        %949 = vmatprep.subr.mxu0 0.0
        %950 = vmatpush1.msra.mxu0 0.0
        %951 = vmatprep.subr.mxu0 0.0
        %952 = vmatpush1.msra.mxu0 0.0
        %953 = vmatprep.subr.mxu0 0.0
        %954 = vmatpush1.msra.mxu0 0.0
        %955 = vmatprep.subr.mxu0 0.0
        %956 = vmatpush1.msra.mxu0 0.0
        %957 = vmatprep.subr.mxu0 0.0
        %958 = vmatpush1.msra.mxu0 0.0
        %959 = vmatprep.subr.mxu0 0.0
        %960 = vmatpush1.msra.mxu0 0.0
        %961 = vmatprep.subr.mxu0 0.0
        %962 = vmatpush1.msra.mxu0 0.0
        %963 = vmatprep.subr.mxu0 0.0
        %964 = vmatpush1.msra.mxu0 0.0
        %965 = vmatprep.subr.mxu0 0.0
        %966 = vmatpush1.msra.mxu0 0.0
        %967 = vmatprep.mubr.f32.mxu0 0.0
        %968 = vmatmul.mubr.f32.gmra.mrb[0].mxu0 %v901
        %v969 = vpop.f32.mrb[0].mxu0
        %v970 = vadd.f32 0.0, %v969
        %v971 = vpop.f32.mrb[0].mxu0
        %972 = vdwg.mxu0
        %973 = vrot.lane.b32.xlu0 %v460, 64
        %v974 = vpop.permute.xlu0 %973
        %975 = vrot.lane.b32.xlu0 %v551, 64
        %v976 = vpop.permute.xlu0 %975
        %v977 = vsel %vm333, %v974, 0
        %v979 = vsel %vm333, %v976, 0
        %981 = vmatprep.subr.mxu0 0.0
        %982 = vmatpush1.xpose.msra.mxu0 %v979
        %983 = vmatprep.subr.mxu0 0.0
        %984 = vmatpush1.xpose.msra.mxu0 0.0
        %985 = vmatprep.subr.mxu0 0.0
        %986 = vmatpush1.xpose.msra.mxu0 0.0
        %987 = vmatprep.subr.mxu0 0.0
        %988 = vmatpush1.xpose.msra.mxu0 0.0
        %989 = vmatprep.subr.mxu0 0.0
        %990 = vmatpush1.xpose.msra.mxu0 0.0
        %991 = vmatprep.subr.mxu0 0.0
        %992 = vmatpush1.xpose.msra.mxu0 0.0
        %993 = vmatprep.subr.mxu0 0.0
        %994 = vmatpush1.xpose.msra.mxu0 0.0
        %995 = vmatprep.subr.mxu0 0.0
        %996 = vmatpush1.xpose.msra.mxu0 0.0
        %997 = vmatprep.subr.mxu0 0.0
        %998 = vmatpush1.xpose.msra.mxu0 0.0
        %999 = vmatprep.subr.mxu0 0.0
        %1000 = vmatpush1.xpose.msra.mxu0 0.0
        %1001 = vmatprep.subr.mxu0 0.0
        %1002 = vmatpush1.xpose.msra.mxu0 0.0
        %1003 = vmatprep.subr.mxu0 0.0
        %1004 = vmatpush1.xpose.msra.mxu0 0.0
        %1005 = vmatprep.subr.mxu0 0.0
        %1006 = vmatpush1.xpose.msra.mxu0 0.0
        %1007 = vmatprep.subr.mxu0 0.0
        %1008 = vmatpush1.xpose.msra.mxu0 0.0
        %1009 = vmatprep.subr.mxu0 0.0
        %1010 = vmatpush1.xpose.msra.mxu0 0.0
        %1011 = vmatprep.subr.mxu0 0.0
        %1012 = vmatpush1.xpose.msra.mxu0 0.0
        %1013 = vmatprep.subr.mxu0 0.0
        %1014 = vmatpush1.xpose.msra.mxu0 0.0
        %1015 = vmatprep.subr.mxu0 0.0
        %1016 = vmatpush1.xpose.msra.mxu0 0.0
        %1017 = vmatprep.subr.mxu0 0.0
        %1018 = vmatpush1.xpose.msra.mxu0 0.0
        %1019 = vmatprep.subr.mxu0 0.0
        %1020 = vmatpush1.xpose.msra.mxu0 0.0
        %1021 = vmatprep.subr.mxu0 0.0
        %1022 = vmatpush1.xpose.msra.mxu0 0.0
        %1023 = vmatprep.subr.mxu0 0.0
        %1024 = vmatpush1.xpose.msra.mxu0 0.0
        %1025 = vmatprep.subr.mxu0 0.0
        %1026 = vmatpush1.xpose.msra.mxu0 0.0
        %1027 = vmatprep.subr.mxu0 0.0
        %1028 = vmatpush1.xpose.msra.mxu0 0.0
        %1029 = vmatprep.subr.mxu0 0.0
        %1030 = vmatpush1.xpose.msra.mxu0 0.0
        %1031 = vmatprep.subr.mxu0 0.0
        %1032 = vmatpush1.xpose.msra.mxu0 0.0
        %1033 = vmatprep.subr.mxu0 0.0
        %1034 = vmatpush1.xpose.msra.mxu0 0.0
        %1035 = vmatprep.subr.mxu0 0.0
        %1036 = vmatpush1.xpose.msra.mxu0 0.0
        %1037 = vmatprep.subr.mxu0 0.0
        %1038 = vmatpush1.xpose.msra.mxu0 0.0
        %1039 = vmatprep.subr.mxu0 0.0
        %1040 = vmatpush1.xpose.msra.mxu0 0.0
        %1041 = vmatprep.subr.mxu0 0.0
        %1042 = vmatpush1.xpose.msra.mxu0 0.0
        %1043 = vmatprep.subr.mxu0 0.0
        %1044 = vmatpush1.xpose.msra.mxu0 0.0
        %1045 = vmatprep.mubr.f32.mxu0 0.0
        %1046 = vmatmul.mubr.f32.gmra.mrb[0].mxu0 %v977
        %v1047 = vpop.f32.mrb[0].mxu0
        %v1048 = vadd.f32 0.0, %v1047
        %v1049 = vpop.f32.mrb[0].mxu0
        %1050 = vdwg.mxu0
        %v1051 = vsel %vm722, %v1048, -inf
        %1052 = vmax.xlane.f32.xlu0 %v1051
        %v1053 = vpop.xlane.xlu0 %1052
        %v1054 = vsub.f32 %v1048, %v1053
        %v1055 = vmul.f32 %v1054, 1.442695
        %v1056 = vpow.pop %v1055
        %v1057 = vsel %vm722, %v1056, 0.0
        %1058 = vadd.xlane.f32.xlu0 %v1057
        %v1059 = vpop.xlane.xlu0 %1058
        %v1060 = vrcp.pop %v1059
        %v1061 = vmul.f32 %v1056, %v1060
        %1062 = vrot.lane.b32.xlu0 %v636, 64
        %v1063 = vpop.permute.xlu0 %1062
        %v1066 = vsel %vm722, %v1061, 0
        %1068 = vmatprep.subr.mxu0 0.0
        %1069 = vmatpush1.msra.mxu0 %v1063
        %1070 = vmatprep.subr.mxu0 0.0
        %1071 = vmatpush1.msra.mxu0 0.0
        %1072 = vmatprep.subr.mxu0 0.0
        %1073 = vmatpush1.msra.mxu0 0.0
        %1074 = vmatprep.subr.mxu0 0.0
        %1075 = vmatpush1.msra.mxu0 0.0
        %1076 = vmatprep.subr.mxu0 0.0
        %1077 = vmatpush1.msra.mxu0 0.0
        %1078 = vmatprep.subr.mxu0 0.0
        %1079 = vmatpush1.msra.mxu0 0.0
        %1080 = vmatprep.subr.mxu0 0.0
        %1081 = vmatpush1.msra.mxu0 0.0
        %1082 = vmatprep.subr.mxu0 0.0
        %1083 = vmatpush1.msra.mxu0 0.0
        %1084 = vmatprep.subr.mxu0 0.0
        %1085 = vmatpush1.msra.mxu0 0.0
        %1086 = vmatprep.subr.mxu0 0.0
        %1087 = vmatpush1.msra.mxu0 0.0
        %1088 = vmatprep.subr.mxu0 0.0
        %1089 = vmatpush1.msra.mxu0 0.0
        %1090 = vmatprep.subr.mxu0 0.0
        %1091 = vmatpush1.msra.mxu0 0.0
        %1092 = vmatprep.subr.mxu0 0.0
        %1093 = vmatpush1.msra.mxu0 0.0
        %1094 = vmatprep.subr.mxu0 0.0
        %1095 = vmatpush1.msra.mxu0 0.0
        %1096 = vmatprep.subr.mxu0 0.0
        %1097 = vmatpush1.msra.mxu0 0.0
        %1098 = vmatprep.subr.mxu0 0.0
        %1099 = vmatpush1.msra.mxu0 0.0
        %1100 = vmatprep.subr.mxu0 0.0
        %1101 = vmatpush1.msra.mxu0 0.0
        %1102 = vmatprep.subr.mxu0 0.0
        %1103 = vmatpush1.msra.mxu0 0.0
        %1104 = vmatprep.subr.mxu0 0.0
        %1105 = vmatpush1.msra.mxu0 0.0
        %1106 = vmatprep.subr.mxu0 0.0
        %1107 = vmatpush1.msra.mxu0 0.0
        %1108 = vmatprep.subr.mxu0 0.0
        %1109 = vmatpush1.msra.mxu0 0.0
        %1110 = vmatprep.subr.mxu0 0.0
        %1111 = vmatpush1.msra.mxu0 0.0
        %1112 = vmatprep.subr.mxu0 0.0
        %1113 = vmatpush1.msra.mxu0 0.0
        %1114 = vmatprep.subr.mxu0 0.0
        %1115 = vmatpush1.msra.mxu0 0.0
        %1116 = vmatprep.subr.mxu0 0.0
        %1117 = vmatpush1.msra.mxu0 0.0
        %1118 = vmatprep.subr.mxu0 0.0
        %1119 = vmatpush1.msra.mxu0 0.0
        %1120 = vmatprep.subr.mxu0 0.0
        %1121 = vmatpush1.msra.mxu0 0.0
        %1122 = vmatprep.subr.mxu0 0.0
        %1123 = vmatpush1.msra.mxu0 0.0
        %1124 = vmatprep.subr.mxu0 0.0
        %1125 = vmatpush1.msra.mxu0 0.0
        %1126 = vmatprep.subr.mxu0 0.0
        %1127 = vmatpush1.msra.mxu0 0.0
        %1128 = vmatprep.subr.mxu0 0.0
        %1129 = vmatpush1.msra.mxu0 0.0
        %1130 = vmatprep.subr.mxu0 0.0
        %1131 = vmatpush1.msra.mxu0 0.0
        %1132 = vmatprep.mubr.f32.mxu0 0.0
        %1133 = vmatmul.mubr.f32.gmra.mrb[0].mxu0 %v1066
        %v1134 = vpop.f32.mrb[0].mxu0
        %v1135 = vadd.f32 0.0, %v1134
        %v1136 = vpop.f32.mrb[0].mxu0
        %1137 = vdwg.mxu0
        %1138 = vrot.lane.b32.xlu0 %v460, 32
        %v1139 = vpop.permute.xlu0 %1138
        %1140 = vrot.lane.b32.xlu0 %v551, 32
        %v1141 = vpop.permute.xlu0 %1140
        %v1142 = vsel %vm333, %v1139, 0
        %v1144 = vsel %vm333, %v1141, 0
        %1146 = vmatprep.subr.mxu0 0.0
        %1147 = vmatpush1.xpose.msra.mxu0 %v1144
        %1148 = vmatprep.subr.mxu0 0.0
        %1149 = vmatpush1.xpose.msra.mxu0 0.0
        %1150 = vmatprep.subr.mxu0 0.0
        %1151 = vmatpush1.xpose.msra.mxu0 0.0
        %1152 = vmatprep.subr.mxu0 0.0
        %1153 = vmatpush1.xpose.msra.mxu0 0.0
        %1154 = vmatprep.subr.mxu0 0.0
        %1155 = vmatpush1.xpose.msra.mxu0 0.0
        %1156 = vmatprep.subr.mxu0 0.0
        %1157 = vmatpush1.xpose.msra.mxu0 0.0
        %1158 = vmatprep.subr.mxu0 0.0
        %1159 = vmatpush1.xpose.msra.mxu0 0.0
        %1160 = vmatprep.subr.mxu0 0.0
        %1161 = vmatpush1.xpose.msra.mxu0 0.0
        %1162 = vmatprep.subr.mxu0 0.0
        %1163 = vmatpush1.xpose.msra.mxu0 0.0
        %1164 = vmatprep.subr.mxu0 0.0
        %1165 = vmatpush1.xpose.msra.mxu0 0.0
        %1166 = vmatprep.subr.mxu0 0.0
        %1167 = vmatpush1.xpose.msra.mxu0 0.0
        %1168 = vmatprep.subr.mxu0 0.0
        %1169 = vmatpush1.xpose.msra.mxu0 0.0
        %1170 = vmatprep.subr.mxu0 0.0
        %1171 = vmatpush1.xpose.msra.mxu0 0.0
        %1172 = vmatprep.subr.mxu0 0.0
        %1173 = vmatpush1.xpose.msra.mxu0 0.0
        %1174 = vmatprep.subr.mxu0 0.0
        %1175 = vmatpush1.xpose.msra.mxu0 0.0
        %1176 = vmatprep.subr.mxu0 0.0
        %1177 = vmatpush1.xpose.msra.mxu0 0.0
        %1178 = vmatprep.subr.mxu0 0.0
        %1179 = vmatpush1.xpose.msra.mxu0 0.0
        %1180 = vmatprep.subr.mxu0 0.0
        %1181 = vmatpush1.xpose.msra.mxu0 0.0
        %1182 = vmatprep.subr.mxu0 0.0
        %1183 = vmatpush1.xpose.msra.mxu0 0.0
        %1184 = vmatprep.subr.mxu0 0.0
        %1185 = vmatpush1.xpose.msra.mxu0 0.0
        %1186 = vmatprep.subr.mxu0 0.0
        %1187 = vmatpush1.xpose.msra.mxu0 0.0
        %1188 = vmatprep.subr.mxu0 0.0
        %1189 = vmatpush1.xpose.msra.mxu0 0.0
        %1190 = vmatprep.subr.mxu0 0.0
        %1191 = vmatpush1.xpose.msra.mxu0 0.0
        %1192 = vmatprep.subr.mxu0 0.0
        %1193 = vmatpush1.xpose.msra.mxu0 0.0
        %1194 = vmatprep.subr.mxu0 0.0
        %1195 = vmatpush1.xpose.msra.mxu0 0.0
        %1196 = vmatprep.subr.mxu0 0.0
        %1197 = vmatpush1.xpose.msra.mxu0 0.0
        %1198 = vmatprep.subr.mxu0 0.0
        %1199 = vmatpush1.xpose.msra.mxu0 0.0
        %1200 = vmatprep.subr.mxu0 0.0
        %1201 = vmatpush1.xpose.msra.mxu0 0.0
        %1202 = vmatprep.subr.mxu0 0.0
        %1203 = vmatpush1.xpose.msra.mxu0 0.0
        %1204 = vmatprep.subr.mxu0 0.0
        %1205 = vmatpush1.xpose.msra.mxu0 0.0
        %1206 = vmatprep.subr.mxu0 0.0
        %1207 = vmatpush1.xpose.msra.mxu0 0.0
        %1208 = vmatprep.subr.mxu0 0.0
        %1209 = vmatpush1.xpose.msra.mxu0 0.0
        %1210 = vmatprep.mubr.f32.mxu0 0.0
        %1211 = vmatmul.mubr.f32.gmra.mrb[0].mxu0 %v1142
        %v1212 = vpop.f32.mrb[0].mxu0
        %v1213 = vadd.f32 0.0, %v1212
        %v1214 = vpop.f32.mrb[0].mxu0
        %1215 = vdwg.mxu0
        %v1216 = vsel %vm722, %v1213, -inf
        %1217 = vmax.xlane.f32.xlu0 %v1216
        %v1218 = vpop.xlane.xlu0 %1217
        %v1219 = vsub.f32 %v1213, %v1218
        %v1220 = vmul.f32 %v1219, 1.442695
        %v1221 = vpow.pop %v1220
        %v1222 = vsel %vm722, %v1221, 0.0
        %1223 = vadd.xlane.f32.xlu0 %v1222
        %v1224 = vpop.xlane.xlu0 %1223
        %v1225 = vrcp.pop %v1224
        %v1226 = vmul.f32 %v1221, %v1225
        %1227 = vrot.lane.b32.xlu0 %v636, 32
        %v1228 = vpop.permute.xlu0 %1227
        %v1231 = vsel %vm722, %v1226, 0
        %1233 = vmatprep.subr.mxu0 0.0
        %1234 = vmatpush1.msra.mxu0 %v1228
        %1235 = vmatprep.subr.mxu0 0.0
        %1236 = vmatpush1.msra.mxu0 0.0
        %1237 = vmatprep.subr.mxu0 0.0
        %1238 = vmatpush1.msra.mxu0 0.0
        %1239 = vmatprep.subr.mxu0 0.0
        %1240 = vmatpush1.msra.mxu0 0.0
        %1241 = vmatprep.subr.mxu0 0.0
        %1242 = vmatpush1.msra.mxu0 0.0
        %1243 = vmatprep.subr.mxu0 0.0
        %1244 = vmatpush1.msra.mxu0 0.0
        %1245 = vmatprep.subr.mxu0 0.0
        %1246 = vmatpush1.msra.mxu0 0.0
        %1247 = vmatprep.subr.mxu0 0.0
        %1248 = vmatpush1.msra.mxu0 0.0
        %1249 = vmatprep.subr.mxu0 0.0
        %1250 = vmatpush1.msra.mxu0 0.0
        %1251 = vmatprep.subr.mxu0 0.0
        %1252 = vmatpush1.msra.mxu0 0.0
        %1253 = vmatprep.subr.mxu0 0.0
        %1254 = vmatpush1.msra.mxu0 0.0
        %1255 = vmatprep.subr.mxu0 0.0
        %1256 = vmatpush1.msra.mxu0 0.0
        %1257 = vmatprep.subr.mxu0 0.0
        %1258 = vmatpush1.msra.mxu0 0.0
        %1259 = vmatprep.subr.mxu0 0.0
        %1260 = vmatpush1.msra.mxu0 0.0
        %1261 = vmatprep.subr.mxu0 0.0
        %1262 = vmatpush1.msra.mxu0 0.0
        %1263 = vmatprep.subr.mxu0 0.0
        %1264 = vmatpush1.msra.mxu0 0.0
        %1265 = vmatprep.subr.mxu0 0.0
        %1266 = vmatpush1.msra.mxu0 0.0
        %1267 = vmatprep.subr.mxu0 0.0
        %1268 = vmatpush1.msra.mxu0 0.0
        %1269 = vmatprep.subr.mxu0 0.0
        %1270 = vmatpush1.msra.mxu0 0.0
        %1271 = vmatprep.subr.mxu0 0.0
        %1272 = vmatpush1.msra.mxu0 0.0
        %1273 = vmatprep.subr.mxu0 0.0
        %1274 = vmatpush1.msra.mxu0 0.0
        %1275 = vmatprep.subr.mxu0 0.0
        %1276 = vmatpush1.msra.mxu0 0.0
        %1277 = vmatprep.subr.mxu0 0.0
        %1278 = vmatpush1.msra.mxu0 0.0
        %1279 = vmatprep.subr.mxu0 0.0
        %1280 = vmatpush1.msra.mxu0 0.0
        %1281 = vmatprep.subr.mxu0 0.0
        %1282 = vmatpush1.msra.mxu0 0.0
        %1283 = vmatprep.subr.mxu0 0.0
        %1284 = vmatpush1.msra.mxu0 0.0
        %1285 = vmatprep.subr.mxu0 0.0
        %1286 = vmatpush1.msra.mxu0 0.0
        %1287 = vmatprep.subr.mxu0 0.0
        %1288 = vmatpush1.msra.mxu0 0.0
        %1289 = vmatprep.subr.mxu0 0.0
        %1290 = vmatpush1.msra.mxu0 0.0
        %1291 = vmatprep.subr.mxu0 0.0
        %1292 = vmatpush1.msra.mxu0 0.0
        %1293 = vmatprep.subr.mxu0 0.0
        %1294 = vmatpush1.msra.mxu0 0.0
        %1295 = vmatprep.subr.mxu0 0.0
        %1296 = vmatpush1.msra.mxu0 0.0
        %1297 = vmatprep.mubr.f32.mxu0 0.0
        %1298 = vmatmul.mubr.f32.gmra.mrb[0].mxu0 %v1231
        %v1299 = vpop.f32.mrb[0].mxu0
        %v1300 = vadd.f32 0.0, %v1299
        %v1301 = vpop.f32.mrb[0].mxu0
        %1302 = vdwg.mxu0
        %v1304 = vsel %vm333, %v462, 0
        %v1307 = vsel %vm333, %v553, 0
        %1309 = vmatprep.subr.mxu0 0.0
        %1310 = vmatpush1.xpose.msra.mxu0 %v1307
        %1311 = vmatprep.subr.mxu0 0.0
        %1312 = vmatpush1.xpose.msra.mxu0 0.0
        %1313 = vmatprep.subr.mxu0 0.0
        %1314 = vmatpush1.xpose.msra.mxu0 0.0
        %1315 = vmatprep.subr.mxu0 0.0
        %1316 = vmatpush1.xpose.msra.mxu0 0.0
        %1317 = vmatprep.subr.mxu0 0.0
        %1318 = vmatpush1.xpose.msra.mxu0 0.0
        %1319 = vmatprep.subr.mxu0 0.0
        %1320 = vmatpush1.xpose.msra.mxu0 0.0
        %1321 = vmatprep.subr.mxu0 0.0
        %1322 = vmatpush1.xpose.msra.mxu0 0.0
        %1323 = vmatprep.subr.mxu0 0.0
        %1324 = vmatpush1.xpose.msra.mxu0 0.0
        %1325 = vmatprep.subr.mxu0 0.0
        %1326 = vmatpush1.xpose.msra.mxu0 0.0
        %1327 = vmatprep.subr.mxu0 0.0
        %1328 = vmatpush1.xpose.msra.mxu0 0.0
        %1329 = vmatprep.subr.mxu0 0.0
        %1330 = vmatpush1.xpose.msra.mxu0 0.0
        %1331 = vmatprep.subr.mxu0 0.0
        %1332 = vmatpush1.xpose.msra.mxu0 0.0
        %1333 = vmatprep.subr.mxu0 0.0
        %1334 = vmatpush1.xpose.msra.mxu0 0.0
        %1335 = vmatprep.subr.mxu0 0.0
        %1336 = vmatpush1.xpose.msra.mxu0 0.0
        %1337 = vmatprep.subr.mxu0 0.0
        %1338 = vmatpush1.xpose.msra.mxu0 0.0
        %1339 = vmatprep.subr.mxu0 0.0
        %1340 = vmatpush1.xpose.msra.mxu0 0.0
        %1341 = vmatprep.subr.mxu0 0.0
        %1342 = vmatpush1.xpose.msra.mxu0 0.0
        %1343 = vmatprep.subr.mxu0 0.0
        %1344 = vmatpush1.xpose.msra.mxu0 0.0
        %1345 = vmatprep.subr.mxu0 0.0
        %1346 = vmatpush1.xpose.msra.mxu0 0.0
        %1347 = vmatprep.subr.mxu0 0.0
        %1348 = vmatpush1.xpose.msra.mxu0 0.0
        %1349 = vmatprep.subr.mxu0 0.0
        %1350 = vmatpush1.xpose.msra.mxu0 0.0
        %1351 = vmatprep.subr.mxu0 0.0
        %1352 = vmatpush1.xpose.msra.mxu0 0.0
        %1353 = vmatprep.subr.mxu0 0.0
        %1354 = vmatpush1.xpose.msra.mxu0 0.0
        %1355 = vmatprep.subr.mxu0 0.0
        %1356 = vmatpush1.xpose.msra.mxu0 0.0
        %1357 = vmatprep.subr.mxu0 0.0
        %1358 = vmatpush1.xpose.msra.mxu0 0.0
        %1359 = vmatprep.subr.mxu0 0.0
        %1360 = vmatpush1.xpose.msra.mxu0 0.0
        %1361 = vmatprep.subr.mxu0 0.0
        %1362 = vmatpush1.xpose.msra.mxu0 0.0
        %1363 = vmatprep.subr.mxu0 0.0
        %1364 = vmatpush1.xpose.msra.mxu0 0.0
        %1365 = vmatprep.subr.mxu0 0.0
        %1366 = vmatpush1.xpose.msra.mxu0 0.0
        %1367 = vmatprep.subr.mxu0 0.0
        %1368 = vmatpush1.xpose.msra.mxu0 0.0
        %1369 = vmatprep.subr.mxu0 0.0
        %1370 = vmatpush1.xpose.msra.mxu0 0.0
        %1371 = vmatprep.subr.mxu0 0.0
        %1372 = vmatpush1.xpose.msra.mxu0 0.0
        %1373 = vmatprep.mubr.f32.mxu0 0.0
        %1374 = vmatmul.mubr.f32.gmra.mrb[0].mxu0 %v1304
        %v1375 = vpop.f32.mrb[0].mxu0
        %v1376 = vadd.f32 0.0, %v1375
        %v1377 = vpop.f32.mrb[0].mxu0
        %1378 = vdwg.mxu0
        %v1379 = vsel %vm722, %v1376, -inf
        %1380 = vmax.xlane.f32.xlu0 %v1379
        %v1381 = vpop.xlane.xlu0 %1380
        %v1382 = vsub.f32 %v1376, %v1381
        %v1383 = vmul.f32 %v1382, 1.442695
        %v1384 = vpow.pop %v1383
        %v1385 = vsel %vm722, %v1384, 0.0
        %1386 = vadd.xlane.f32.xlu0 %v1385
        %v1387 = vpop.xlane.xlu0 %1386
        %v1388 = vrcp.pop %v1387
        %v1389 = vmul.f32 %v1384, %v1388
        %v1391 = vsel %vm722, %v1389, 0
        %1393 = vmatprep.subr.mxu0 0.0
        %1394 = vmatpush1.msra.mxu0 %v638
        %1395 = vmatprep.subr.mxu0 0.0
        %1396 = vmatpush1.msra.mxu0 0.0
        %1397 = vmatprep.subr.mxu0 0.0
        %1398 = vmatpush1.msra.mxu0 0.0
        %1399 = vmatprep.subr.mxu0 0.0
        %1400 = vmatpush1.msra.mxu0 0.0
        %1401 = vmatprep.subr.mxu0 0.0
        %1402 = vmatpush1.msra.mxu0 0.0
        %1403 = vmatprep.subr.mxu0 0.0
        %1404 = vmatpush1.msra.mxu0 0.0
        %1405 = vmatprep.subr.mxu0 0.0
        %1406 = vmatpush1.msra.mxu0 0.0
        %1407 = vmatprep.subr.mxu0 0.0
        %1408 = vmatpush1.msra.mxu0 0.0
        %1409 = vmatprep.subr.mxu0 0.0
        %1410 = vmatpush1.msra.mxu0 0.0
        %1411 = vmatprep.subr.mxu0 0.0
        %1412 = vmatpush1.msra.mxu0 0.0
        %1413 = vmatprep.subr.mxu0 0.0
        %1414 = vmatpush1.msra.mxu0 0.0
        %1415 = vmatprep.subr.mxu0 0.0
        %1416 = vmatpush1.msra.mxu0 0.0
        %1417 = vmatprep.subr.mxu0 0.0
        %1418 = vmatpush1.msra.mxu0 0.0
        %1419 = vmatprep.subr.mxu0 0.0
        %1420 = vmatpush1.msra.mxu0 0.0
        %1421 = vmatprep.subr.mxu0 0.0
        %1422 = vmatpush1.msra.mxu0 0.0
        %1423 = vmatprep.subr.mxu0 0.0
        %1424 = vmatpush1.msra.mxu0 0.0
        %1425 = vmatprep.subr.mxu0 0.0
        %1426 = vmatpush1.msra.mxu0 0.0
        %1427 = vmatprep.subr.mxu0 0.0
        %1428 = vmatpush1.msra.mxu0 0.0
        %1429 = vmatprep.subr.mxu0 0.0
        %1430 = vmatpush1.msra.mxu0 0.0
        %1431 = vmatprep.subr.mxu0 0.0
        %1432 = vmatpush1.msra.mxu0 0.0
        %1433 = vmatprep.subr.mxu0 0.0
        %1434 = vmatpush1.msra.mxu0 0.0
        %1435 = vmatprep.subr.mxu0 0.0
        %1436 = vmatpush1.msra.mxu0 0.0
        %1437 = vmatprep.subr.mxu0 0.0
        %1438 = vmatpush1.msra.mxu0 0.0
        %1439 = vmatprep.subr.mxu0 0.0
        %1440 = vmatpush1.msra.mxu0 0.0
        %1441 = vmatprep.subr.mxu0 0.0
        %1442 = vmatpush1.msra.mxu0 0.0
        %1443 = vmatprep.subr.mxu0 0.0
        %1444 = vmatpush1.msra.mxu0 0.0
        %1445 = vmatprep.subr.mxu0 0.0
        %1446 = vmatpush1.msra.mxu0 0.0
        %1447 = vmatprep.subr.mxu0 0.0
        %1448 = vmatpush1.msra.mxu0 0.0
        %1449 = vmatprep.subr.mxu0 0.0
        %1450 = vmatpush1.msra.mxu0 0.0
        %1451 = vmatprep.subr.mxu0 0.0
        %1452 = vmatpush1.msra.mxu0 0.0
        %1453 = vmatprep.subr.mxu0 0.0
        %1454 = vmatpush1.msra.mxu0 0.0
        %1455 = vmatprep.subr.mxu0 0.0
        %1456 = vmatpush1.msra.mxu0 0.0
        %1457 = vmatprep.mubr.f32.mxu0 0.0
        %1458 = vmatmul.mubr.f32.gmra.mrb[0].mxu0 %v1391
        %v1459 = vpop.f32.mrb[0].mxu0
        %v1460 = vadd.f32 0.0, %v1459
        %v1461 = vpop.f32.mrb[0].mxu0
        %1462 = vdwg.mxu0
        %1463 = vrot.lane.b32.xlu0 %v462, 96
        %v1464 = vpop.permute.xlu0 %1463
        %1465 = vrot.lane.b32.xlu0 %v553, 96
        %v1466 = vpop.permute.xlu0 %1465
        %v1467 = vsel %vm333, %v1464, 0
        %v1469 = vsel %vm333, %v1466, 0
        %1471 = vmatprep.subr.mxu0 0.0
        %1472 = vmatpush1.xpose.msra.mxu0 %v1469
        %1473 = vmatprep.subr.mxu0 0.0
        %1474 = vmatpush1.xpose.msra.mxu0 0.0
        %1475 = vmatprep.subr.mxu0 0.0
        %1476 = vmatpush1.xpose.msra.mxu0 0.0
        %1477 = vmatprep.subr.mxu0 0.0
        %1478 = vmatpush1.xpose.msra.mxu0 0.0
        %1479 = vmatprep.subr.mxu0 0.0
        %1480 = vmatpush1.xpose.msra.mxu0 0.0
        %1481 = vmatprep.subr.mxu0 0.0
        %1482 = vmatpush1.xpose.msra.mxu0 0.0
        %1483 = vmatprep.subr.mxu0 0.0
        %1484 = vmatpush1.xpose.msra.mxu0 0.0
        %1485 = vmatprep.subr.mxu0 0.0
        %1486 = vmatpush1.xpose.msra.mxu0 0.0
        %1487 = vmatprep.subr.mxu0 0.0
        %1488 = vmatpush1.xpose.msra.mxu0 0.0
        %1489 = vmatprep.subr.mxu0 0.0
        %1490 = vmatpush1.xpose.msra.mxu0 0.0
        %1491 = vmatprep.subr.mxu0 0.0
        %1492 = vmatpush1.xpose.msra.mxu0 0.0
        %1493 = vmatprep.subr.mxu0 0.0
        %1494 = vmatpush1.xpose.msra.mxu0 0.0
        %1495 = vmatprep.subr.mxu0 0.0
        %1496 = vmatpush1.xpose.msra.mxu0 0.0
        %1497 = vmatprep.subr.mxu0 0.0
        %1498 = vmatpush1.xpose.msra.mxu0 0.0
        %1499 = vmatprep.subr.mxu0 0.0
        %1500 = vmatpush1.xpose.msra.mxu0 0.0
        %1501 = vmatprep.subr.mxu0 0.0
        %1502 = vmatpush1.xpose.msra.mxu0 0.0
        %1503 = vmatprep.subr.mxu0 0.0
        %1504 = vmatpush1.xpose.msra.mxu0 0.0
        %1505 = vmatprep.subr.mxu0 0.0
        %1506 = vmatpush1.xpose.msra.mxu0 0.0
        %1507 = vmatprep.subr.mxu0 0.0
        %1508 = vmatpush1.xpose.msra.mxu0 0.0
        %1509 = vmatprep.subr.mxu0 0.0
        %1510 = vmatpush1.xpose.msra.mxu0 0.0
        %1511 = vmatprep.subr.mxu0 0.0
        %1512 = vmatpush1.xpose.msra.mxu0 0.0
        %1513 = vmatprep.subr.mxu0 0.0
        %1514 = vmatpush1.xpose.msra.mxu0 0.0
        %1515 = vmatprep.subr.mxu0 0.0
        %1516 = vmatpush1.xpose.msra.mxu0 0.0
        %1517 = vmatprep.subr.mxu0 0.0
        %1518 = vmatpush1.xpose.msra.mxu0 0.0
        %1519 = vmatprep.subr.mxu0 0.0
        %1520 = vmatpush1.xpose.msra.mxu0 0.0
        %1521 = vmatprep.subr.mxu0 0.0
        %1522 = vmatpush1.xpose.msra.mxu0 0.0
        %1523 = vmatprep.subr.mxu0 0.0
        %1524 = vmatpush1.xpose.msra.mxu0 0.0
        %1525 = vmatprep.subr.mxu0 0.0
        %1526 = vmatpush1.xpose.msra.mxu0 0.0
        %1527 = vmatprep.subr.mxu0 0.0
        %1528 = vmatpush1.xpose.msra.mxu0 0.0
        %1529 = vmatprep.subr.mxu0 0.0
        %1530 = vmatpush1.xpose.msra.mxu0 0.0
        %1531 = vmatprep.subr.mxu0 0.0
        %1532 = vmatpush1.xpose.msra.mxu0 0.0
        %1533 = vmatprep.subr.mxu0 0.0
        %1534 = vmatpush1.xpose.msra.mxu0 0.0
        %1535 = vmatprep.mubr.f32.mxu0 0.0
        %1536 = vmatmul.mubr.f32.gmra.mrb[0].mxu0 %v1467
        %v1537 = vpop.f32.mrb[0].mxu0
        %v1538 = vadd.f32 0.0, %v1537
        %v1539 = vpop.f32.mrb[0].mxu0
        %1540 = vdwg.mxu0
        %v1541 = vsel %vm722, %v1538, -inf
        %1542 = vmax.xlane.f32.xlu0 %v1541
        %v1543 = vpop.xlane.xlu0 %1542
        %v1544 = vsub.f32 %v1538, %v1543
        %v1545 = vmul.f32 %v1544, 1.442695
        %v1546 = vpow.pop %v1545
        %v1547 = vsel %vm722, %v1546, 0.0
        %1548 = vadd.xlane.f32.xlu0 %v1547
        %v1549 = vpop.xlane.xlu0 %1548
        %v1550 = vrcp.pop %v1549
        %v1551 = vmul.f32 %v1546, %v1550
        %1553 = vrot.lane.b32.xlu0 %v638, 96
        %v1554 = vpop.permute.xlu0 %1553
        %v1557 = vsel %vm722, %v1551, 0
        %1559 = vmatprep.subr.mxu0 0.0
        %1560 = vmatpush1.msra.mxu0 %v1554
        %1561 = vmatprep.subr.mxu0 0.0
        %1562 = vmatpush1.msra.mxu0 0.0
        %1563 = vmatprep.subr.mxu0 0.0
        %1564 = vmatpush1.msra.mxu0 0.0
        %1565 = vmatprep.subr.mxu0 0.0
        %1566 = vmatpush1.msra.mxu0 0.0
        %1567 = vmatprep.subr.mxu0 0.0
        %1568 = vmatpush1.msra.mxu0 0.0
        %1569 = vmatprep.subr.mxu0 0.0
        %1570 = vmatpush1.msra.mxu0 0.0
        %1571 = vmatprep.subr.mxu0 0.0
        %1572 = vmatpush1.msra.mxu0 0.0
        %1573 = vmatprep.subr.mxu0 0.0
        %1574 = vmatpush1.msra.mxu0 0.0
        %1575 = vmatprep.subr.mxu0 0.0
        %1576 = vmatpush1.msra.mxu0 0.0
        %1577 = vmatprep.subr.mxu0 0.0
        %1578 = vmatpush1.msra.mxu0 0.0
        %1579 = vmatprep.subr.mxu0 0.0
        %1580 = vmatpush1.msra.mxu0 0.0
        %1581 = vmatprep.subr.mxu0 0.0
        %1582 = vmatpush1.msra.mxu0 0.0
        %1583 = vmatprep.subr.mxu0 0.0
        %1584 = vmatpush1.msra.mxu0 0.0
        %1585 = vmatprep.subr.mxu0 0.0
        %1586 = vmatpush1.msra.mxu0 0.0
        %1587 = vmatprep.subr.mxu0 0.0
        %1588 = vmatpush1.msra.mxu0 0.0
        %1589 = vmatprep.subr.mxu0 0.0
        %1590 = vmatpush1.msra.mxu0 0.0
        %1591 = vmatprep.subr.mxu0 0.0
        %1592 = vmatpush1.msra.mxu0 0.0
        %1593 = vmatprep.subr.mxu0 0.0
        %1594 = vmatpush1.msra.mxu0 0.0
        %1595 = vmatprep.subr.mxu0 0.0
        %1596 = vmatpush1.msra.mxu0 0.0
        %1597 = vmatprep.subr.mxu0 0.0
        %1598 = vmatpush1.msra.mxu0 0.0
        %1599 = vmatprep.subr.mxu0 0.0
        %1600 = vmatpush1.msra.mxu0 0.0
        %1601 = vmatprep.subr.mxu0 0.0
        %1602 = vmatpush1.msra.mxu0 0.0
        %1603 = vmatprep.subr.mxu0 0.0
        %1604 = vmatpush1.msra.mxu0 0.0
        %1605 = vmatprep.subr.mxu0 0.0
        %1606 = vmatpush1.msra.mxu0 0.0
        %1607 = vmatprep.subr.mxu0 0.0
        %1608 = vmatpush1.msra.mxu0 0.0
        %1609 = vmatprep.subr.mxu0 0.0
        %1610 = vmatpush1.msra.mxu0 0.0
        %1611 = vmatprep.subr.mxu0 0.0
        %1612 = vmatpush1.msra.mxu0 0.0
        %1613 = vmatprep.subr.mxu0 0.0
        %1614 = vmatpush1.msra.mxu0 0.0
        %1615 = vmatprep.subr.mxu0 0.0
        %1616 = vmatpush1.msra.mxu0 0.0
        %1617 = vmatprep.subr.mxu0 0.0
        %1618 = vmatpush1.msra.mxu0 0.0
        %1619 = vmatprep.subr.mxu0 0.0
        %1620 = vmatpush1.msra.mxu0 0.0
        %1621 = vmatprep.subr.mxu0 0.0
        %1622 = vmatpush1.msra.mxu0 0.0
        %1623 = vmatprep.mubr.f32.mxu0 0.0
        %1624 = vmatmul.mubr.f32.gmra.mrb[0].mxu0 %v1557
        %v1625 = vpop.f32.mrb[0].mxu0
        %v1626 = vadd.f32 0.0, %v1625
        %v1627 = vpop.f32.mrb[0].mxu0
        %1628 = vdwg.mxu0
        %1629 = vrot.lane.b32.xlu0 %v462, 64
        %v1630 = vpop.permute.xlu0 %1629
        %1631 = vrot.lane.b32.xlu0 %v553, 64
        %v1632 = vpop.permute.xlu0 %1631
        %v1633 = vsel %vm333, %v1630, 0
        %v1635 = vsel %vm333, %v1632, 0
        %1637 = vmatprep.subr.mxu0 0.0
        %1638 = vmatpush1.xpose.msra.mxu0 %v1635
        %1639 = vmatprep.subr.mxu0 0.0
        %1640 = vmatpush1.xpose.msra.mxu0 0.0
        %1641 = vmatprep.subr.mxu0 0.0
        %1642 = vmatpush1.xpose.msra.mxu0 0.0
        %1643 = vmatprep.subr.mxu0 0.0
        %1644 = vmatpush1.xpose.msra.mxu0 0.0
        %1645 = vmatprep.subr.mxu0 0.0
        %1646 = vmatpush1.xpose.msra.mxu0 0.0
        %1647 = vmatprep.subr.mxu0 0.0
        %1648 = vmatpush1.xpose.msra.mxu0 0.0
        %1649 = vmatprep.subr.mxu0 0.0
        %1650 = vmatpush1.xpose.msra.mxu0 0.0
        %1651 = vmatprep.subr.mxu0 0.0
        %1652 = vmatpush1.xpose.msra.mxu0 0.0
        %1653 = vmatprep.subr.mxu0 0.0
        %1654 = vmatpush1.xpose.msra.mxu0 0.0
        %1655 = vmatprep.subr.mxu0 0.0
        %1656 = vmatpush1.xpose.msra.mxu0 0.0
        %1657 = vmatprep.subr.mxu0 0.0
        %1658 = vmatpush1.xpose.msra.mxu0 0.0
        %1659 = vmatprep.subr.mxu0 0.0
        %1660 = vmatpush1.xpose.msra.mxu0 0.0
        %1661 = vmatprep.subr.mxu0 0.0
        %1662 = vmatpush1.xpose.msra.mxu0 0.0
        %1663 = vmatprep.subr.mxu0 0.0
        %1664 = vmatpush1.xpose.msra.mxu0 0.0
        %1665 = vmatprep.subr.mxu0 0.0
        %1666 = vmatpush1.xpose.msra.mxu0 0.0
        %1667 = vmatprep.subr.mxu0 0.0
        %1668 = vmatpush1.xpose.msra.mxu0 0.0
        %1669 = vmatprep.subr.mxu0 0.0
        %1670 = vmatpush1.xpose.msra.mxu0 0.0
        %1671 = vmatprep.subr.mxu0 0.0
        %1672 = vmatpush1.xpose.msra.mxu0 0.0
        %1673 = vmatprep.subr.mxu0 0.0
        %1674 = vmatpush1.xpose.msra.mxu0 0.0
        %1675 = vmatprep.subr.mxu0 0.0
        %1676 = vmatpush1.xpose.msra.mxu0 0.0
        %1677 = vmatprep.subr.mxu0 0.0
        %1678 = vmatpush1.xpose.msra.mxu0 0.0
        %1679 = vmatprep.subr.mxu0 0.0
        %1680 = vmatpush1.xpose.msra.mxu0 0.0
        %1681 = vmatprep.subr.mxu0 0.0
        %1682 = vmatpush1.xpose.msra.mxu0 0.0
        %1683 = vmatprep.subr.mxu0 0.0
        %1684 = vmatpush1.xpose.msra.mxu0 0.0
        %1685 = vmatprep.subr.mxu0 0.0
        %1686 = vmatpush1.xpose.msra.mxu0 0.0
        %1687 = vmatprep.subr.mxu0 0.0
        %1688 = vmatpush1.xpose.msra.mxu0 0.0
        %1689 = vmatprep.subr.mxu0 0.0
        %1690 = vmatpush1.xpose.msra.mxu0 0.0
        %1691 = vmatprep.subr.mxu0 0.0
        %1692 = vmatpush1.xpose.msra.mxu0 0.0
        %1693 = vmatprep.subr.mxu0 0.0
        %1694 = vmatpush1.xpose.msra.mxu0 0.0
        %1695 = vmatprep.subr.mxu0 0.0
        %1696 = vmatpush1.xpose.msra.mxu0 0.0
        %1697 = vmatprep.subr.mxu0 0.0
        %1698 = vmatpush1.xpose.msra.mxu0 0.0
        %1699 = vmatprep.subr.mxu0 0.0
        %1700 = vmatpush1.xpose.msra.mxu0 0.0
        %1701 = vmatprep.mubr.f32.mxu0 0.0
        %1702 = vmatmul.mubr.f32.gmra.mrb[0].mxu0 %v1633
        %v1703 = vpop.f32.mrb[0].mxu0
        %v1704 = vadd.f32 0.0, %v1703
        %v1705 = vpop.f32.mrb[0].mxu0
        %1706 = vdwg.mxu0
        %v1707 = vsel %vm722, %v1704, -inf
        %1708 = vmax.xlane.f32.xlu0 %v1707
        %v1709 = vpop.xlane.xlu0 %1708
        %v1710 = vsub.f32 %v1704, %v1709
        %v1711 = vmul.f32 %v1710, 1.442695
        %v1712 = vpow.pop %v1711
        %v1713 = vsel %vm722, %v1712, 0.0
        %1714 = vadd.xlane.f32.xlu0 %v1713
        %v1715 = vpop.xlane.xlu0 %1714
        %v1716 = vrcp.pop %v1715
        %v1717 = vmul.f32 %v1712, %v1716
        %1718 = vrot.lane.b32.xlu0 %v638, 64
        %v1719 = vpop.permute.xlu0 %1718
        %v1722 = vsel %vm722, %v1717, 0
        %1724 = vmatprep.subr.mxu0 0.0
        %1725 = vmatpush1.msra.mxu0 %v1719
        %1726 = vmatprep.subr.mxu0 0.0
        %1727 = vmatpush1.msra.mxu0 0.0
        %1728 = vmatprep.subr.mxu0 0.0
        %1729 = vmatpush1.msra.mxu0 0.0
        %1730 = vmatprep.subr.mxu0 0.0
        %1731 = vmatpush1.msra.mxu0 0.0
        %1732 = vmatprep.subr.mxu0 0.0
        %1733 = vmatpush1.msra.mxu0 0.0
        %1734 = vmatprep.subr.mxu0 0.0
        %1735 = vmatpush1.msra.mxu0 0.0
        %1736 = vmatprep.subr.mxu0 0.0
        %1737 = vmatpush1.msra.mxu0 0.0
        %1738 = vmatprep.subr.mxu0 0.0
        %1739 = vmatpush1.msra.mxu0 0.0
        %1740 = vmatprep.subr.mxu0 0.0
        %1741 = vmatpush1.msra.mxu0 0.0
        %1742 = vmatprep.subr.mxu0 0.0
        %1743 = vmatpush1.msra.mxu0 0.0
        %1744 = vmatprep.subr.mxu0 0.0
        %1745 = vmatpush1.msra.mxu0 0.0
        %1746 = vmatprep.subr.mxu0 0.0
        %1747 = vmatpush1.msra.mxu0 0.0
        %1748 = vmatprep.subr.mxu0 0.0
        %1749 = vmatpush1.msra.mxu0 0.0
        %1750 = vmatprep.subr.mxu0 0.0
        %1751 = vmatpush1.msra.mxu0 0.0
        %1752 = vmatprep.subr.mxu0 0.0
        %1753 = vmatpush1.msra.mxu0 0.0
        %1754 = vmatprep.subr.mxu0 0.0
        %1755 = vmatpush1.msra.mxu0 0.0
        %1756 = vmatprep.subr.mxu0 0.0
        %1757 = vmatpush1.msra.mxu0 0.0
        %1758 = vmatprep.subr.mxu0 0.0
        %1759 = vmatpush1.msra.mxu0 0.0
        %1760 = vmatprep.subr.mxu0 0.0
        %1761 = vmatpush1.msra.mxu0 0.0
        %1762 = vmatprep.subr.mxu0 0.0
        %1763 = vmatpush1.msra.mxu0 0.0
        %1764 = vmatprep.subr.mxu0 0.0
        %1765 = vmatpush1.msra.mxu0 0.0
        %1766 = vmatprep.subr.mxu0 0.0
        %1767 = vmatpush1.msra.mxu0 0.0
        %1768 = vmatprep.subr.mxu0 0.0
        %1769 = vmatpush1.msra.mxu0 0.0
        %1770 = vmatprep.subr.mxu0 0.0
        %1771 = vmatpush1.msra.mxu0 0.0
        %1772 = vmatprep.subr.mxu0 0.0
        %1773 = vmatpush1.msra.mxu0 0.0
        %1774 = vmatprep.subr.mxu0 0.0
        %1775 = vmatpush1.msra.mxu0 0.0
        %1776 = vmatprep.subr.mxu0 0.0
        %1777 = vmatpush1.msra.mxu0 0.0
        %1778 = vmatprep.subr.mxu0 0.0
        %1779 = vmatpush1.msra.mxu0 0.0
        %1780 = vmatprep.subr.mxu0 0.0
        %1781 = vmatpush1.msra.mxu0 0.0
        %1782 = vmatprep.subr.mxu0 0.0
        %1783 = vmatpush1.msra.mxu0 0.0
        %1784 = vmatprep.subr.mxu0 0.0
        %1785 = vmatpush1.msra.mxu0 0.0
        %1786 = vmatprep.subr.mxu0 0.0
        %1787 = vmatpush1.msra.mxu0 0.0
        %1788 = vmatprep.mubr.f32.mxu0 0.0
        %1789 = vmatmul.mubr.f32.gmra.mrb[0].mxu0 %v1722
        %v1790 = vpop.f32.mrb[0].mxu0
        %v1791 = vadd.f32 0.0, %v1790
        %v1792 = vpop.f32.mrb[0].mxu0
        %1793 = vdwg.mxu0
        %1794 = vrot.lane.b32.xlu0 %v462, 32
        %v1795 = vpop.permute.xlu0 %1794
        %1796 = vrot.lane.b32.xlu0 %v553, 32
        %v1797 = vpop.permute.xlu0 %1796
        %v1798 = vsel %vm333, %v1795, 0
        %v1800 = vsel %vm333, %v1797, 0
        %1802 = vmatprep.subr.mxu0 0.0
        %1803 = vmatpush1.xpose.msra.mxu0 %v1800
        %1804 = vmatprep.subr.mxu0 0.0
        %1805 = vmatpush1.xpose.msra.mxu0 0.0
        %1806 = vmatprep.subr.mxu0 0.0
        %1807 = vmatpush1.xpose.msra.mxu0 0.0
        %1808 = vmatprep.subr.mxu0 0.0
        %1809 = vmatpush1.xpose.msra.mxu0 0.0
        %1810 = vmatprep.subr.mxu0 0.0
        %1811 = vmatpush1.xpose.msra.mxu0 0.0
        %1812 = vmatprep.subr.mxu0 0.0
        %1813 = vmatpush1.xpose.msra.mxu0 0.0
        %1814 = vmatprep.subr.mxu0 0.0
        %1815 = vmatpush1.xpose.msra.mxu0 0.0
        %1816 = vmatprep.subr.mxu0 0.0
        %1817 = vmatpush1.xpose.msra.mxu0 0.0
        %1818 = vmatprep.subr.mxu0 0.0
        %1819 = vmatpush1.xpose.msra.mxu0 0.0
        %1820 = vmatprep.subr.mxu0 0.0
        %1821 = vmatpush1.xpose.msra.mxu0 0.0
        %1822 = vmatprep.subr.mxu0 0.0
        %1823 = vmatpush1.xpose.msra.mxu0 0.0
        %1824 = vmatprep.subr.mxu0 0.0
        %1825 = vmatpush1.xpose.msra.mxu0 0.0
        %1826 = vmatprep.subr.mxu0 0.0
        %1827 = vmatpush1.xpose.msra.mxu0 0.0
        %1828 = vmatprep.subr.mxu0 0.0
        %1829 = vmatpush1.xpose.msra.mxu0 0.0
        %1830 = vmatprep.subr.mxu0 0.0
        %1831 = vmatpush1.xpose.msra.mxu0 0.0
        %1832 = vmatprep.subr.mxu0 0.0
        %1833 = vmatpush1.xpose.msra.mxu0 0.0
        %1834 = vmatprep.subr.mxu0 0.0
        %1835 = vmatpush1.xpose.msra.mxu0 0.0
        %1836 = vmatprep.subr.mxu0 0.0
        %1837 = vmatpush1.xpose.msra.mxu0 0.0
        %1838 = vmatprep.subr.mxu0 0.0
        %1839 = vmatpush1.xpose.msra.mxu0 0.0
        %1840 = vmatprep.subr.mxu0 0.0
        %1841 = vmatpush1.xpose.msra.mxu0 0.0
        %1842 = vmatprep.subr.mxu0 0.0
        %1843 = vmatpush1.xpose.msra.mxu0 0.0
        %1844 = vmatprep.subr.mxu0 0.0
        %1845 = vmatpush1.xpose.msra.mxu0 0.0
        %1846 = vmatprep.subr.mxu0 0.0
        %1847 = vmatpush1.xpose.msra.mxu0 0.0
        %1848 = vmatprep.subr.mxu0 0.0
        %1849 = vmatpush1.xpose.msra.mxu0 0.0
        %1850 = vmatprep.subr.mxu0 0.0
        %1851 = vmatpush1.xpose.msra.mxu0 0.0
        %1852 = vmatprep.subr.mxu0 0.0
        %1853 = vmatpush1.xpose.msra.mxu0 0.0
        %1854 = vmatprep.subr.mxu0 0.0
        %1855 = vmatpush1.xpose.msra.mxu0 0.0
        %1856 = vmatprep.subr.mxu0 0.0
        %1857 = vmatpush1.xpose.msra.mxu0 0.0
        %1858 = vmatprep.subr.mxu0 0.0
        %1859 = vmatpush1.xpose.msra.mxu0 0.0
        %1860 = vmatprep.subr.mxu0 0.0
        %1861 = vmatpush1.xpose.msra.mxu0 0.0
        %1862 = vmatprep.subr.mxu0 0.0
        %1863 = vmatpush1.xpose.msra.mxu0 0.0
        %1864 = vmatprep.subr.mxu0 0.0
        %1865 = vmatpush1.xpose.msra.mxu0 0.0
        %1866 = vmatprep.mubr.f32.mxu0 0.0
        %1867 = vmatmul.mubr.f32.gmra.mrb[0].mxu0 %v1798
        %v1868 = vpop.f32.mrb[0].mxu0
        %v1869 = vadd.f32 0.0, %v1868
        %v1870 = vpop.f32.mrb[0].mxu0
        %1871 = vdwg.mxu0
        %v1872 = vsel %vm722, %v1869, -inf
        %1873 = vmax.xlane.f32.xlu0 %v1872
        %v1874 = vpop.xlane.xlu0 %1873
        %v1875 = vsub.f32 %v1869, %v1874
        %v1876 = vmul.f32 %v1875, 1.442695
        %v1877 = vpow.pop %v1876
        %v1878 = vsel %vm722, %v1877, 0.0
        %1879 = vadd.xlane.f32.xlu0 %v1878
        %v1880 = vpop.xlane.xlu0 %1879
        %v1881 = vrcp.pop %v1880
        %v1882 = vmul.f32 %v1877, %v1881
        %1883 = vrot.lane.b32.xlu0 %v638, 32
        %v1884 = vpop.permute.xlu0 %1883
        %v1887 = vsel %vm722, %v1882, 0
        %1889 = vmatprep.subr.mxu0 0.0
        %1890 = vmatpush1.msra.mxu0 %v1884
        %1891 = vmatprep.subr.mxu0 0.0
        %1892 = vmatpush1.msra.mxu0 0.0
        %1893 = vmatprep.subr.mxu0 0.0
        %1894 = vmatpush1.msra.mxu0 0.0
        %1895 = vmatprep.subr.mxu0 0.0
        %1896 = vmatpush1.msra.mxu0 0.0
        %1897 = vmatprep.subr.mxu0 0.0
        %1898 = vmatpush1.msra.mxu0 0.0
        %1899 = vmatprep.subr.mxu0 0.0
        %1900 = vmatpush1.msra.mxu0 0.0
        %1901 = vmatprep.subr.mxu0 0.0
        %1902 = vmatpush1.msra.mxu0 0.0
        %1903 = vmatprep.subr.mxu0 0.0
        %1904 = vmatpush1.msra.mxu0 0.0
        %1905 = vmatprep.subr.mxu0 0.0
        %1906 = vmatpush1.msra.mxu0 0.0
        %1907 = vmatprep.subr.mxu0 0.0
        %1908 = vmatpush1.msra.mxu0 0.0
        %1909 = vmatprep.subr.mxu0 0.0
        %1910 = vmatpush1.msra.mxu0 0.0
        %1911 = vmatprep.subr.mxu0 0.0
        %1912 = vmatpush1.msra.mxu0 0.0
        %1913 = vmatprep.subr.mxu0 0.0
        %1914 = vmatpush1.msra.mxu0 0.0
        %1915 = vmatprep.subr.mxu0 0.0
        %1916 = vmatpush1.msra.mxu0 0.0
        %1917 = vmatprep.subr.mxu0 0.0
        %1918 = vmatpush1.msra.mxu0 0.0
        %1919 = vmatprep.subr.mxu0 0.0
        %1920 = vmatpush1.msra.mxu0 0.0
        %1921 = vmatprep.subr.mxu0 0.0
        %1922 = vmatpush1.msra.mxu0 0.0
        %1923 = vmatprep.subr.mxu0 0.0
        %1924 = vmatpush1.msra.mxu0 0.0
        %1925 = vmatprep.subr.mxu0 0.0
        %1926 = vmatpush1.msra.mxu0 0.0
        %1927 = vmatprep.subr.mxu0 0.0
        %1928 = vmatpush1.msra.mxu0 0.0
        %1929 = vmatprep.subr.mxu0 0.0
        %1930 = vmatpush1.msra.mxu0 0.0
        %1931 = vmatprep.subr.mxu0 0.0
        %1932 = vmatpush1.msra.mxu0 0.0
        %1933 = vmatprep.subr.mxu0 0.0
        %1934 = vmatpush1.msra.mxu0 0.0
        %1935 = vmatprep.subr.mxu0 0.0
        %1936 = vmatpush1.msra.mxu0 0.0
        %1937 = vmatprep.subr.mxu0 0.0
        %1938 = vmatpush1.msra.mxu0 0.0
        %1939 = vmatprep.subr.mxu0 0.0
        %1940 = vmatpush1.msra.mxu0 0.0
        %1941 = vmatprep.subr.mxu0 0.0
        %1942 = vmatpush1.msra.mxu0 0.0
        %1943 = vmatprep.subr.mxu0 0.0
        %1944 = vmatpush1.msra.mxu0 0.0
        %1945 = vmatprep.subr.mxu0 0.0
        %1946 = vmatpush1.msra.mxu0 0.0
        %1947 = vmatprep.subr.mxu0 0.0
        %1948 = vmatpush1.msra.mxu0 0.0
        %1949 = vmatprep.subr.mxu0 0.0
        %1950 = vmatpush1.msra.mxu0 0.0
        %1951 = vmatprep.subr.mxu0 0.0
        %1952 = vmatpush1.msra.mxu0 0.0
        %1953 = vmatprep.mubr.f32.mxu0 0.0
        %1954 = vmatmul.mubr.f32.gmra.mrb[0].mxu0 %v1887
        %v1955 = vpop.f32.mrb[0].mxu0
        %v1956 = vadd.f32 0.0, %v1955
        %v1957 = vpop.f32.mrb[0].mxu0
        %1958 = vdwg.mxu0
        %1960 = vrot.lane.b32.xlu0 %v970, 32
        %v1961 = vpop.permute.xlu0 %1960
        %1964 = vrot.lane.b32.xlu0 %v1135, 64
        %v1965 = vpop.permute.xlu0 %1964
        %1968 = vrot.lane.b32.xlu0 %v1300, 96
        %v1969 = vpop.permute.xlu0 %1968
        %1972 = vrot.lane.b32.xlu0 %v1626, 32
        %v1973 = vpop.permute.xlu0 %1972
        %1976 = vrot.lane.b32.xlu0 %v1791, 64
        %v1977 = vpop.permute.xlu0 %1976
        %1980 = vrot.lane.b32.xlu0 %v1956, 96
        %v1981 = vpop.permute.xlu0 %1980
        %v1983 = vsel %vm333, %v804, %v1961
        %vm1984 = vcmask 523264
        %v1985 = vsel %vm1984, %v1983, %v1965
        %vm1986 = vcmask 785408
        %v1987 = vsel %vm1986, %v1985, %v1969
        %v1988 = vsel %vm333, %v1460, %v1973
        %v1989 = vsel %vm1984, %v1988, %v1977
        %v1990 = vsel %vm1986, %v1989, %v1981
        %v1992 = vsel %vm333, %v466, 0
        %v1995 = vsel %vm333, %v557, 0
        %1997 = vmatprep.subr.mxu0 0.0
        %1998 = vmatpush1.xpose.msra.mxu0 %v1995
        %1999 = vmatprep.subr.mxu0 0.0
        %2000 = vmatpush1.xpose.msra.mxu0 0.0
        %2001 = vmatprep.subr.mxu0 0.0
        %2002 = vmatpush1.xpose.msra.mxu0 0.0
        %2003 = vmatprep.subr.mxu0 0.0
        %2004 = vmatpush1.xpose.msra.mxu0 0.0
        %2005 = vmatprep.subr.mxu0 0.0
        %2006 = vmatpush1.xpose.msra.mxu0 0.0
        %2007 = vmatprep.subr.mxu0 0.0
        %2008 = vmatpush1.xpose.msra.mxu0 0.0
        %2009 = vmatprep.subr.mxu0 0.0
        %2010 = vmatpush1.xpose.msra.mxu0 0.0
        %2011 = vmatprep.subr.mxu0 0.0
        %2012 = vmatpush1.xpose.msra.mxu0 0.0
        %2013 = vmatprep.subr.mxu0 0.0
        %2014 = vmatpush1.xpose.msra.mxu0 0.0
        %2015 = vmatprep.subr.mxu0 0.0
        %2016 = vmatpush1.xpose.msra.mxu0 0.0
        %2017 = vmatprep.subr.mxu0 0.0
        %2018 = vmatpush1.xpose.msra.mxu0 0.0
        %2019 = vmatprep.subr.mxu0 0.0
        %2020 = vmatpush1.xpose.msra.mxu0 0.0
        %2021 = vmatprep.subr.mxu0 0.0
        %2022 = vmatpush1.xpose.msra.mxu0 0.0
        %2023 = vmatprep.subr.mxu0 0.0
        %2024 = vmatpush1.xpose.msra.mxu0 0.0
        %2025 = vmatprep.subr.mxu0 0.0
        %2026 = vmatpush1.xpose.msra.mxu0 0.0
        %2027 = vmatprep.subr.mxu0 0.0
        %2028 = vmatpush1.xpose.msra.mxu0 0.0
        %2029 = vmatprep.subr.mxu0 0.0
        %2030 = vmatpush1.xpose.msra.mxu0 0.0
        %2031 = vmatprep.subr.mxu0 0.0
        %2032 = vmatpush1.xpose.msra.mxu0 0.0
        %2033 = vmatprep.subr.mxu0 0.0
        %2034 = vmatpush1.xpose.msra.mxu0 0.0
        %2035 = vmatprep.subr.mxu0 0.0
        %2036 = vmatpush1.xpose.msra.mxu0 0.0
        %2037 = vmatprep.subr.mxu0 0.0
        %2038 = vmatpush1.xpose.msra.mxu0 0.0
        %2039 = vmatprep.subr.mxu0 0.0
        %2040 = vmatpush1.xpose.msra.mxu0 0.0
        %2041 = vmatprep.subr.mxu0 0.0
        %2042 = vmatpush1.xpose.msra.mxu0 0.0
        %2043 = vmatprep.subr.mxu0 0.0
        %2044 = vmatpush1.xpose.msra.mxu0 0.0
        %2045 = vmatprep.subr.mxu0 0.0
        %2046 = vmatpush1.xpose.msra.mxu0 0.0
        %2047 = vmatprep.subr.mxu0 0.0
        %2048 = vmatpush1.xpose.msra.mxu0 0.0
        %2049 = vmatprep.subr.mxu0 0.0
        %2050 = vmatpush1.xpose.msra.mxu0 0.0
        %2051 = vmatprep.subr.mxu0 0.0
        %2052 = vmatpush1.xpose.msra.mxu0 0.0
        %2053 = vmatprep.subr.mxu0 0.0
        %2054 = vmatpush1.xpose.msra.mxu0 0.0
        %2055 = vmatprep.subr.mxu0 0.0
        %2056 = vmatpush1.xpose.msra.mxu0 0.0
        %2057 = vmatprep.subr.mxu0 0.0
        %2058 = vmatpush1.xpose.msra.mxu0 0.0
        %2059 = vmatprep.subr.mxu0 0.0
        %2060 = vmatpush1.xpose.msra.mxu0 0.0
        %2061 = vmatprep.mubr.f32.mxu0 0.0
        %2062 = vmatmul.mubr.f32.gmra.mrb[0].mxu0 %v1992
        %v2063 = vpop.f32.mrb[0].mxu0
        %v2064 = vadd.f32 0.0, %v2063
        %v2065 = vpop.f32.mrb[0].mxu0
        %2066 = vdwg.mxu0
        %v2067 = vsel %vm722, %v2064, -inf
        %2068 = vmax.xlane.f32.xlu0 %v2067
        %v2069 = vpop.xlane.xlu0 %2068
        %v2070 = vsub.f32 %v2064, %v2069
        %v2071 = vmul.f32 %v2070, 1.442695
        %v2072 = vpow.pop %v2071
        %v2073 = vsel %vm722, %v2072, 0.0
        %2074 = vadd.xlane.f32.xlu0 %v2073
        %v2075 = vpop.xlane.xlu0 %2074
        %v2076 = vrcp.pop %v2075
        %v2077 = vmul.f32 %v2072, %v2076
        %v2079 = vsel %vm722, %v2077, 0
        %2081 = vmatprep.subr.mxu0 0.0
        %2082 = vmatpush1.msra.mxu0 %v642
        %2083 = vmatprep.subr.mxu0 0.0
        %2084 = vmatpush1.msra.mxu0 0.0
        %2085 = vmatprep.subr.mxu0 0.0
        %2086 = vmatpush1.msra.mxu0 0.0
        %2087 = vmatprep.subr.mxu0 0.0
        %2088 = vmatpush1.msra.mxu0 0.0
        %2089 = vmatprep.subr.mxu0 0.0
        %2090 = vmatpush1.msra.mxu0 0.0
        %2091 = vmatprep.subr.mxu0 0.0
        %2092 = vmatpush1.msra.mxu0 0.0
        %2093 = vmatprep.subr.mxu0 0.0
        %2094 = vmatpush1.msra.mxu0 0.0
        %2095 = vmatprep.subr.mxu0 0.0
        %2096 = vmatpush1.msra.mxu0 0.0
        %2097 = vmatprep.subr.mxu0 0.0
        %2098 = vmatpush1.msra.mxu0 0.0
        %2099 = vmatprep.subr.mxu0 0.0
        %2100 = vmatpush1.msra.mxu0 0.0
        %2101 = vmatprep.subr.mxu0 0.0
        %2102 = vmatpush1.msra.mxu0 0.0
        %2103 = vmatprep.subr.mxu0 0.0
        %2104 = vmatpush1.msra.mxu0 0.0
        %2105 = vmatprep.subr.mxu0 0.0
        %2106 = vmatpush1.msra.mxu0 0.0
        %2107 = vmatprep.subr.mxu0 0.0
        %2108 = vmatpush1.msra.mxu0 0.0
        %2109 = vmatprep.subr.mxu0 0.0
        %2110 = vmatpush1.msra.mxu0 0.0
        %2111 = vmatprep.subr.mxu0 0.0
        %2112 = vmatpush1.msra.mxu0 0.0
        %2113 = vmatprep.subr.mxu0 0.0
        %2114 = vmatpush1.msra.mxu0 0.0
        %2115 = vmatprep.subr.mxu0 0.0
        %2116 = vmatpush1.msra.mxu0 0.0
        %2117 = vmatprep.subr.mxu0 0.0
        %2118 = vmatpush1.msra.mxu0 0.0
        %2119 = vmatprep.subr.mxu0 0.0
        %2120 = vmatpush1.msra.mxu0 0.0
        %2121 = vmatprep.subr.mxu0 0.0
        %2122 = vmatpush1.msra.mxu0 0.0
        %2123 = vmatprep.subr.mxu0 0.0
        %2124 = vmatpush1.msra.mxu0 0.0
        %2125 = vmatprep.subr.mxu0 0.0
        %2126 = vmatpush1.msra.mxu0 0.0
        %2127 = vmatprep.subr.mxu0 0.0
        %2128 = vmatpush1.msra.mxu0 0.0
        %2129 = vmatprep.subr.mxu0 0.0
        %2130 = vmatpush1.msra.mxu0 0.0
        %2131 = vmatprep.subr.mxu0 0.0
        %2132 = vmatpush1.msra.mxu0 0.0
        %2133 = vmatprep.subr.mxu0 0.0
        %2134 = vmatpush1.msra.mxu0 0.0
        %2135 = vmatprep.subr.mxu0 0.0
        %2136 = vmatpush1.msra.mxu0 0.0
        %2137 = vmatprep.subr.mxu0 0.0
        %2138 = vmatpush1.msra.mxu0 0.0
        %2139 = vmatprep.subr.mxu0 0.0
        %2140 = vmatpush1.msra.mxu0 0.0
        %2141 = vmatprep.subr.mxu0 0.0
        %2142 = vmatpush1.msra.mxu0 0.0
        %2143 = vmatprep.subr.mxu0 0.0
        %2144 = vmatpush1.msra.mxu0 0.0
        %2145 = vmatprep.mubr.f32.mxu0 0.0
        %2146 = vmatmul.mubr.f32.gmra.mrb[0].mxu0 %v2079
        %v2147 = vpop.f32.mrb[0].mxu0
        %v2148 = vadd.f32 0.0, %v2147
        %v2149 = vpop.f32.mrb[0].mxu0
        %2150 = vdwg.mxu0
        %2151 = vrot.lane.b32.xlu0 %v466, 96
        %v2152 = vpop.permute.xlu0 %2151
        %2153 = vrot.lane.b32.xlu0 %v557, 96
        %v2154 = vpop.permute.xlu0 %2153
        %v2155 = vsel %vm333, %v2152, 0
        %v2157 = vsel %vm333, %v2154, 0
        %2159 = vmatprep.subr.mxu0 0.0
        %2160 = vmatpush1.xpose.msra.mxu0 %v2157
        %2161 = vmatprep.subr.mxu0 0.0
        %2162 = vmatpush1.xpose.msra.mxu0 0.0
        %2163 = vmatprep.subr.mxu0 0.0
        %2164 = vmatpush1.xpose.msra.mxu0 0.0
        %2165 = vmatprep.subr.mxu0 0.0
        %2166 = vmatpush1.xpose.msra.mxu0 0.0
        %2167 = vmatprep.subr.mxu0 0.0
        %2168 = vmatpush1.xpose.msra.mxu0 0.0
        %2169 = vmatprep.subr.mxu0 0.0
        %2170 = vmatpush1.xpose.msra.mxu0 0.0
        %2171 = vmatprep.subr.mxu0 0.0
        %2172 = vmatpush1.xpose.msra.mxu0 0.0
        %2173 = vmatprep.subr.mxu0 0.0
        %2174 = vmatpush1.xpose.msra.mxu0 0.0
        %2175 = vmatprep.subr.mxu0 0.0
        %2176 = vmatpush1.xpose.msra.mxu0 0.0
        %2177 = vmatprep.subr.mxu0 0.0
        %2178 = vmatpush1.xpose.msra.mxu0 0.0
        %2179 = vmatprep.subr.mxu0 0.0
        %2180 = vmatpush1.xpose.msra.mxu0 0.0
        %2181 = vmatprep.subr.mxu0 0.0
        %2182 = vmatpush1.xpose.msra.mxu0 0.0
        %2183 = vmatprep.subr.mxu0 0.0
        %2184 = vmatpush1.xpose.msra.mxu0 0.0
        %2185 = vmatprep.subr.mxu0 0.0
        %2186 = vmatpush1.xpose.msra.mxu0 0.0
        %2187 = vmatprep.subr.mxu0 0.0
        %2188 = vmatpush1.xpose.msra.mxu0 0.0
        %2189 = vmatprep.subr.mxu0 0.0
        %2190 = vmatpush1.xpose.msra.mxu0 0.0
        %2191 = vmatprep.subr.mxu0 0.0
        %2192 = vmatpush1.xpose.msra.mxu0 0.0
        %2193 = vmatprep.subr.mxu0 0.0
        %2194 = vmatpush1.xpose.msra.mxu0 0.0
        %2195 = vmatprep.subr.mxu0 0.0
        %2196 = vmatpush1.xpose.msra.mxu0 0.0
        %2197 = vmatprep.subr.mxu0 0.0
        %2198 = vmatpush1.xpose.msra.mxu0 0.0
        %2199 = vmatprep.subr.mxu0 0.0
        %2200 = vmatpush1.xpose.msra.mxu0 0.0
        %2201 = vmatprep.subr.mxu0 0.0
        %2202 = vmatpush1.xpose.msra.mxu0 0.0
        %2203 = vmatprep.subr.mxu0 0.0
        %2204 = vmatpush1.xpose.msra.mxu0 0.0
        %2205 = vmatprep.subr.mxu0 0.0
        %2206 = vmatpush1.xpose.msra.mxu0 0.0
        %2207 = vmatprep.subr.mxu0 0.0
        %2208 = vmatpush1.xpose.msra.mxu0 0.0
        %2209 = vmatprep.subr.mxu0 0.0
        %2210 = vmatpush1.xpose.msra.mxu0 0.0
        %2211 = vmatprep.subr.mxu0 0.0
        %2212 = vmatpush1.xpose.msra.mxu0 0.0
        %2213 = vmatprep.subr.mxu0 0.0
        %2214 = vmatpush1.xpose.msra.mxu0 0.0
        %2215 = vmatprep.subr.mxu0 0.0
        %2216 = vmatpush1.xpose.msra.mxu0 0.0
        %2217 = vmatprep.subr.mxu0 0.0
        %2218 = vmatpush1.xpose.msra.mxu0 0.0
        %2219 = vmatprep.subr.mxu0 0.0
        %2220 = vmatpush1.xpose.msra.mxu0 0.0
        %2221 = vmatprep.subr.mxu0 0.0
        %2222 = vmatpush1.xpose.msra.mxu0 0.0
        %2223 = vmatprep.mubr.f32.mxu0 0.0
        %2224 = vmatmul.mubr.f32.gmra.mrb[0].mxu0 %v2155
        %v2225 = vpop.f32.mrb[0].mxu0
        %v2226 = vadd.f32 0.0, %v2225
        %v2227 = vpop.f32.mrb[0].mxu0
        %2228 = vdwg.mxu0
        %v2229 = vsel %vm722, %v2226, -inf
        %2230 = vmax.xlane.f32.xlu0 %v2229
        %v2231 = vpop.xlane.xlu0 %2230
        %v2232 = vsub.f32 %v2226, %v2231
        %v2233 = vmul.f32 %v2232, 1.442695
        %v2234 = vpow.pop %v2233
        %v2235 = vsel %vm722, %v2234, 0.0
        %2236 = vadd.xlane.f32.xlu0 %v2235
        %v2237 = vpop.xlane.xlu0 %2236
        %v2238 = vrcp.pop %v2237
        %v2239 = vmul.f32 %v2234, %v2238
        %2241 = vrot.lane.b32.xlu0 %v642, 96
        %v2242 = vpop.permute.xlu0 %2241
        %v2245 = vsel %vm722, %v2239, 0
        %2247 = vmatprep.subr.mxu0 0.0
        %2248 = vmatpush1.msra.mxu0 %v2242
        %2249 = vmatprep.subr.mxu0 0.0
        %2250 = vmatpush1.msra.mxu0 0.0
        %2251 = vmatprep.subr.mxu0 0.0
        %2252 = vmatpush1.msra.mxu0 0.0
        %2253 = vmatprep.subr.mxu0 0.0
        %2254 = vmatpush1.msra.mxu0 0.0
        %2255 = vmatprep.subr.mxu0 0.0
        %2256 = vmatpush1.msra.mxu0 0.0
        %2257 = vmatprep.subr.mxu0 0.0
        %2258 = vmatpush1.msra.mxu0 0.0
        %2259 = vmatprep.subr.mxu0 0.0
        %2260 = vmatpush1.msra.mxu0 0.0
        %2261 = vmatprep.subr.mxu0 0.0
        %2262 = vmatpush1.msra.mxu0 0.0
        %2263 = vmatprep.subr.mxu0 0.0
        %2264 = vmatpush1.msra.mxu0 0.0
        %2265 = vmatprep.subr.mxu0 0.0
        %2266 = vmatpush1.msra.mxu0 0.0
        %2267 = vmatprep.subr.mxu0 0.0
        %2268 = vmatpush1.msra.mxu0 0.0
        %2269 = vmatprep.subr.mxu0 0.0
        %2270 = vmatpush1.msra.mxu0 0.0
        %2271 = vmatprep.subr.mxu0 0.0
        %2272 = vmatpush1.msra.mxu0 0.0
        %2273 = vmatprep.subr.mxu0 0.0
        %2274 = vmatpush1.msra.mxu0 0.0
        %2275 = vmatprep.subr.mxu0 0.0
        %2276 = vmatpush1.msra.mxu0 0.0
        %2277 = vmatprep.subr.mxu0 0.0
        %2278 = vmatpush1.msra.mxu0 0.0
        %2279 = vmatprep.subr.mxu0 0.0
        %2280 = vmatpush1.msra.mxu0 0.0
        %2281 = vmatprep.subr.mxu0 0.0
        %2282 = vmatpush1.msra.mxu0 0.0
        %2283 = vmatprep.subr.mxu0 0.0
        %2284 = vmatpush1.msra.mxu0 0.0
        %2285 = vmatprep.subr.mxu0 0.0
        %2286 = vmatpush1.msra.mxu0 0.0
        %2287 = vmatprep.subr.mxu0 0.0
        %2288 = vmatpush1.msra.mxu0 0.0
        %2289 = vmatprep.subr.mxu0 0.0
        %2290 = vmatpush1.msra.mxu0 0.0
        %2291 = vmatprep.subr.mxu0 0.0
        %2292 = vmatpush1.msra.mxu0 0.0
        %2293 = vmatprep.subr.mxu0 0.0
        %2294 = vmatpush1.msra.mxu0 0.0
        %2295 = vmatprep.subr.mxu0 0.0
        %2296 = vmatpush1.msra.mxu0 0.0
        %2297 = vmatprep.subr.mxu0 0.0
        %2298 = vmatpush1.msra.mxu0 0.0
        %2299 = vmatprep.subr.mxu0 0.0
        %2300 = vmatpush1.msra.mxu0 0.0
        %2301 = vmatprep.subr.mxu0 0.0
        %2302 = vmatpush1.msra.mxu0 0.0
        %2303 = vmatprep.subr.mxu0 0.0
        %2304 = vmatpush1.msra.mxu0 0.0
        %2305 = vmatprep.subr.mxu0 0.0
        %2306 = vmatpush1.msra.mxu0 0.0
        %2307 = vmatprep.subr.mxu0 0.0
        %2308 = vmatpush1.msra.mxu0 0.0
        %2309 = vmatprep.subr.mxu0 0.0
        %2310 = vmatpush1.msra.mxu0 0.0
        %2311 = vmatprep.mubr.f32.mxu0 0.0
        %2312 = vmatmul.mubr.f32.gmra.mrb[0].mxu0 %v2245
        %v2313 = vpop.f32.mrb[0].mxu0
        %v2314 = vadd.f32 0.0, %v2313
        %v2315 = vpop.f32.mrb[0].mxu0
        %2316 = vdwg.mxu0
        %2317 = vrot.lane.b32.xlu0 %v466, 64
        %v2318 = vpop.permute.xlu0 %2317
        %2319 = vrot.lane.b32.xlu0 %v557, 64
        %v2320 = vpop.permute.xlu0 %2319
        %v2321 = vsel %vm333, %v2318, 0
        %v2323 = vsel %vm333, %v2320, 0
        %2325 = vmatprep.subr.mxu0 0.0
        %2326 = vmatpush1.xpose.msra.mxu0 %v2323
        %2327 = vmatprep.subr.mxu0 0.0
        %2328 = vmatpush1.xpose.msra.mxu0 0.0
        %2329 = vmatprep.subr.mxu0 0.0
        %2330 = vmatpush1.xpose.msra.mxu0 0.0
        %2331 = vmatprep.subr.mxu0 0.0
        %2332 = vmatpush1.xpose.msra.mxu0 0.0
        %2333 = vmatprep.subr.mxu0 0.0
        %2334 = vmatpush1.xpose.msra.mxu0 0.0
        %2335 = vmatprep.subr.mxu0 0.0
        %2336 = vmatpush1.xpose.msra.mxu0 0.0
        %2337 = vmatprep.subr.mxu0 0.0
        %2338 = vmatpush1.xpose.msra.mxu0 0.0
        %2339 = vmatprep.subr.mxu0 0.0
        %2340 = vmatpush1.xpose.msra.mxu0 0.0
        %2341 = vmatprep.subr.mxu0 0.0
        %2342 = vmatpush1.xpose.msra.mxu0 0.0
        %2343 = vmatprep.subr.mxu0 0.0
        %2344 = vmatpush1.xpose.msra.mxu0 0.0
        %2345 = vmatprep.subr.mxu0 0.0
        %2346 = vmatpush1.xpose.msra.mxu0 0.0
        %2347 = vmatprep.subr.mxu0 0.0
        %2348 = vmatpush1.xpose.msra.mxu0 0.0
        %2349 = vmatprep.subr.mxu0 0.0
        %2350 = vmatpush1.xpose.msra.mxu0 0.0
        %2351 = vmatprep.subr.mxu0 0.0
        %2352 = vmatpush1.xpose.msra.mxu0 0.0
        %2353 = vmatprep.subr.mxu0 0.0
        %2354 = vmatpush1.xpose.msra.mxu0 0.0
        %2355 = vmatprep.subr.mxu0 0.0
        %2356 = vmatpush1.xpose.msra.mxu0 0.0
        %2357 = vmatprep.subr.mxu0 0.0
        %2358 = vmatpush1.xpose.msra.mxu0 0.0
        %2359 = vmatprep.subr.mxu0 0.0
        %2360 = vmatpush1.xpose.msra.mxu0 0.0
        %2361 = vmatprep.subr.mxu0 0.0
        %2362 = vmatpush1.xpose.msra.mxu0 0.0
        %2363 = vmatprep.subr.mxu0 0.0
        %2364 = vmatpush1.xpose.msra.mxu0 0.0
        %2365 = vmatprep.subr.mxu0 0.0
        %2366 = vmatpush1.xpose.msra.mxu0 0.0
        %2367 = vmatprep.subr.mxu0 0.0
        %2368 = vmatpush1.xpose.msra.mxu0 0.0
        %2369 = vmatprep.subr.mxu0 0.0
        %2370 = vmatpush1.xpose.msra.mxu0 0.0
        %2371 = vmatprep.subr.mxu0 0.0
        %2372 = vmatpush1.xpose.msra.mxu0 0.0
        %2373 = vmatprep.subr.mxu0 0.0
        %2374 = vmatpush1.xpose.msra.mxu0 0.0
        %2375 = vmatprep.subr.mxu0 0.0
        %2376 = vmatpush1.xpose.msra.mxu0 0.0
        %2377 = vmatprep.subr.mxu0 0.0
        %2378 = vmatpush1.xpose.msra.mxu0 0.0
        %2379 = vmatprep.subr.mxu0 0.0
        %2380 = vmatpush1.xpose.msra.mxu0 0.0
        %2381 = vmatprep.subr.mxu0 0.0
        %2382 = vmatpush1.xpose.msra.mxu0 0.0
        %2383 = vmatprep.subr.mxu0 0.0
        %2384 = vmatpush1.xpose.msra.mxu0 0.0
        %2385 = vmatprep.subr.mxu0 0.0
        %2386 = vmatpush1.xpose.msra.mxu0 0.0
        %2387 = vmatprep.subr.mxu0 0.0
        %2388 = vmatpush1.xpose.msra.mxu0 0.0
        %2389 = vmatprep.mubr.f32.mxu0 0.0
        %2390 = vmatmul.mubr.f32.gmra.mrb[0].mxu0 %v2321
        %v2391 = vpop.f32.mrb[0].mxu0
        %v2392 = vadd.f32 0.0, %v2391
        %v2393 = vpop.f32.mrb[0].mxu0
        %2394 = vdwg.mxu0
        %v2395 = vsel %vm722, %v2392, -inf
        %2396 = vmax.xlane.f32.xlu0 %v2395
        %v2397 = vpop.xlane.xlu0 %2396
        %v2398 = vsub.f32 %v2392, %v2397
        %v2399 = vmul.f32 %v2398, 1.442695
        %v2400 = vpow.pop %v2399
        %v2401 = vsel %vm722, %v2400, 0.0
        %2402 = vadd.xlane.f32.xlu0 %v2401
        %v2403 = vpop.xlane.xlu0 %2402
        %v2404 = vrcp.pop %v2403
        %v2405 = vmul.f32 %v2400, %v2404
        %2406 = vrot.lane.b32.xlu0 %v642, 64
        %v2407 = vpop.permute.xlu0 %2406
        %v2410 = vsel %vm722, %v2405, 0
        %2412 = vmatprep.subr.mxu0 0.0
        %2413 = vmatpush1.msra.mxu0 %v2407
        %2414 = vmatprep.subr.mxu0 0.0
        %2415 = vmatpush1.msra.mxu0 0.0
        %2416 = vmatprep.subr.mxu0 0.0
        %2417 = vmatpush1.msra.mxu0 0.0
        %2418 = vmatprep.subr.mxu0 0.0
        %2419 = vmatpush1.msra.mxu0 0.0
        %2420 = vmatprep.subr.mxu0 0.0
        %2421 = vmatpush1.msra.mxu0 0.0
        %2422 = vmatprep.subr.mxu0 0.0
        %2423 = vmatpush1.msra.mxu0 0.0
        %2424 = vmatprep.subr.mxu0 0.0
        %2425 = vmatpush1.msra.mxu0 0.0
        %2426 = vmatprep.subr.mxu0 0.0
        %2427 = vmatpush1.msra.mxu0 0.0
        %2428 = vmatprep.subr.mxu0 0.0
        %2429 = vmatpush1.msra.mxu0 0.0
        %2430 = vmatprep.subr.mxu0 0.0
        %2431 = vmatpush1.msra.mxu0 0.0
        %2432 = vmatprep.subr.mxu0 0.0
        %2433 = vmatpush1.msra.mxu0 0.0
        %2434 = vmatprep.subr.mxu0 0.0
        %2435 = vmatpush1.msra.mxu0 0.0
        %2436 = vmatprep.subr.mxu0 0.0
        %2437 = vmatpush1.msra.mxu0 0.0
        %2438 = vmatprep.subr.mxu0 0.0
        %2439 = vmatpush1.msra.mxu0 0.0
        %2440 = vmatprep.subr.mxu0 0.0
        %2441 = vmatpush1.msra.mxu0 0.0
        %2442 = vmatprep.subr.mxu0 0.0
        %2443 = vmatpush1.msra.mxu0 0.0
        %2444 = vmatprep.subr.mxu0 0.0
        %2445 = vmatpush1.msra.mxu0 0.0
        %2446 = vmatprep.subr.mxu0 0.0
        %2447 = vmatpush1.msra.mxu0 0.0
        %2448 = vmatprep.subr.mxu0 0.0
        %2449 = vmatpush1.msra.mxu0 0.0
        %2450 = vmatprep.subr.mxu0 0.0
        %2451 = vmatpush1.msra.mxu0 0.0
        %2452 = vmatprep.subr.mxu0 0.0
        %2453 = vmatpush1.msra.mxu0 0.0
        %2454 = vmatprep.subr.mxu0 0.0
        %2455 = vmatpush1.msra.mxu0 0.0
        %2456 = vmatprep.subr.mxu0 0.0
        %2457 = vmatpush1.msra.mxu0 0.0
        %2458 = vmatprep.subr.mxu0 0.0
        %2459 = vmatpush1.msra.mxu0 0.0
        %2460 = vmatprep.subr.mxu0 0.0
        %2461 = vmatpush1.msra.mxu0 0.0
        %2462 = vmatprep.subr.mxu0 0.0
        %2463 = vmatpush1.msra.mxu0 0.0
        %2464 = vmatprep.subr.mxu0 0.0
        %2465 = vmatpush1.msra.mxu0 0.0
        %2466 = vmatprep.subr.mxu0 0.0
        %2467 = vmatpush1.msra.mxu0 0.0
        %2468 = vmatprep.subr.mxu0 0.0
        %2469 = vmatpush1.msra.mxu0 0.0
        %2470 = vmatprep.subr.mxu0 0.0
        %2471 = vmatpush1.msra.mxu0 0.0
        %2472 = vmatprep.subr.mxu0 0.0
        %2473 = vmatpush1.msra.mxu0 0.0
        %2474 = vmatprep.subr.mxu0 0.0
        %2475 = vmatpush1.msra.mxu0 0.0
        %2476 = vmatprep.mubr.f32.mxu0 0.0
        %2477 = vmatmul.mubr.f32.gmra.mrb[0].mxu0 %v2410
        %v2478 = vpop.f32.mrb[0].mxu0
        %v2479 = vadd.f32 0.0, %v2478
        %v2480 = vpop.f32.mrb[0].mxu0
        %2481 = vdwg.mxu0
        %2482 = vrot.lane.b32.xlu0 %v466, 32
        %v2483 = vpop.permute.xlu0 %2482
        %2484 = vrot.lane.b32.xlu0 %v557, 32
        %v2485 = vpop.permute.xlu0 %2484
        %v2486 = vsel %vm333, %v2483, 0
        %v2488 = vsel %vm333, %v2485, 0
        %2490 = vmatprep.subr.mxu0 0.0
        %2491 = vmatpush1.xpose.msra.mxu0 %v2488
        %2492 = vmatprep.subr.mxu0 0.0
        %2493 = vmatpush1.xpose.msra.mxu0 0.0
        %2494 = vmatprep.subr.mxu0 0.0
        %2495 = vmatpush1.xpose.msra.mxu0 0.0
        %2496 = vmatprep.subr.mxu0 0.0
        %2497 = vmatpush1.xpose.msra.mxu0 0.0
        %2498 = vmatprep.subr.mxu0 0.0
        %2499 = vmatpush1.xpose.msra.mxu0 0.0
        %2500 = vmatprep.subr.mxu0 0.0
        %2501 = vmatpush1.xpose.msra.mxu0 0.0
        %2502 = vmatprep.subr.mxu0 0.0
        %2503 = vmatpush1.xpose.msra.mxu0 0.0
        %2504 = vmatprep.subr.mxu0 0.0
        %2505 = vmatpush1.xpose.msra.mxu0 0.0
        %2506 = vmatprep.subr.mxu0 0.0
        %2507 = vmatpush1.xpose.msra.mxu0 0.0
        %2508 = vmatprep.subr.mxu0 0.0
        %2509 = vmatpush1.xpose.msra.mxu0 0.0
        %2510 = vmatprep.subr.mxu0 0.0
        %2511 = vmatpush1.xpose.msra.mxu0 0.0
        %2512 = vmatprep.subr.mxu0 0.0
        %2513 = vmatpush1.xpose.msra.mxu0 0.0
        %2514 = vmatprep.subr.mxu0 0.0
        %2515 = vmatpush1.xpose.msra.mxu0 0.0
        %2516 = vmatprep.subr.mxu0 0.0
        %2517 = vmatpush1.xpose.msra.mxu0 0.0
        %2518 = vmatprep.subr.mxu0 0.0
        %2519 = vmatpush1.xpose.msra.mxu0 0.0
        %2520 = vmatprep.subr.mxu0 0.0
        %2521 = vmatpush1.xpose.msra.mxu0 0.0
        %2522 = vmatprep.subr.mxu0 0.0
        %2523 = vmatpush1.xpose.msra.mxu0 0.0
        %2524 = vmatprep.subr.mxu0 0.0
        %2525 = vmatpush1.xpose.msra.mxu0 0.0
        %2526 = vmatprep.subr.mxu0 0.0
        %2527 = vmatpush1.xpose.msra.mxu0 0.0
        %2528 = vmatprep.subr.mxu0 0.0
        %2529 = vmatpush1.xpose.msra.mxu0 0.0
        %2530 = vmatprep.subr.mxu0 0.0
        %2531 = vmatpush1.xpose.msra.mxu0 0.0
        %2532 = vmatprep.subr.mxu0 0.0
        %2533 = vmatpush1.xpose.msra.mxu0 0.0
        %2534 = vmatprep.subr.mxu0 0.0
        %2535 = vmatpush1.xpose.msra.mxu0 0.0
        %2536 = vmatprep.subr.mxu0 0.0
        %2537 = vmatpush1.xpose.msra.mxu0 0.0
        %2538 = vmatprep.subr.mxu0 0.0
        %2539 = vmatpush1.xpose.msra.mxu0 0.0
        %2540 = vmatprep.subr.mxu0 0.0
        %2541 = vmatpush1.xpose.msra.mxu0 0.0
        %2542 = vmatprep.subr.mxu0 0.0
        %2543 = vmatpush1.xpose.msra.mxu0 0.0
        %2544 = vmatprep.subr.mxu0 0.0
        %2545 = vmatpush1.xpose.msra.mxu0 0.0
        %2546 = vmatprep.subr.mxu0 0.0
        %2547 = vmatpush1.xpose.msra.mxu0 0.0
        %2548 = vmatprep.subr.mxu0 0.0
        %2549 = vmatpush1.xpose.msra.mxu0 0.0
        %2550 = vmatprep.subr.mxu0 0.0
        %2551 = vmatpush1.xpose.msra.mxu0 0.0
        %2552 = vmatprep.subr.mxu0 0.0
        %2553 = vmatpush1.xpose.msra.mxu0 0.0
        %2554 = vmatprep.mubr.f32.mxu0 0.0
        %2555 = vmatmul.mubr.f32.gmra.mrb[0].mxu0 %v2486
        %v2556 = vpop.f32.mrb[0].mxu0
        %v2557 = vadd.f32 0.0, %v2556
        %v2558 = vpop.f32.mrb[0].mxu0
        %2559 = vdwg.mxu0
        %v2560 = vsel %vm722, %v2557, -inf
        %2561 = vmax.xlane.f32.xlu0 %v2560
        %v2562 = vpop.xlane.xlu0 %2561
        %v2563 = vsub.f32 %v2557, %v2562
        %v2564 = vmul.f32 %v2563, 1.442695
        %v2565 = vpow.pop %v2564
        %v2566 = vsel %vm722, %v2565, 0.0
        %2567 = vadd.xlane.f32.xlu0 %v2566
        %v2568 = vpop.xlane.xlu0 %2567
        %v2569 = vrcp.pop %v2568
        %v2570 = vmul.f32 %v2565, %v2569
        %2571 = vrot.lane.b32.xlu0 %v642, 32
        %v2572 = vpop.permute.xlu0 %2571
        %v2575 = vsel %vm722, %v2570, 0
        %2577 = vmatprep.subr.mxu0 0.0
        %2578 = vmatpush1.msra.mxu0 %v2572
        %2579 = vmatprep.subr.mxu0 0.0
        %2580 = vmatpush1.msra.mxu0 0.0
        %2581 = vmatprep.subr.mxu0 0.0
        %2582 = vmatpush1.msra.mxu0 0.0
        %2583 = vmatprep.subr.mxu0 0.0
        %2584 = vmatpush1.msra.mxu0 0.0
        %2585 = vmatprep.subr.mxu0 0.0
        %2586 = vmatpush1.msra.mxu0 0.0
        %2587 = vmatprep.subr.mxu0 0.0
        %2588 = vmatpush1.msra.mxu0 0.0
        %2589 = vmatprep.subr.mxu0 0.0
        %2590 = vmatpush1.msra.mxu0 0.0
        %2591 = vmatprep.subr.mxu0 0.0
        %2592 = vmatpush1.msra.mxu0 0.0
        %2593 = vmatprep.subr.mxu0 0.0
        %2594 = vmatpush1.msra.mxu0 0.0
        %2595 = vmatprep.subr.mxu0 0.0
        %2596 = vmatpush1.msra.mxu0 0.0
        %2597 = vmatprep.subr.mxu0 0.0
        %2598 = vmatpush1.msra.mxu0 0.0
        %2599 = vmatprep.subr.mxu0 0.0
        %2600 = vmatpush1.msra.mxu0 0.0
        %2601 = vmatprep.subr.mxu0 0.0
        %2602 = vmatpush1.msra.mxu0 0.0
        %2603 = vmatprep.subr.mxu0 0.0
        %2604 = vmatpush1.msra.mxu0 0.0
        %2605 = vmatprep.subr.mxu0 0.0
        %2606 = vmatpush1.msra.mxu0 0.0
        %2607 = vmatprep.subr.mxu0 0.0
        %2608 = vmatpush1.msra.mxu0 0.0
        %2609 = vmatprep.subr.mxu0 0.0
        %2610 = vmatpush1.msra.mxu0 0.0
        %2611 = vmatprep.subr.mxu0 0.0
        %2612 = vmatpush1.msra.mxu0 0.0
        %2613 = vmatprep.subr.mxu0 0.0
        %2614 = vmatpush1.msra.mxu0 0.0
        %2615 = vmatprep.subr.mxu0 0.0
        %2616 = vmatpush1.msra.mxu0 0.0
        %2617 = vmatprep.subr.mxu0 0.0
        %2618 = vmatpush1.msra.mxu0 0.0
        %2619 = vmatprep.subr.mxu0 0.0
        %2620 = vmatpush1.msra.mxu0 0.0
        %2621 = vmatprep.subr.mxu0 0.0
        %2622 = vmatpush1.msra.mxu0 0.0
        %2623 = vmatprep.subr.mxu0 0.0
        %2624 = vmatpush1.msra.mxu0 0.0
        %2625 = vmatprep.subr.mxu0 0.0
        %2626 = vmatpush1.msra.mxu0 0.0
        %2627 = vmatprep.subr.mxu0 0.0
        %2628 = vmatpush1.msra.mxu0 0.0
        %2629 = vmatprep.subr.mxu0 0.0
        %2630 = vmatpush1.msra.mxu0 0.0
        %2631 = vmatprep.subr.mxu0 0.0
        %2632 = vmatpush1.msra.mxu0 0.0
        %2633 = vmatprep.subr.mxu0 0.0
        %2634 = vmatpush1.msra.mxu0 0.0
        %2635 = vmatprep.subr.mxu0 0.0
        %2636 = vmatpush1.msra.mxu0 0.0
        %2637 = vmatprep.subr.mxu0 0.0
        %2638 = vmatpush1.msra.mxu0 0.0
        %2639 = vmatprep.subr.mxu0 0.0
        %2640 = vmatpush1.msra.mxu0 0.0
        %2641 = vmatprep.mubr.f32.mxu0 0.0
        %2642 = vmatmul.mubr.f32.gmra.mrb[0].mxu0 %v2575
        %v2643 = vpop.f32.mrb[0].mxu0
        %v2644 = vadd.f32 0.0, %v2643
        %v2645 = vpop.f32.mrb[0].mxu0
        %2646 = vdwg.mxu0
        %v2648 = vsel %vm333, %v468, 0
        %v2651 = vsel %vm333, %v559, 0
        %2653 = vmatprep.subr.mxu0 0.0
        %2654 = vmatpush1.xpose.msra.mxu0 %v2651
        %2655 = vmatprep.subr.mxu0 0.0
        %2656 = vmatpush1.xpose.msra.mxu0 0.0
        %2657 = vmatprep.subr.mxu0 0.0
        %2658 = vmatpush1.xpose.msra.mxu0 0.0
        %2659 = vmatprep.subr.mxu0 0.0
        %2660 = vmatpush1.xpose.msra.mxu0 0.0
        %2661 = vmatprep.subr.mxu0 0.0
        %2662 = vmatpush1.xpose.msra.mxu0 0.0
        %2663 = vmatprep.subr.mxu0 0.0
        %2664 = vmatpush1.xpose.msra.mxu0 0.0
        %2665 = vmatprep.subr.mxu0 0.0
        %2666 = vmatpush1.xpose.msra.mxu0 0.0
        %2667 = vmatprep.subr.mxu0 0.0
        %2668 = vmatpush1.xpose.msra.mxu0 0.0
        %2669 = vmatprep.subr.mxu0 0.0
        %2670 = vmatpush1.xpose.msra.mxu0 0.0
        %2671 = vmatprep.subr.mxu0 0.0
        %2672 = vmatpush1.xpose.msra.mxu0 0.0
        %2673 = vmatprep.subr.mxu0 0.0
        %2674 = vmatpush1.xpose.msra.mxu0 0.0
        %2675 = vmatprep.subr.mxu0 0.0
        %2676 = vmatpush1.xpose.msra.mxu0 0.0
        %2677 = vmatprep.subr.mxu0 0.0
        %2678 = vmatpush1.xpose.msra.mxu0 0.0
        %2679 = vmatprep.subr.mxu0 0.0
        %2680 = vmatpush1.xpose.msra.mxu0 0.0
        %2681 = vmatprep.subr.mxu0 0.0
        %2682 = vmatpush1.xpose.msra.mxu0 0.0
        %2683 = vmatprep.subr.mxu0 0.0
        %2684 = vmatpush1.xpose.msra.mxu0 0.0
        %2685 = vmatprep.subr.mxu0 0.0
        %2686 = vmatpush1.xpose.msra.mxu0 0.0
        %2687 = vmatprep.subr.mxu0 0.0
        %2688 = vmatpush1.xpose.msra.mxu0 0.0
        %2689 = vmatprep.subr.mxu0 0.0
        %2690 = vmatpush1.xpose.msra.mxu0 0.0
        %2691 = vmatprep.subr.mxu0 0.0
        %2692 = vmatpush1.xpose.msra.mxu0 0.0
        %2693 = vmatprep.subr.mxu0 0.0
        %2694 = vmatpush1.xpose.msra.mxu0 0.0
        %2695 = vmatprep.subr.mxu0 0.0
        %2696 = vmatpush1.xpose.msra.mxu0 0.0
        %2697 = vmatprep.subr.mxu0 0.0
        %2698 = vmatpush1.xpose.msra.mxu0 0.0
        %2699 = vmatprep.subr.mxu0 0.0
        %2700 = vmatpush1.xpose.msra.mxu0 0.0
        %2701 = vmatprep.subr.mxu0 0.0
        %2702 = vmatpush1.xpose.msra.mxu0 0.0
        %2703 = vmatprep.subr.mxu0 0.0
        %2704 = vmatpush1.xpose.msra.mxu0 0.0
        %2705 = vmatprep.subr.mxu0 0.0
        %2706 = vmatpush1.xpose.msra.mxu0 0.0
        %2707 = vmatprep.subr.mxu0 0.0
        %2708 = vmatpush1.xpose.msra.mxu0 0.0
        %2709 = vmatprep.subr.mxu0 0.0
        %2710 = vmatpush1.xpose.msra.mxu0 0.0
        %2711 = vmatprep.subr.mxu0 0.0
        %2712 = vmatpush1.xpose.msra.mxu0 0.0
        %2713 = vmatprep.subr.mxu0 0.0
        %2714 = vmatpush1.xpose.msra.mxu0 0.0
        %2715 = vmatprep.subr.mxu0 0.0
        %2716 = vmatpush1.xpose.msra.mxu0 0.0
        %2717 = vmatprep.mubr.f32.mxu0 0.0
        %2718 = vmatmul.mubr.f32.gmra.mrb[0].mxu0 %v2648
        %v2719 = vpop.f32.mrb[0].mxu0
        %v2720 = vadd.f32 0.0, %v2719
        %v2721 = vpop.f32.mrb[0].mxu0
        %2722 = vdwg.mxu0
        %v2723 = vsel %vm722, %v2720, -inf
        %2724 = vmax.xlane.f32.xlu0 %v2723
        %v2725 = vpop.xlane.xlu0 %2724
        %v2726 = vsub.f32 %v2720, %v2725
        %v2727 = vmul.f32 %v2726, 1.442695
        %v2728 = vpow.pop %v2727
        %v2729 = vsel %vm722, %v2728, 0.0
        %2730 = vadd.xlane.f32.xlu0 %v2729
        %v2731 = vpop.xlane.xlu0 %2730
        %v2732 = vrcp.pop %v2731
        %v2733 = vmul.f32 %v2728, %v2732
        %v2735 = vsel %vm722, %v2733, 0
        %2737 = vmatprep.subr.mxu0 0.0
        %2738 = vmatpush1.msra.mxu0 %v644
        %2739 = vmatprep.subr.mxu0 0.0
        %2740 = vmatpush1.msra.mxu0 0.0
        %2741 = vmatprep.subr.mxu0 0.0
        %2742 = vmatpush1.msra.mxu0 0.0
        %2743 = vmatprep.subr.mxu0 0.0
        %2744 = vmatpush1.msra.mxu0 0.0
        %2745 = vmatprep.subr.mxu0 0.0
        %2746 = vmatpush1.msra.mxu0 0.0
        %2747 = vmatprep.subr.mxu0 0.0
        %2748 = vmatpush1.msra.mxu0 0.0
        %2749 = vmatprep.subr.mxu0 0.0
        %2750 = vmatpush1.msra.mxu0 0.0
        %2751 = vmatprep.subr.mxu0 0.0
        %2752 = vmatpush1.msra.mxu0 0.0
        %2753 = vmatprep.subr.mxu0 0.0
        %2754 = vmatpush1.msra.mxu0 0.0
        %2755 = vmatprep.subr.mxu0 0.0
        %2756 = vmatpush1.msra.mxu0 0.0
        %2757 = vmatprep.subr.mxu0 0.0
        %2758 = vmatpush1.msra.mxu0 0.0
        %2759 = vmatprep.subr.mxu0 0.0
        %2760 = vmatpush1.msra.mxu0 0.0
        %2761 = vmatprep.subr.mxu0 0.0
        %2762 = vmatpush1.msra.mxu0 0.0
        %2763 = vmatprep.subr.mxu0 0.0
        %2764 = vmatpush1.msra.mxu0 0.0
        %2765 = vmatprep.subr.mxu0 0.0
        %2766 = vmatpush1.msra.mxu0 0.0
        %2767 = vmatprep.subr.mxu0 0.0
        %2768 = vmatpush1.msra.mxu0 0.0
        %2769 = vmatprep.subr.mxu0 0.0
        %2770 = vmatpush1.msra.mxu0 0.0
        %2771 = vmatprep.subr.mxu0 0.0
        %2772 = vmatpush1.msra.mxu0 0.0
        %2773 = vmatprep.subr.mxu0 0.0
        %2774 = vmatpush1.msra.mxu0 0.0
        %2775 = vmatprep.subr.mxu0 0.0
        %2776 = vmatpush1.msra.mxu0 0.0
        %2777 = vmatprep.subr.mxu0 0.0
        %2778 = vmatpush1.msra.mxu0 0.0
        %2779 = vmatprep.subr.mxu0 0.0
        %2780 = vmatpush1.msra.mxu0 0.0
        %2781 = vmatprep.subr.mxu0 0.0
        %2782 = vmatpush1.msra.mxu0 0.0
        %2783 = vmatprep.subr.mxu0 0.0
        %2784 = vmatpush1.msra.mxu0 0.0
        %2785 = vmatprep.subr.mxu0 0.0
        %2786 = vmatpush1.msra.mxu0 0.0
        %2787 = vmatprep.subr.mxu0 0.0
        %2788 = vmatpush1.msra.mxu0 0.0
        %2789 = vmatprep.subr.mxu0 0.0
        %2790 = vmatpush1.msra.mxu0 0.0
        %2791 = vmatprep.subr.mxu0 0.0
        %2792 = vmatpush1.msra.mxu0 0.0
        %2793 = vmatprep.subr.mxu0 0.0
        %2794 = vmatpush1.msra.mxu0 0.0
        %2795 = vmatprep.subr.mxu0 0.0
        %2796 = vmatpush1.msra.mxu0 0.0
        %2797 = vmatprep.subr.mxu0 0.0
        %2798 = vmatpush1.msra.mxu0 0.0
        %2799 = vmatprep.subr.mxu0 0.0
        %2800 = vmatpush1.msra.mxu0 0.0
        %2801 = vmatprep.mubr.f32.mxu0 0.0
        %2802 = vmatmul.mubr.f32.gmra.mrb[0].mxu0 %v2735
        %v2803 = vpop.f32.mrb[0].mxu0
        %v2804 = vadd.f32 0.0, %v2803
        %v2805 = vpop.f32.mrb[0].mxu0
        %2806 = vdwg.mxu0
        %2807 = vrot.lane.b32.xlu0 %v468, 96
        %v2808 = vpop.permute.xlu0 %2807
        %2809 = vrot.lane.b32.xlu0 %v559, 96
        %v2810 = vpop.permute.xlu0 %2809
        %v2811 = vsel %vm333, %v2808, 0
        %v2813 = vsel %vm333, %v2810, 0
        %2815 = vmatprep.subr.mxu0 0.0
        %2816 = vmatpush1.xpose.msra.mxu0 %v2813
        %2817 = vmatprep.subr.mxu0 0.0
        %2818 = vmatpush1.xpose.msra.mxu0 0.0
        %2819 = vmatprep.subr.mxu0 0.0
        %2820 = vmatpush1.xpose.msra.mxu0 0.0
        %2821 = vmatprep.subr.mxu0 0.0
        %2822 = vmatpush1.xpose.msra.mxu0 0.0
        %2823 = vmatprep.subr.mxu0 0.0
        %2824 = vmatpush1.xpose.msra.mxu0 0.0
        %2825 = vmatprep.subr.mxu0 0.0
        %2826 = vmatpush1.xpose.msra.mxu0 0.0
        %2827 = vmatprep.subr.mxu0 0.0
        %2828 = vmatpush1.xpose.msra.mxu0 0.0
        %2829 = vmatprep.subr.mxu0 0.0
        %2830 = vmatpush1.xpose.msra.mxu0 0.0
        %2831 = vmatprep.subr.mxu0 0.0
        %2832 = vmatpush1.xpose.msra.mxu0 0.0
        %2833 = vmatprep.subr.mxu0 0.0
        %2834 = vmatpush1.xpose.msra.mxu0 0.0
        %2835 = vmatprep.subr.mxu0 0.0
        %2836 = vmatpush1.xpose.msra.mxu0 0.0
        %2837 = vmatprep.subr.mxu0 0.0
        %2838 = vmatpush1.xpose.msra.mxu0 0.0
        %2839 = vmatprep.subr.mxu0 0.0
        %2840 = vmatpush1.xpose.msra.mxu0 0.0
        %2841 = vmatprep.subr.mxu0 0.0
        %2842 = vmatpush1.xpose.msra.mxu0 0.0
        %2843 = vmatprep.subr.mxu0 0.0
        %2844 = vmatpush1.xpose.msra.mxu0 0.0
        %2845 = vmatprep.subr.mxu0 0.0
        %2846 = vmatpush1.xpose.msra.mxu0 0.0
        %2847 = vmatprep.subr.mxu0 0.0
        %2848 = vmatpush1.xpose.msra.mxu0 0.0
        %2849 = vmatprep.subr.mxu0 0.0
        %2850 = vmatpush1.xpose.msra.mxu0 0.0
        %2851 = vmatprep.subr.mxu0 0.0
        %2852 = vmatpush1.xpose.msra.mxu0 0.0
        %2853 = vmatprep.subr.mxu0 0.0
        %2854 = vmatpush1.xpose.msra.mxu0 0.0
        %2855 = vmatprep.subr.mxu0 0.0
        %2856 = vmatpush1.xpose.msra.mxu0 0.0
        %2857 = vmatprep.subr.mxu0 0.0
        %2858 = vmatpush1.xpose.msra.mxu0 0.0
        %2859 = vmatprep.subr.mxu0 0.0
        %2860 = vmatpush1.xpose.msra.mxu0 0.0
        %2861 = vmatprep.subr.mxu0 0.0
        %2862 = vmatpush1.xpose.msra.mxu0 0.0
        %2863 = vmatprep.subr.mxu0 0.0
        %2864 = vmatpush1.xpose.msra.mxu0 0.0
        %2865 = vmatprep.subr.mxu0 0.0
        %2866 = vmatpush1.xpose.msra.mxu0 0.0
        %2867 = vmatprep.subr.mxu0 0.0
        %2868 = vmatpush1.xpose.msra.mxu0 0.0
        %2869 = vmatprep.subr.mxu0 0.0
        %2870 = vmatpush1.xpose.msra.mxu0 0.0
        %2871 = vmatprep.subr.mxu0 0.0
        %2872 = vmatpush1.xpose.msra.mxu0 0.0
        %2873 = vmatprep.subr.mxu0 0.0
        %2874 = vmatpush1.xpose.msra.mxu0 0.0
        %2875 = vmatprep.subr.mxu0 0.0
        %2876 = vmatpush1.xpose.msra.mxu0 0.0
        %2877 = vmatprep.subr.mxu0 0.0
        %2878 = vmatpush1.xpose.msra.mxu0 0.0
        %2879 = vmatprep.mubr.f32.mxu0 0.0
        %2880 = vmatmul.mubr.f32.gmra.mrb[0].mxu0 %v2811
        %v2881 = vpop.f32.mrb[0].mxu0
        %v2882 = vadd.f32 0.0, %v2881
        %v2883 = vpop.f32.mrb[0].mxu0
        %2884 = vdwg.mxu0
        %v2885 = vsel %vm722, %v2882, -inf
        %2886 = vmax.xlane.f32.xlu0 %v2885
        %v2887 = vpop.xlane.xlu0 %2886
        %v2888 = vsub.f32 %v2882, %v2887
        %v2889 = vmul.f32 %v2888, 1.442695
        %v2890 = vpow.pop %v2889
        %v2891 = vsel %vm722, %v2890, 0.0
        %2892 = vadd.xlane.f32.xlu0 %v2891
        %v2893 = vpop.xlane.xlu0 %2892
        %v2894 = vrcp.pop %v2893
        %v2895 = vmul.f32 %v2890, %v2894
        %2897 = vrot.lane.b32.xlu0 %v644, 96
        %v2898 = vpop.permute.xlu0 %2897
        %v2901 = vsel %vm722, %v2895, 0
        %2903 = vmatprep.subr.mxu0 0.0
        %2904 = vmatpush1.msra.mxu0 %v2898
        %2905 = vmatprep.subr.mxu0 0.0
        %2906 = vmatpush1.msra.mxu0 0.0
        %2907 = vmatprep.subr.mxu0 0.0
        %2908 = vmatpush1.msra.mxu0 0.0
        %2909 = vmatprep.subr.mxu0 0.0
        %2910 = vmatpush1.msra.mxu0 0.0
        %2911 = vmatprep.subr.mxu0 0.0
        %2912 = vmatpush1.msra.mxu0 0.0
        %2913 = vmatprep.subr.mxu0 0.0
        %2914 = vmatpush1.msra.mxu0 0.0
        %2915 = vmatprep.subr.mxu0 0.0
        %2916 = vmatpush1.msra.mxu0 0.0
        %2917 = vmatprep.subr.mxu0 0.0
        %2918 = vmatpush1.msra.mxu0 0.0
        %2919 = vmatprep.subr.mxu0 0.0
        %2920 = vmatpush1.msra.mxu0 0.0
        %2921 = vmatprep.subr.mxu0 0.0
        %2922 = vmatpush1.msra.mxu0 0.0
        %2923 = vmatprep.subr.mxu0 0.0
        %2924 = vmatpush1.msra.mxu0 0.0
        %2925 = vmatprep.subr.mxu0 0.0
        %2926 = vmatpush1.msra.mxu0 0.0
        %2927 = vmatprep.subr.mxu0 0.0
        %2928 = vmatpush1.msra.mxu0 0.0
        %2929 = vmatprep.subr.mxu0 0.0
        %2930 = vmatpush1.msra.mxu0 0.0
        %2931 = vmatprep.subr.mxu0 0.0
        %2932 = vmatpush1.msra.mxu0 0.0
        %2933 = vmatprep.subr.mxu0 0.0
        %2934 = vmatpush1.msra.mxu0 0.0
        %2935 = vmatprep.subr.mxu0 0.0
        %2936 = vmatpush1.msra.mxu0 0.0
        %2937 = vmatprep.subr.mxu0 0.0
        %2938 = vmatpush1.msra.mxu0 0.0
        %2939 = vmatprep.subr.mxu0 0.0
        %2940 = vmatpush1.msra.mxu0 0.0
        %2941 = vmatprep.subr.mxu0 0.0
        %2942 = vmatpush1.msra.mxu0 0.0
        %2943 = vmatprep.subr.mxu0 0.0
        %2944 = vmatpush1.msra.mxu0 0.0
        %2945 = vmatprep.subr.mxu0 0.0
        %2946 = vmatpush1.msra.mxu0 0.0
        %2947 = vmatprep.subr.mxu0 0.0
        %2948 = vmatpush1.msra.mxu0 0.0
        %2949 = vmatprep.subr.mxu0 0.0
        %2950 = vmatpush1.msra.mxu0 0.0
        %2951 = vmatprep.subr.mxu0 0.0
        %2952 = vmatpush1.msra.mxu0 0.0
        %2953 = vmatprep.subr.mxu0 0.0
        %2954 = vmatpush1.msra.mxu0 0.0
        %2955 = vmatprep.subr.mxu0 0.0
        %2956 = vmatpush1.msra.mxu0 0.0
        %2957 = vmatprep.subr.mxu0 0.0
        %2958 = vmatpush1.msra.mxu0 0.0
        %2959 = vmatprep.subr.mxu0 0.0
        %2960 = vmatpush1.msra.mxu0 0.0
        %2961 = vmatprep.subr.mxu0 0.0
        %2962 = vmatpush1.msra.mxu0 0.0
        %2963 = vmatprep.subr.mxu0 0.0
        %2964 = vmatpush1.msra.mxu0 0.0
        %2965 = vmatprep.subr.mxu0 0.0
        %2966 = vmatpush1.msra.mxu0 0.0
        %2967 = vmatprep.mubr.f32.mxu0 0.0
        %2968 = vmatmul.mubr.f32.gmra.mrb[0].mxu0 %v2901
        %v2969 = vpop.f32.mrb[0].mxu0
        %v2970 = vadd.f32 0.0, %v2969
        %v2971 = vpop.f32.mrb[0].mxu0
        %2972 = vdwg.mxu0
        %2973 = vrot.lane.b32.xlu0 %v468, 64
        %v2974 = vpop.permute.xlu0 %2973
        %2975 = vrot.lane.b32.xlu0 %v559, 64
        %v2976 = vpop.permute.xlu0 %2975
        %v2977 = vsel %vm333, %v2974, 0
        %v2979 = vsel %vm333, %v2976, 0
        %2981 = vmatprep.subr.mxu0 0.0
        %2982 = vmatpush1.xpose.msra.mxu0 %v2979
        %2983 = vmatprep.subr.mxu0 0.0
        %2984 = vmatpush1.xpose.msra.mxu0 0.0
        %2985 = vmatprep.subr.mxu0 0.0
        %2986 = vmatpush1.xpose.msra.mxu0 0.0
        %2987 = vmatprep.subr.mxu0 0.0
        %2988 = vmatpush1.xpose.msra.mxu0 0.0
        %2989 = vmatprep.subr.mxu0 0.0
        %2990 = vmatpush1.xpose.msra.mxu0 0.0
        %2991 = vmatprep.subr.mxu0 0.0
        %2992 = vmatpush1.xpose.msra.mxu0 0.0
        %2993 = vmatprep.subr.mxu0 0.0
        %2994 = vmatpush1.xpose.msra.mxu0 0.0
        %2995 = vmatprep.subr.mxu0 0.0
        %2996 = vmatpush1.xpose.msra.mxu0 0.0
        %2997 = vmatprep.subr.mxu0 0.0
        %2998 = vmatpush1.xpose.msra.mxu0 0.0
        %2999 = vmatprep.subr.mxu0 0.0
        %3000 = vmatpush1.xpose.msra.mxu0 0.0
        %3001 = vmatprep.subr.mxu0 0.0
        %3002 = vmatpush1.xpose.msra.mxu0 0.0
        %3003 = vmatprep.subr.mxu0 0.0
        %3004 = vmatpush1.xpose.msra.mxu0 0.0
        %3005 = vmatprep.subr.mxu0 0.0
        %3006 = vmatpush1.xpose.msra.mxu0 0.0
        %3007 = vmatprep.subr.mxu0 0.0
        %3008 = vmatpush1.xpose.msra.mxu0 0.0
        %3009 = vmatprep.subr.mxu0 0.0
        %3010 = vmatpush1.xpose.msra.mxu0 0.0
        %3011 = vmatprep.subr.mxu0 0.0
        %3012 = vmatpush1.xpose.msra.mxu0 0.0
        %3013 = vmatprep.subr.mxu0 0.0
        %3014 = vmatpush1.xpose.msra.mxu0 0.0
        %3015 = vmatprep.subr.mxu0 0.0
        %3016 = vmatpush1.xpose.msra.mxu0 0.0
        %3017 = vmatprep.subr.mxu0 0.0
        %3018 = vmatpush1.xpose.msra.mxu0 0.0
        %3019 = vmatprep.subr.mxu0 0.0
        %3020 = vmatpush1.xpose.msra.mxu0 0.0
        %3021 = vmatprep.subr.mxu0 0.0
        %3022 = vmatpush1.xpose.msra.mxu0 0.0
        %3023 = vmatprep.subr.mxu0 0.0
        %3024 = vmatpush1.xpose.msra.mxu0 0.0
        %3025 = vmatprep.subr.mxu0 0.0
        %3026 = vmatpush1.xpose.msra.mxu0 0.0
        %3027 = vmatprep.subr.mxu0 0.0
        %3028 = vmatpush1.xpose.msra.mxu0 0.0
        %3029 = vmatprep.subr.mxu0 0.0
        %3030 = vmatpush1.xpose.msra.mxu0 0.0
        %3031 = vmatprep.subr.mxu0 0.0
        %3032 = vmatpush1.xpose.msra.mxu0 0.0
        %3033 = vmatprep.subr.mxu0 0.0
        %3034 = vmatpush1.xpose.msra.mxu0 0.0
        %3035 = vmatprep.subr.mxu0 0.0
        %3036 = vmatpush1.xpose.msra.mxu0 0.0
        %3037 = vmatprep.subr.mxu0 0.0
        %3038 = vmatpush1.xpose.msra.mxu0 0.0
        %3039 = vmatprep.subr.mxu0 0.0
        %3040 = vmatpush1.xpose.msra.mxu0 0.0
        %3041 = vmatprep.subr.mxu0 0.0
        %3042 = vmatpush1.xpose.msra.mxu0 0.0
        %3043 = vmatprep.subr.mxu0 0.0
        %3044 = vmatpush1.xpose.msra.mxu0 0.0
        %3045 = vmatprep.mubr.f32.mxu0 0.0
        %3046 = vmatmul.mubr.f32.gmra.mrb[0].mxu0 %v2977
        %v3047 = vpop.f32.mrb[0].mxu0
        %v3048 = vadd.f32 0.0, %v3047
        %v3049 = vpop.f32.mrb[0].mxu0
        %3050 = vdwg.mxu0
        %v3051 = vsel %vm722, %v3048, -inf
        %3052 = vmax.xlane.f32.xlu0 %v3051
        %v3053 = vpop.xlane.xlu0 %3052
        %v3054 = vsub.f32 %v3048, %v3053
        %v3055 = vmul.f32 %v3054, 1.442695
        %v3056 = vpow.pop %v3055
        %v3057 = vsel %vm722, %v3056, 0.0
        %3058 = vadd.xlane.f32.xlu0 %v3057
        %v3059 = vpop.xlane.xlu0 %3058
        %v3060 = vrcp.pop %v3059
        %v3061 = vmul.f32 %v3056, %v3060
        %3062 = vrot.lane.b32.xlu0 %v644, 64
        %v3063 = vpop.permute.xlu0 %3062
        %v3066 = vsel %vm722, %v3061, 0
        %3068 = vmatprep.subr.mxu0 0.0
        %3069 = vmatpush1.msra.mxu0 %v3063
        %3070 = vmatprep.subr.mxu0 0.0
        %3071 = vmatpush1.msra.mxu0 0.0
        %3072 = vmatprep.subr.mxu0 0.0
        %3073 = vmatpush1.msra.mxu0 0.0
        %3074 = vmatprep.subr.mxu0 0.0
        %3075 = vmatpush1.msra.mxu0 0.0
        %3076 = vmatprep.subr.mxu0 0.0
        %3077 = vmatpush1.msra.mxu0 0.0
        %3078 = vmatprep.subr.mxu0 0.0
        %3079 = vmatpush1.msra.mxu0 0.0
        %3080 = vmatprep.subr.mxu0 0.0
        %3081 = vmatpush1.msra.mxu0 0.0
        %3082 = vmatprep.subr.mxu0 0.0
        %3083 = vmatpush1.msra.mxu0 0.0
        %3084 = vmatprep.subr.mxu0 0.0
        %3085 = vmatpush1.msra.mxu0 0.0
        %3086 = vmatprep.subr.mxu0 0.0
        %3087 = vmatpush1.msra.mxu0 0.0
        %3088 = vmatprep.subr.mxu0 0.0
        %3089 = vmatpush1.msra.mxu0 0.0
        %3090 = vmatprep.subr.mxu0 0.0
        %3091 = vmatpush1.msra.mxu0 0.0
        %3092 = vmatprep.subr.mxu0 0.0
        %3093 = vmatpush1.msra.mxu0 0.0
        %3094 = vmatprep.subr.mxu0 0.0
        %3095 = vmatpush1.msra.mxu0 0.0
        %3096 = vmatprep.subr.mxu0 0.0
        %3097 = vmatpush1.msra.mxu0 0.0
        %3098 = vmatprep.subr.mxu0 0.0
        %3099 = vmatpush1.msra.mxu0 0.0
        %3100 = vmatprep.subr.mxu0 0.0
        %3101 = vmatpush1.msra.mxu0 0.0
        %3102 = vmatprep.subr.mxu0 0.0
        %3103 = vmatpush1.msra.mxu0 0.0
        %3104 = vmatprep.subr.mxu0 0.0
        %3105 = vmatpush1.msra.mxu0 0.0
        %3106 = vmatprep.subr.mxu0 0.0
        %3107 = vmatpush1.msra.mxu0 0.0
        %3108 = vmatprep.subr.mxu0 0.0
        %3109 = vmatpush1.msra.mxu0 0.0
        %3110 = vmatprep.subr.mxu0 0.0
        %3111 = vmatpush1.msra.mxu0 0.0
        %3112 = vmatprep.subr.mxu0 0.0
        %3113 = vmatpush1.msra.mxu0 0.0
        %3114 = vmatprep.subr.mxu0 0.0
        %3115 = vmatpush1.msra.mxu0 0.0
        %3116 = vmatprep.subr.mxu0 0.0
        %3117 = vmatpush1.msra.mxu0 0.0
        %3118 = vmatprep.subr.mxu0 0.0
        %3119 = vmatpush1.msra.mxu0 0.0
        %3120 = vmatprep.subr.mxu0 0.0
        %3121 = vmatpush1.msra.mxu0 0.0
        %3122 = vmatprep.subr.mxu0 0.0
        %3123 = vmatpush1.msra.mxu0 0.0
        %3124 = vmatprep.subr.mxu0 0.0
        %3125 = vmatpush1.msra.mxu0 0.0
        %3126 = vmatprep.subr.mxu0 0.0
        %3127 = vmatpush1.msra.mxu0 0.0
        %3128 = vmatprep.subr.mxu0 0.0
        %3129 = vmatpush1.msra.mxu0 0.0
        %3130 = vmatprep.subr.mxu0 0.0
        %3131 = vmatpush1.msra.mxu0 0.0
        %3132 = vmatprep.mubr.f32.mxu0 0.0
        %3133 = vmatmul.mubr.f32.gmra.mrb[0].mxu0 %v3066
        %v3134 = vpop.f32.mrb[0].mxu0
        %v3135 = vadd.f32 0.0, %v3134
        %v3136 = vpop.f32.mrb[0].mxu0
        %3137 = vdwg.mxu0
        %3138 = vrot.lane.b32.xlu0 %v468, 32
        %v3139 = vpop.permute.xlu0 %3138
        %3140 = vrot.lane.b32.xlu0 %v559, 32
        %v3141 = vpop.permute.xlu0 %3140
        %v3142 = vsel %vm333, %v3139, 0
        %v3144 = vsel %vm333, %v3141, 0
        %3146 = vmatprep.subr.mxu0 0.0
        %3147 = vmatpush1.xpose.msra.mxu0 %v3144
        %3148 = vmatprep.subr.mxu0 0.0
        %3149 = vmatpush1.xpose.msra.mxu0 0.0
        %3150 = vmatprep.subr.mxu0 0.0
        %3151 = vmatpush1.xpose.msra.mxu0 0.0
        %3152 = vmatprep.subr.mxu0 0.0
        %3153 = vmatpush1.xpose.msra.mxu0 0.0
        %3154 = vmatprep.subr.mxu0 0.0
        %3155 = vmatpush1.xpose.msra.mxu0 0.0
        %3156 = vmatprep.subr.mxu0 0.0
        %3157 = vmatpush1.xpose.msra.mxu0 0.0
        %3158 = vmatprep.subr.mxu0 0.0
        %3159 = vmatpush1.xpose.msra.mxu0 0.0
        %3160 = vmatprep.subr.mxu0 0.0
        %3161 = vmatpush1.xpose.msra.mxu0 0.0
        %3162 = vmatprep.subr.mxu0 0.0
        %3163 = vmatpush1.xpose.msra.mxu0 0.0
        %3164 = vmatprep.subr.mxu0 0.0
        %3165 = vmatpush1.xpose.msra.mxu0 0.0
        %3166 = vmatprep.subr.mxu0 0.0
        %3167 = vmatpush1.xpose.msra.mxu0 0.0
        %3168 = vmatprep.subr.mxu0 0.0
        %3169 = vmatpush1.xpose.msra.mxu0 0.0
        %3170 = vmatprep.subr.mxu0 0.0
        %3171 = vmatpush1.xpose.msra.mxu0 0.0
        %3172 = vmatprep.subr.mxu0 0.0
        %3173 = vmatpush1.xpose.msra.mxu0 0.0
        %3174 = vmatprep.subr.mxu0 0.0
        %3175 = vmatpush1.xpose.msra.mxu0 0.0
        %3176 = vmatprep.subr.mxu0 0.0
        %3177 = vmatpush1.xpose.msra.mxu0 0.0
        %3178 = vmatprep.subr.mxu0 0.0
        %3179 = vmatpush1.xpose.msra.mxu0 0.0
        %3180 = vmatprep.subr.mxu0 0.0
        %3181 = vmatpush1.xpose.msra.mxu0 0.0
        %3182 = vmatprep.subr.mxu0 0.0
        %3183 = vmatpush1.xpose.msra.mxu0 0.0
        %3184 = vmatprep.subr.mxu0 0.0
        %3185 = vmatpush1.xpose.msra.mxu0 0.0
        %3186 = vmatprep.subr.mxu0 0.0
        %3187 = vmatpush1.xpose.msra.mxu0 0.0
        %3188 = vmatprep.subr.mxu0 0.0
        %3189 = vmatpush1.xpose.msra.mxu0 0.0
        %3190 = vmatprep.subr.mxu0 0.0
        %3191 = vmatpush1.xpose.msra.mxu0 0.0
        %3192 = vmatprep.subr.mxu0 0.0
        %3193 = vmatpush1.xpose.msra.mxu0 0.0
        %3194 = vmatprep.subr.mxu0 0.0
        %3195 = vmatpush1.xpose.msra.mxu0 0.0
        %3196 = vmatprep.subr.mxu0 0.0
        %3197 = vmatpush1.xpose.msra.mxu0 0.0
        %3198 = vmatprep.subr.mxu0 0.0
        %3199 = vmatpush1.xpose.msra.mxu0 0.0
        %3200 = vmatprep.subr.mxu0 0.0
        %3201 = vmatpush1.xpose.msra.mxu0 0.0
        %3202 = vmatprep.subr.mxu0 0.0
        %3203 = vmatpush1.xpose.msra.mxu0 0.0
        %3204 = vmatprep.subr.mxu0 0.0
        %3205 = vmatpush1.xpose.msra.mxu0 0.0
        %3206 = vmatprep.subr.mxu0 0.0
        %3207 = vmatpush1.xpose.msra.mxu0 0.0
        %3208 = vmatprep.subr.mxu0 0.0
        %3209 = vmatpush1.xpose.msra.mxu0 0.0
        %3210 = vmatprep.mubr.f32.mxu0 0.0
        %3211 = vmatmul.mubr.f32.gmra.mrb[0].mxu0 %v3142
        %v3212 = vpop.f32.mrb[0].mxu0
        %v3213 = vadd.f32 0.0, %v3212
        %v3214 = vpop.f32.mrb[0].mxu0
        %3215 = vdwg.mxu0
        %v3216 = vsel %vm722, %v3213, -inf
        %3217 = vmax.xlane.f32.xlu0 %v3216
        %v3218 = vpop.xlane.xlu0 %3217
        %v3219 = vsub.f32 %v3213, %v3218
        %v3220 = vmul.f32 %v3219, 1.442695
        %v3221 = vpow.pop %v3220
        %v3222 = vsel %vm722, %v3221, 0.0
        %3223 = vadd.xlane.f32.xlu0 %v3222
        %v3224 = vpop.xlane.xlu0 %3223
        %v3225 = vrcp.pop %v3224
        %v3226 = vmul.f32 %v3221, %v3225
        %3227 = vrot.lane.b32.xlu0 %v644, 32
        %v3228 = vpop.permute.xlu0 %3227
        %v3231 = vsel %vm722, %v3226, 0
        %3233 = vmatprep.subr.mxu0 0.0
        %3234 = vmatpush1.msra.mxu0 %v3228
        %3235 = vmatprep.subr.mxu0 0.0
        %3236 = vmatpush1.msra.mxu0 0.0
        %3237 = vmatprep.subr.mxu0 0.0
        %3238 = vmatpush1.msra.mxu0 0.0
        %3239 = vmatprep.subr.mxu0 0.0
        %3240 = vmatpush1.msra.mxu0 0.0
        %3241 = vmatprep.subr.mxu0 0.0
        %3242 = vmatpush1.msra.mxu0 0.0
        %3243 = vmatprep.subr.mxu0 0.0
        %3244 = vmatpush1.msra.mxu0 0.0
        %3245 = vmatprep.subr.mxu0 0.0
        %3246 = vmatpush1.msra.mxu0 0.0
        %3247 = vmatprep.subr.mxu0 0.0
        %3248 = vmatpush1.msra.mxu0 0.0
        %3249 = vmatprep.subr.mxu0 0.0
        %3250 = vmatpush1.msra.mxu0 0.0
        %3251 = vmatprep.subr.mxu0 0.0
        %3252 = vmatpush1.msra.mxu0 0.0
        %3253 = vmatprep.subr.mxu0 0.0
        %3254 = vmatpush1.msra.mxu0 0.0
        %3255 = vmatprep.subr.mxu0 0.0
        %3256 = vmatpush1.msra.mxu0 0.0
        %3257 = vmatprep.subr.mxu0 0.0
        %3258 = vmatpush1.msra.mxu0 0.0
        %3259 = vmatprep.subr.mxu0 0.0
        %3260 = vmatpush1.msra.mxu0 0.0
        %3261 = vmatprep.subr.mxu0 0.0
        %3262 = vmatpush1.msra.mxu0 0.0
        %3263 = vmatprep.subr.mxu0 0.0
        %3264 = vmatpush1.msra.mxu0 0.0
        %3265 = vmatprep.subr.mxu0 0.0
        %3266 = vmatpush1.msra.mxu0 0.0
        %3267 = vmatprep.subr.mxu0 0.0
        %3268 = vmatpush1.msra.mxu0 0.0
        %3269 = vmatprep.subr.mxu0 0.0
        %3270 = vmatpush1.msra.mxu0 0.0
        %3271 = vmatprep.subr.mxu0 0.0
        %3272 = vmatpush1.msra.mxu0 0.0
        %3273 = vmatprep.subr.mxu0 0.0
        %3274 = vmatpush1.msra.mxu0 0.0
        %3275 = vmatprep.subr.mxu0 0.0
        %3276 = vmatpush1.msra.mxu0 0.0
        %3277 = vmatprep.subr.mxu0 0.0
        %3278 = vmatpush1.msra.mxu0 0.0
        %3279 = vmatprep.subr.mxu0 0.0
        %3280 = vmatpush1.msra.mxu0 0.0
        %3281 = vmatprep.subr.mxu0 0.0
        %3282 = vmatpush1.msra.mxu0 0.0
        %3283 = vmatprep.subr.mxu0 0.0
        %3284 = vmatpush1.msra.mxu0 0.0
        %3285 = vmatprep.subr.mxu0 0.0
        %3286 = vmatpush1.msra.mxu0 0.0
        %3287 = vmatprep.subr.mxu0 0.0
        %3288 = vmatpush1.msra.mxu0 0.0
        %3289 = vmatprep.subr.mxu0 0.0
        %3290 = vmatpush1.msra.mxu0 0.0
        %3291 = vmatprep.subr.mxu0 0.0
        %3292 = vmatpush1.msra.mxu0 0.0
        %3293 = vmatprep.subr.mxu0 0.0
        %3294 = vmatpush1.msra.mxu0 0.0
        %3295 = vmatprep.subr.mxu0 0.0
        %3296 = vmatpush1.msra.mxu0 0.0
        %3297 = vmatprep.mubr.f32.mxu0 0.0
        %3298 = vmatmul.mubr.f32.gmra.mrb[0].mxu0 %v3231
        %v3299 = vpop.f32.mrb[0].mxu0
        %v3300 = vadd.f32 0.0, %v3299
        %v3301 = vpop.f32.mrb[0].mxu0
        %3302 = vdwg.mxu0
        %3304 = vrot.lane.b32.xlu0 %v2314, 32
        %v3305 = vpop.permute.xlu0 %3304
        %3308 = vrot.lane.b32.xlu0 %v2479, 64
        %v3309 = vpop.permute.xlu0 %3308
        %3312 = vrot.lane.b32.xlu0 %v2644, 96
        %v3313 = vpop.permute.xlu0 %3312
        %3316 = vrot.lane.b32.xlu0 %v2970, 32
        %v3317 = vpop.permute.xlu0 %3316
        %3320 = vrot.lane.b32.xlu0 %v3135, 64
        %v3321 = vpop.permute.xlu0 %3320
        %3324 = vrot.lane.b32.xlu0 %v3300, 96
        %v3325 = vpop.permute.xlu0 %3324
        %v3327 = vsel %vm333, %v2148, %v3305
        %v3328 = vsel %vm1984, %v3327, %v3309
        %v3329 = vsel %vm1986, %v3328, %v3313
        %v3330 = vsel %vm333, %v2804, %v3317
        %v3331 = vsel %vm1984, %v3330, %v3321
        %v3332 = vsel %vm1986, %v3331, %v3325
        %vm3333 = vcmp.gt.f32.partialorder %v1987, 0.0
        %vm3334 = vcmp.gt.f32.partialorder %v1990, 0.0
        %vm3335 = vcmp.gt.f32.partialorder %v3329, 0.0
        %vm3336 = vcmp.gt.f32.partialorder %v3332, 0.0
        %v3337 = vmin.f32 %v1987, 0.0
        %v3338 = vmin.f32 %v1990, 0.0
        %v3339 = vmin.f32 %v3329, 0.0
        %v3340 = vmin.f32 %v3332, 0.0
        %v3341 = vmul.f32 %v3337, 1.442695
        %v3342 = vpow.pop %v3341
        %v3343 = vmul.f32 %v3338, 1.442695
        %v3344 = vpow.pop %v3343
        %v3345 = vmul.f32 %v3339, 1.442695
        %v3346 = vpow.pop %v3345
        %v3347 = vmul.f32 %v3340, 1.442695
        %v3348 = vpow.pop %v3347
        %v3349 = vsub.f32 %v3342, 1.0
        %v3350 = vsub.f32 %v3344, 1.0
        %v3351 = vsub.f32 %v3346, 1.0
        %v3352 = vsub.f32 %v3348, 1.0
        %v3353 = vsel %vm3333, %v1987, %v3349
        %v3354 = vsel %vm3334, %v1990, %v3350
        %v3355 = vsel %vm3335, %v3329, %v3351
        %v3356 = vsel %vm3336, %v3332, %v3352
        %v3357 = vld [vmem:[%s5] sm:$0xff]
        %v3358 = vld [vmem:[%s5 + $0x8] sm:$0xff]
        %v3359 = vld [vmem:[%s5 + $0x10] sm:$0xff]
        %v3360 = vld [vmem:[%s5 + $0x18] sm:$0xff]
        %v3361 = vld [vmem:[%s5 + $0x20] sm:$0xff]
        %v3362 = vld [vmem:[%s5 + $0x28] sm:$0xff]
        %v3363 = vld [vmem:[%s5 + $0x30] sm:$0xff]
        %v3364 = vld [vmem:[%s5 + $0x38] sm:$0xff]
        %v3365 = vld [vmem:[%s5 + $0x40] sm:$0xff]
        %v3366 = vld [vmem:[%s5 + $0x48] sm:$0xff]
        %v3367 = vld [vmem:[%s5 + $0x50] sm:$0xff]
        %v3368 = vld [vmem:[%s5 + $0x58] sm:$0xff]
        %v3369 = vld [vmem:[%s5 + $0x60] sm:$0xff]
        %v3370 = vld [vmem:[%s5 + $0x68] sm:$0xff]
        %v3371 = vld [vmem:[%s5 + $0x70] sm:$0xff]
        %v3372 = vld [vmem:[%s5 + $0x78] sm:$0xff]
        %v3373 = vld [vmem:[%s5 + $0x80] sm:$0xff]
        %v3374 = vld [vmem:[%s5 + $0x88] sm:$0xff]
        %v3375 = vld [vmem:[%s5 + $0x90] sm:$0xff]
        %v3376 = vld [vmem:[%s5 + $0x98] sm:$0xff]
        %v3377 = vld [vmem:[%s5 + $0xa0] sm:$0xff]
        %v3378 = vld [vmem:[%s5 + $0xa8] sm:$0xff]
        %v3379 = vld [vmem:[%s5 + $0xb0] sm:$0xff]
        %v3380 = vld [vmem:[%s5 + $0xb8] sm:$0xff]
        %v3381 = vld [vmem:[%s5 + $0xc0] sm:$0xff]
        %v3382 = vld [vmem:[%s5 + $0xc8] sm:$0xff]
        %v3383 = vld [vmem:[%s5 + $0xd0] sm:$0xff]
        %v3384 = vld [vmem:[%s5 + $0xd8] sm:$0xff]
        %v3385 = vld [vmem:[%s5 + $0xe0] sm:$0xff]
        %v3386 = vld [vmem:[%s5 + $0xe8] sm:$0xff]
        %v3387 = vld [vmem:[%s5 + $0xf0] sm:$0xff]
        %v3388 = vld [vmem:[%s5 + $0xf8] sm:$0xff]
        %3389 = vmatprep.subr.mxu0 0.0
        %3390 = vmatpush1.msra.mxu0 %v3357
        %3391 = vmatprep.subr.mxu0 0.0
        %3392 = vmatpush1.msra.mxu0 %v3358
        %3393 = vmatprep.subr.mxu0 0.0
        %3394 = vmatpush1.msra.mxu0 %v3359
        %3395 = vmatprep.subr.mxu0 0.0
        %3396 = vmatpush1.msra.mxu0 %v3360
        %3397 = vmatprep.subr.mxu0 0.0
        %3398 = vmatpush1.msra.mxu0 %v3361
        %3399 = vmatprep.subr.mxu0 0.0
        %3400 = vmatpush1.msra.mxu0 %v3362
        %3401 = vmatprep.subr.mxu0 0.0
        %3402 = vmatpush1.msra.mxu0 %v3363
        %3403 = vmatprep.subr.mxu0 0.0
        %3404 = vmatpush1.msra.mxu0 %v3364
        %3405 = vmatprep.subr.mxu0 0.0
        %3406 = vmatpush1.msra.mxu0 %v3365
        %3407 = vmatprep.subr.mxu0 0.0
        %3408 = vmatpush1.msra.mxu0 %v3366
        %3409 = vmatprep.subr.mxu0 0.0
        %3410 = vmatpush1.msra.mxu0 %v3367
        %3411 = vmatprep.subr.mxu0 0.0
        %3412 = vmatpush1.msra.mxu0 %v3368
        %3413 = vmatprep.subr.mxu0 0.0
        %3414 = vmatpush1.msra.mxu0 %v3369
        %3415 = vmatprep.subr.mxu0 0.0
        %3416 = vmatpush1.msra.mxu0 %v3370
        %3417 = vmatprep.subr.mxu0 0.0
        %3418 = vmatpush1.msra.mxu0 %v3371
        %3419 = vmatprep.subr.mxu0 0.0
        %3420 = vmatpush1.msra.mxu0 %v3372
        %3421 = vmatprep.subr.mxu0 0.0
        %3422 = vmatpush1.msra.mxu0 %v3373
        %3423 = vmatprep.subr.mxu0 0.0
        %3424 = vmatpush1.msra.mxu0 %v3374
        %3425 = vmatprep.subr.mxu0 0.0
        %3426 = vmatpush1.msra.mxu0 %v3375
        %3427 = vmatprep.subr.mxu0 0.0
        %3428 = vmatpush1.msra.mxu0 %v3376
        %3429 = vmatprep.subr.mxu0 0.0
        %3430 = vmatpush1.msra.mxu0 %v3377
        %3431 = vmatprep.subr.mxu0 0.0
        %3432 = vmatpush1.msra.mxu0 %v3378
        %3433 = vmatprep.subr.mxu0 0.0
        %3434 = vmatpush1.msra.mxu0 %v3379
        %3435 = vmatprep.subr.mxu0 0.0
        %3436 = vmatpush1.msra.mxu0 %v3380
        %3437 = vmatprep.subr.mxu0 0.0
        %3438 = vmatpush1.msra.mxu0 %v3381
        %3439 = vmatprep.subr.mxu0 0.0
        %3440 = vmatpush1.msra.mxu0 %v3382
        %3441 = vmatprep.subr.mxu0 0.0
        %3442 = vmatpush1.msra.mxu0 %v3383
        %3443 = vmatprep.subr.mxu0 0.0
        %3444 = vmatpush1.msra.mxu0 %v3384
        %3445 = vmatprep.subr.mxu0 0.0
        %3446 = vmatpush1.msra.mxu0 %v3385
        %3447 = vmatprep.subr.mxu0 0.0
        %3448 = vmatpush1.msra.mxu0 %v3386
        %3449 = vmatprep.subr.mxu0 0.0
        %3450 = vmatpush1.msra.mxu0 %v3387
        %3451 = vmatprep.subr.mxu0 0.0
        %3452 = vmatpush1.msra.mxu0 %v3388
        %3453 = vmatprep.mubr.f32.mxu0 %v3354
        %3454 = vmatmul.mubr.f32.gmra.mrb[0].mxu0 %v3353
        %v3455 = vpop.f32.mrb[0].mxu0
        %v3456 = vadd.f32 0.0, %v3455
        %v3457 = vpop.f32.mrb[0].mxu0
        %3458 = vmatprep.mubr.f32.mxu0 %v3356
        %3459 = vmatmul.mubr.f32.gmra.mrb[0].mxu0 %v3355
        %v3460 = vpop.f32.mrb[0].mxu0
        %v3461 = vadd.f32 0.0, %v3460
        %v3462 = vpop.f32.mrb[0].mxu0
        %3463 = vdwg.mxu0
        %v3464 = vadd.f32 %v329, %v3456
        %v3465 = vadd.f32 %v330, %v3461
        %3466 = vst.msk [vmem:[%s315] sm:$0xff] %vm333, %v3464
        %3467 = vst.msk [vmem:[%s315 + $0x8] sm:$0xff] %vm333, %v3465
        %s3468 = sand.u32 %s208, 1
        %s3469 = scalar_lea.sflag [#allocation3], %s3468
        %s3470 = sand.u32 %s208, 1
        %s3471 = smul.addr %s3470, 16
        %s3472 = scalar_lea.vmem [#allocation2], %s3471
        // Predicated region
        $region53: #{tpu_custom_call.1} parent=51 // pred_check
          %p3473 = pneg %p218
        $region54: #{tpu_custom_call.1} parent=51 // pred_check_branch
          %3475 = sbr.rel (%p3473) target = $region56
        $region55: #{tpu_custom_call.1} parent=51 // pred_region
          %s3476 = smul.u32 2, %s22
          %s3478 = ssub.s32 256, 256
          %3479 = vsyncadd %s3469, %s3478
          %s3480 = smul.addr %s3476, 128
          %s3481 = scalar_lea.hbm %s8, %s3480
          %s3482 = sshll.u32 %s3472, 4
          %s3483 = int_to_ptr.vmem [resolvable:$true] %s3482
          %3488 = dma.vmem_to_hbm [thread:$0]  %s3483, 256, %s3481, %s3469, 128, 128, 8
        $region56: #{tpu_custom_call.1} parent=51 // pred_fallthru
          _
      $region52: #{tpu_custom_call.1} parent=5 // pred_fallthru
        _
      %p3489 = scmp.le.s32.totalorder 2, %s17
      // Predicated region
      $region57: #{tpu_custom_call.1} parent=5 // pred_check
        %p3490 = pneg %p3489
      $region58: #{tpu_custom_call.1} parent=5 // pred_check_branch
        %3492 = sbr.rel (%p3490) target = $region60
      $region59: #{tpu_custom_call.1} parent=5 // pred_region
        %s3493 = ssub.s32 %s17, 2
        // Predicated region
        $region61: #{tpu_custom_call.1} parent=59 // pred_check
          %p3494 = pneg %p224
        $region62: #{tpu_custom_call.1} parent=59 // pred_check_branch
          %3496 = sbr.rel (%p3494) target = $region64
        $region63: #{tpu_custom_call.1} parent=59 // pred_region
          %s3497 = sand.u32 %s209, 1
          %s3498 = scalar_lea.sflag [#allocation3], %s3497
          %s3499 = sand.u32 %s209, 1
          %s3500 = smul.addr %s3499, 16
          %s3501 = scalar_lea.vmem [#allocation2], %s3500
          %3502 = dma.done %s3498, 256
        $region64: #{tpu_custom_call.1} parent=59 // pred_fallthru
          _
      $region60: #{tpu_custom_call.1} parent=5 // pred_fallthru
        _
    $region6: #{tpu_custom_call.1} parent=1 // loop_footer
      %s21 = sadd.s32 1, %s17
    $region7: #{tpu_custom_call.1} parent=1 // loop_footer_branch
      %16 = sbr.rel target = $region3
    $region8: #{tpu_custom_call.1} parent=1 // loop_exit
      _
    %3503 = vsyncpa [#allocation3], 1
    %s3504 = scalar_lea.sflag [#allocation3], 1
    %3505 = vsyncpa %s3504, 1

</llo_original>
